<compile_context>
chip_gen: v7x
topology: tpu7x:2x2x1
jax: 0.10.0
libtpu: 0.0.40
codegen_flags: <defaults>
</compile_context>

<pallas_src>
from functools import partial

import numpy as np
import jax
import jax.numpy as jnp
from jax.experimental import pallas as pl
from jax.experimental.pallas import tpu as pltpu


# ------------------------------ tiling helpers ------------------------------ #

def _round_up(n, m):
    return ((n + m - 1) // m) * m


def _pad_k(K0):
    """Pad K to a lane-dense multiple (512 for large K so TK can be 512)."""
    mult = 512 if K0 >= 512 else 128
    return _round_up(K0, mult)


def _pick_tiles(Nx, Ny, Kp, C):
    """K tile (lane axis) and x-row tile (MXU M axis = 2*C*tnx, capped at 512)."""
    tk = Kp
    for t in (1024, 512, 256, 128):
        if Kp % t == 0:
            tk = min(t, Kp)
            break
    if Nx % 8 != 0:
        tnx = Nx                      # block dim == array dim is always legal
    else:
        tnx = 8
        for t in (16, 32, 64):
            if Nx % t == 0 and 2 * C * t <= 512 and t * max(Ny, tk) <= 64 * 1024:
                tnx = t
    return tnx, tk


# ----------------------------- Pallas kernels ------------------------------ #

def _adjnufft_kernel(kd_ref, d_ref, kx_ref, ytab_ref, sm_ref,
                     xr_ref, xi_ref, acc_c, acc_s, *, C, tnx, Nx, scale):
    """Adjoint NUDFT; K tiles are the reduction axis.

    kd_ref  : (1, 2C, TK)    [re; im] k-space data
    d_ref   : (1, 1, TK)     density compensation (0 in K padding)
    kx_ref  : (1, 1, TK)     kx trajectory
    ytab_ref: (1, 2, TK, Ny) [cos(ky*ry); sin(ky*ry)]   (MXU RHS)
    sm_ref  : (2C, TNX, Ny)  [smr; smi]
    outputs : (1, TNX, Ny)   real / imag image tile
    acc_c/s : (2C*TNX, Ny)   f32 accumulators of LHS@cos / LHS@sin
    """
    k = pl.program_id(2)
    p = pl.program_id(1)
    tk = kd_ref.shape[-1]

    @pl.when(k == 0)
    def _():
        acc_c[...] = jnp.zeros_like(acc_c)
        acc_s[...] = jnp.zeros_like(acc_s)

    # x-phase for this row tile: rx = p*tnx + iota - Nx//2 (trig only on (TNX, TK))
    rx = (jax.lax.broadcasted_iota(jnp.int32, (tnx, tk), 0)
          + (p * tnx - Nx // 2)).astype(jnp.float32)
    px = rx * kx_ref[0]                                     # (TNX, TK)
    cx, sx = jnp.cos(px), jnp.sin(px)

    # B = (kd*d) * exp(+i kx rx), stacked rows [B_re; B_im] -> MXU LHS
    w1 = kd_ref[0] * d_ref[0]                               # (2C, TK) = [re; im]*d
    w2 = jnp.concatenate([-w1[C:], w1[:C]], axis=0)         # (2C, TK) = [-im; re]*d
    lhs = w1[:, None, :] * cx[None] + w2[:, None, :] * sx[None]   # (2C, TNX, TK)
    lhs = lhs.reshape(2 * C * tnx, tk).astype(ytab_ref.dtype)

    acc_c[...] += jnp.dot(lhs, ytab_ref[0, 0], preferred_element_type=jnp.float32)
    acc_s[...] += jnp.dot(lhs, ytab_ref[0, 1], preferred_element_type=jnp.float32)

    @pl.when(k == pl.num_programs(2) - 1)
    def _():
        ct = C * tnx
        ny = acc_c.shape[-1]
        A = acc_c[...]
        B = acc_s[...]
        coil_r = (A[:ct] - B[ct:]).reshape(C, tnx, ny)
        coil_i = (B[:ct] + A[ct:]).reshape(C, tnx, ny)
        smr = sm_ref[:C].astype(jnp.float32)
        smi = sm_ref[C:].astype(jnp.float32)
        # x = sum_c conj(smaps) * coil  (VPU combine, once per output tile)
        xr_ref[0] = jnp.sum(smr * coil_r + smi * coil_i, axis=0) * scale
        xi_ref[0] = jnp.sum(smr * coil_i - smi * coil_r, axis=0) * scale


def _nufft_kernel(img_ref, sm_ref, kx_ref, ytab_ref,
                  kr_ref, ki_ref, acc_r, acc_i, *, C, tnx, Nx, scale):
    """Forward NUDFT; x-row tiles are the reduction axis.

    img_ref : (1, 2, TNX, Ny) [re; im] image tile
    sm_ref  : (2C, TNX, Ny)   [smr; smi] (bf16 stream)
    kx_ref  : (1, 1, TK)      kx trajectory
    ytab_ref: (1, 2, Ny, TK)  [cos(ky*ry); sin(ky*ry)]   (MXU RHS)
    outputs : (1, C, TK)      real / imag k-space
    acc_r/i : (C, TK)         f32 accumulators
    """
    p = pl.program_id(2)
    tk = kx_ref.shape[-1]
    ny = img_ref.shape[-1]

    @pl.when(p == 0)
    def _():
        acc_r[...] = jnp.zeros_like(acc_r)
        acc_i[...] = jnp.zeros_like(acc_i)

    # coil images cc = smaps * img, stacked [cc_re; cc_im] -> MXU LHS
    ir = img_ref[0, 0]                                       # (TNX, Ny)
    ii = img_ref[0, 1]
    sm1 = sm_ref[...]                                        # (2C, TNX, Ny)
    sm2 = jnp.concatenate([-sm1[C:], sm1[:C]], axis=0)
    lhs = sm1 * ir[None] + sm2 * ii[None]                    # (2C, TNX, Ny)
    lhs = lhs.reshape(2 * C * tnx, ny).astype(ytab_ref.dtype)

    # contract ry on the MXU:  D = sum_ry cc * exp(-i ky ry)
    Pm = jnp.dot(lhs, ytab_ref[0, 0], preferred_element_type=jnp.float32)
    Qm = jnp.dot(lhs, ytab_ref[0, 1], preferred_element_type=jnp.float32)
    ct = C * tnx
    d_r = (Pm[:ct] + Qm[ct:]).reshape(C, tnx, tk)
    d_i = (Pm[ct:] - Qm[:ct]).reshape(C, tnx, tk)

    # contract the TNX rows with exp(-i kx rx) on the VPU/XLU
    rx = (jax.lax.broadcasted_iota(jnp.int32, (tnx, tk), 0)
          + (p * tnx - Nx // 2)).astype(jnp.float32)
    px = rx * kx_ref[0]                                      # (TNX, TK)
    cx, sx = jnp.cos(px), jnp.sin(px)
    acc_r[...] += jnp.sum(d_r * cx[None] + d_i * sx[None], axis=1)
    acc_i[...] += jnp.sum(d_i * cx[None] - d_r * sx[None], axis=1)

    @pl.when(p == pl.num_programs(2) - 1)
    def _():
        kr_ref[0] = acc_r[...] * scale
        ki_ref[0] = acc_i[...] * scale


# ------------------------------ pallas_call glue ---------------------------- #

def _adjnufft_pallas(kd_s, dc_f, kx, ytab, sm_s, *, Nx, Ny, C, tnx, tk, scale):
    F, _, Kp = kd_s.shape
    kernel = partial(_adjnufft_kernel, C=C, tnx=tnx, Nx=Nx, scale=scale)
    # TODO(synk): pipeline_mode=pl.Buffered(1) on sm_s (k-invariant) and
    # pltpu.CORE_PARALLEL on the P-tile axis for F==1 workloads on v7x.
    return pl.pallas_call(
        kernel,
        out_shape=(jax.ShapeDtypeStruct((F, Nx, Ny), jnp.float32),
                   jax.ShapeDtypeStruct((F, Nx, Ny), jnp.float32)),
        grid=(F, Nx // tnx, Kp // tk),
        in_specs=[
            pl.BlockSpec((1, 2 * C, tk), lambda f, p, k: (f, 0, k)),     # k-space data
            pl.BlockSpec((1, 1, tk), lambda f, p, k: (f, 0, k)),         # dcomp
            pl.BlockSpec((1, 1, tk), lambda f, p, k: (f, 0, k)),         # kx
            pl.BlockSpec((1, 2, tk, Ny), lambda f, p, k: (f, 0, k, 0)),  # y-phase table
            pl.BlockSpec((2 * C, tnx, Ny), lambda f, p, k: (0, p, 0)),   # smaps
        ],
        out_specs=(pl.BlockSpec((1, tnx, Ny), lambda f, p, k: (f, p, 0)),
                   pl.BlockSpec((1, tnx, Ny), lambda f, p, k: (f, p, 0))),
        scratch_shapes=[pltpu.VMEM((2 * C * tnx, Ny), jnp.float32),
                        pltpu.VMEM((2 * C * tnx, Ny), jnp.float32)],
        compiler_params=pltpu.CompilerParams(
            dimension_semantics=("parallel", "parallel", "arbitrary"),
            vmem_limit_bytes=64 * 1024 * 1024),
    )(kd_s, dc_f, kx, ytab, sm_s)


def _nufft_pallas(img_s, sm_s, kx, ytab, *, Nx, Ny, C, tnx, tk, scale):
    F = img_s.shape[0]
    Kp = kx.shape[-1]
    kernel = partial(_nufft_kernel, C=C, tnx=tnx, Nx=Nx, scale=scale)
    return pl.pallas_call(
        kernel,
        out_shape=(jax.ShapeDtypeStruct((F, C, Kp), jnp.float32),
                   jax.ShapeDtypeStruct((F, C, Kp), jnp.float32)),
        grid=(F, Kp // tk, Nx // tnx),
        in_specs=[
            pl.BlockSpec((1, 2, tnx, Ny), lambda f, kb, p: (f, 0, p, 0)),   # image
            pl.BlockSpec((2 * C, tnx, Ny), lambda f, kb, p: (0, p, 0)),     # smaps (bf16)
            pl.BlockSpec((1, 1, tk), lambda f, kb, p: (f, 0, kb)),          # kx
            pl.BlockSpec((1, 2, Ny, tk), lambda f, kb, p: (f, 0, 0, kb)),   # y-phase table
        ],
        out_specs=(pl.BlockSpec((1, C, tk), lambda f, kb, p: (f, 0, kb)),
                   pl.BlockSpec((1, C, tk), lambda f, kb, p: (f, 0, kb))),
        scratch_shapes=[pltpu.VMEM((C, tk), jnp.float32),
                        pltpu.VMEM((C, tk), jnp.float32)],
        compiler_params=pltpu.CompilerParams(
            dimension_semantics=("parallel", "parallel", "arbitrary"),
            vmem_limit_bytes=64 * 1024 * 1024),
    )(img_s, sm_s, kx, ytab)


# ------------------------------- MCNUFFT module ----------------------------- #

class MCNUFFT:
    """JAX/Pallas port of the PyTorch MCNUFFT module.

    The injected nufft_ob / adjnufft_ob operators are realized as exact NUDFT Pallas
    kernels; the per-frame loop plus row/K tiling is the Pallas grid.  dcomp is a
    real-valued density-compensation weight.  use_bf16=False keeps f32 matmul
    operands for iterative-recon adjoint consistency.
    """

    def __init__(self, ktraj, dcomp, use_bf16=True):
        self.ktraj = jnp.squeeze(jnp.asarray(ktraj, jnp.float32))   # (2, K[, F])
        self.dcomp = jnp.squeeze(jnp.asarray(dcomp, jnp.float32))   # (K[, F])
        self.mm_dtype = jnp.bfloat16 if use_bf16 else jnp.float32

    def __call__(self, inv, data, smaps):
        data = jnp.squeeze(data)
        C = int(smaps.shape[1])
        Nx, Ny = int(smaps.shape[2]), int(smaps.shape[3])
        scale = float(1.0 / np.sqrt(Nx * Ny))

        sm = jnp.asarray(smaps, jnp.complex64)[0]                          # (C, Nx, Ny)
        sm_s = jnp.concatenate([jnp.real(sm), jnp.imag(sm)],
                               axis=0).astype(jnp.float32)                 # (2C, Nx, Ny)
        ry = jnp.arange(Ny, dtype=jnp.float32) - Ny // 2

        multi = data.ndim > 2
        kt = self.ktraj if self.ktraj.ndim == 3 else self.ktraj[..., None]  # (2, K, F)
        dc = self.dcomp if self.dcomp.ndim == 2 else self.dcomp[..., None]  # (K, F)
        K0 = int(kt.shape[1])
        Kp = _pad_k(K0)
        tnx, tk = _pick_tiles(Nx, Ny, Kp, C)

        kt_f = jnp.transpose(kt, (2, 0, 1)).astype(jnp.float32)            # (F, 2, K)
        kt_f = jnp.pad(kt_f, ((0, 0), (0, 0), (0, Kp - K0)))
        kx = kt_f[:, 0:1, :]                                               # (F, 1, Kp)
        ky = kt_f[:, 1, :]                                                 # (F, Kp)

        if inv:
            kd = data if multi else data[..., None]                        # (C, K, F)
            kd_f = jnp.transpose(kd, (2, 0, 1))                            # (F, C, K)
            kd_s = jnp.concatenate([jnp.real(kd_f), jnp.imag(kd_f)],
                                   axis=1).astype(jnp.float32)             # (F, 2C, K)
            kd_s = jnp.pad(kd_s, ((0, 0), (0, 0), (0, Kp - K0)))
            dc_f = jnp.transpose(dc, (1, 0))[:, None, :].astype(jnp.float32)
            dc_f = jnp.pad(dc_f, ((0, 0), (0, 0), (0, Kp - K0)))           # dcomp=0 in pad
            # adjoint uses exp(+i ky ry): table in (K, Ny) matmul-RHS orientation
            ph = ky[:, :, None] * ry[None, None, :]                        # (F, Kp, Ny)
            ytab = jnp.stack([jnp.cos(ph), jnp.sin(ph)], axis=1).astype(self.mm_dtype)
            xr, xi = _adjnufft_pallas(kd_s, dc_f, kx, ytab, sm_s,
                                      Nx=Nx, Ny=Ny, C=C, tnx=tnx, tk=tk, scale=scale)
            x = (xr + 1j * xi).astype(jnp.complex64)                       # (F, Nx, Ny)
            x = jnp.transpose(x, (1, 2, 0))                                # (Nx, Ny, F)
            return x if multi else x[..., 0]
        else:
            im = data if multi else data[..., None]                        # (Nx, Ny, F)
            im_f = jnp.transpose(im, (2, 0, 1))                            # (F, Nx, Ny)
            img_s = jnp.stack([jnp.real(im_f), jnp.imag(im_f)],
                              axis=1).astype(jnp.float32)                  # (F, 2, Nx, Ny)
            # forward uses exp(-i ky ry): table in (Ny, K) matmul-RHS orientation
            ph = ky[:, None, :] * ry[None, :, None]                        # (F, Ny, Kp)
            ytab = jnp.stack([jnp.cos(ph), jnp.sin(ph)], axis=1).astype(self.mm_dtype)
            kr, ki = _nufft_pallas(img_s, sm_s.astype(self.mm_dtype), kx, ytab,
                                   Nx=Nx, Ny=Ny, C=C, tnx=tnx, tk=tk, scale=scale)
            k = (kr[:, :, :K0] + 1j * ki[:, :, :K0]).astype(jnp.complex64)  # (F, C, K)
            k = jnp.transpose(k, (1, 2, 0))                                # (C, K, F)
            return k if multi else k[..., 0]


# ------------------------------ pure-JAX reference --------------------------- #

def _pixel_coords(Nx, Ny):
    rx = jnp.arange(Nx, dtype=jnp.float32) - Nx // 2
    ry = jnp.arange(Ny, dtype=jnp.float32) - Ny // 2
    gx, gy = jnp.meshgrid(rx, ry, indexing="ij")
    return jnp.stack([gx.ravel(), gy.ravel()], axis=-1)                    # (P, 2)


def _reference(inv, data, smaps, ktraj, dcomp):
    C = smaps.shape[1]
    Nx, Ny = smaps.shape[2], smaps.shape[3]
    P = Nx * Ny
    scale = 1.0 / np.sqrt(Nx * Ny)
    coordsT = _pixel_coords(Nx, Ny)
    sm = smaps[0].reshape(C, P)
    F = data.shape[-1]
    outs = []
    for f in range(F):
        phase = coordsT @ ktraj[:, :, f]                                   # (P, K)
        if inv:
            E = jnp.exp(1j * phase).astype(jnp.complex64)
            w = data[:, :, f] * dcomp[None, :, f]
            coil = w @ E.T                                                 # (C, P)
            x = jnp.sum(jnp.conj(sm) * coil, axis=0) * scale
            outs.append(x.reshape(Nx, Ny))
        else:
            E = jnp.exp(-1j * phase).astype(jnp.complex64)
            coil = sm * data[:, :, f].reshape(1, P)
            outs.append((coil @ E) * scale)                                # (C, K)
    return jnp.stack(outs, axis=-1)


# ------------------------------------ main ----------------------------------- #

if __name__ == "__main__":
    key = jax.random.PRNGKey(0)
    # small shapes that still exercise >1 tile on every grid axis
    C, Nx, Ny, K, F = 8, 64, 16, 300, 2
    ks = jax.random.split(key, 8)

    smaps = (jax.random.normal(ks[0], (1, C, Nx, Ny), jnp.float32)
             + 1j * jax.random.normal(ks[1], (1, C, Nx, Ny), jnp.float32)
             ).astype(jnp.complex64)
    ktraj = jax.random.uniform(ks[2], (2, K, F), jnp.float32,
                               minval=-np.pi, maxval=np.pi)
    dcomp = jax.random.uniform(ks[3], (K, F), jnp.float32, minval=0.1, maxval=1.0)
    kdata = (jax.random.normal(ks[4], (C, K, F), jnp.float32)
             + 1j * jax.random.normal(ks[5], (C, K, F), jnp.float32)
             ).astype(jnp.complex64)
    images = (jax.random.normal(ks[6], (Nx, Ny, F), jnp.float32)
              + 1j * jax.random.normal(ks[7], (Nx, Ny, F), jnp.float32)
              ).astype(jnp.complex64)

    model = MCNUFFT(ktraj, dcomp)

    x_adj = model(True, kdata, smaps)     # adjoint path: k-space -> image
    x_fwd = model(False, images, smaps)   # forward path: image -> k-space
    jax.block_until_ready((x_adj, x_fwd))

    assert x_adj.shape == (Nx, Ny, F) and x_adj.dtype == jnp.complex64
    assert x_fwd.shape == (C, K, F) and x_fwd.dtype == jnp.complex64

    ref_adj = _reference(True, kdata, smaps, ktraj, dcomp)
    ref_fwd = _reference(False, images, smaps, ktraj, dcomp)
    np.testing.assert_allclose(np.asarray(x_adj), np.asarray(ref_adj),
                               rtol=2e-2, atol=2e-2)
    np.testing.assert_allclose(np.asarray(x_fwd), np.asarray(ref_fwd),
                               rtol=2e-2, atol=2e-2)

    print("KERNEL_OK")
</pallas_src>

<mosaic_0001>
module attributes {stable_mosaic.version = 11 : i64} {
  func.func @_adjnufft_kernel(%arg0: i32, %arg1: i32, %arg2: i32, %arg3: memref<1x16x128xf32, #tpu.memory_space<vmem>>, %arg4: memref<1x1x128xf32, #tpu.memory_space<vmem>>, %arg5: memref<1x1x128xf32, #tpu.memory_space<vmem>>, %arg6: memref<1x2x128x16xbf16, #tpu.memory_space<vmem>>, %arg7: memref<16x32x16xf32, #tpu.memory_space<vmem>>, %arg8: memref<1x32x16xf32, #tpu.memory_space<vmem>>, %arg9: memref<1x32x16xf32, #tpu.memory_space<vmem>>, %arg10: memref<512x16xf32, #tpu.memory_space<vmem>>, %arg11: memref<512x16xf32, #tpu.memory_space<vmem>>) attributes {dimension_semantics = [#tpu.dimension_semantics<parallel>, #tpu.dimension_semantics<parallel>, #tpu.dimension_semantics<arbitrary>], iteration_bounds = array<i64: 2, 2, 3>, scalar_prefetch = 0 : i64, scratch_operands = 2 : i64, tpu.core_type = #tpu.core_type<tc>, window_params = [{transform_indices = @transform_0, window_bounds = array<i64: 1, 16, 128>}, {transform_indices = @transform_1, window_bounds = array<i64: 1, 1, 128>}, {transform_indices = @transform_2, window_bounds = array<i64: 1, 1, 128>}, {transform_indices = @transform_3, window_bounds = array<i64: 1, 2, 128, 16>}, {transform_indices = @transform_4, window_bounds = array<i64: 16, 32, 16>}, {transform_indices = @transform_5, window_bounds = array<i64: 1, 32, 16>}, {transform_indices = @transform_6, window_bounds = array<i64: 1, 32, 16>}]} {
    %c0_i32 = arith.constant 0 : i32
    %0 = arith.cmpi eq, %arg2, %c0_i32 : i32
    %1 = arith.extui %0 : i1 to i32
    %c0_i32_0 = arith.constant 0 : i32
    %2 = arith.cmpi ne, %1, %c0_i32_0 : i32
    scf.if %2 {
      %cst_28 = arith.constant 0.000000e+00 : f32
      %54 = vector.broadcast %cst_28 : f32 to vector<512x16xf32>
      %c0_29 = arith.constant 0 : index
      %c0_30 = arith.constant 0 : index
      %55 = vector.load %arg10[%c0_29, %c0_30] : memref<512x16xf32, #tpu.memory_space<vmem>>, vector<512x16xf32>
      tpu.vector_store %arg10[%c0_29, %c0_30], %54 {strides = array<i32>} : memref<512x16xf32, #tpu.memory_space<vmem>>, vector<512x16xf32>,
      %cst_31 = arith.constant 0.000000e+00 : f32
      %56 = vector.broadcast %cst_31 : f32 to vector<512x16xf32>
      %c0_32 = arith.constant 0 : index
      %c0_33 = arith.constant 0 : index
      %57 = vector.load %arg11[%c0_32, %c0_33] : memref<512x16xf32, #tpu.memory_space<vmem>>, vector<512x16xf32>
      tpu.vector_store %arg11[%c0_32, %c0_33], %56 {strides = array<i32>} : memref<512x16xf32, #tpu.memory_space<vmem>>, vector<512x16xf32>,
    } else {
    }
    %3 = tpu.iota {dimensions = array<i32: 0>} : vector<32x128xi32>
    %c32_i32 = arith.constant 32 : i32
    %4 = arith.muli %arg1, %c32_i32 : i32
    %c32_i32_1 = arith.constant 32 : i32
    %5 = arith.subi %4, %c32_i32_1 : i32
    %6 = vector.broadcast %5 : i32 to vector<32x128xi32>
    %7 = arith.addi %3, %6 : vector<32x128xi32>
    %8 = arith.sitofp %7 : vector<32x128xi32> to vector<32x128xf32>
    %c0 = arith.constant 0 : index
    %c0_2 = arith.constant 0 : index
    %c0_3 = arith.constant 0 : index
    %9 = vector.load %arg5[%c0, %c0_2, %c0_3] : memref<1x1x128xf32, #tpu.memory_space<vmem>>, vector<1x1x128xf32>
    %10 = vector.shape_cast %9 : vector<1x1x128xf32> to vector<1x128xf32>
    %11 = vector.broadcast %10 : vector<1x128xf32> to vector<32x128xf32>
    %12 = arith.mulf %8, %11 : vector<32x128xf32>
    %13 = math.cos %12 : vector<32x128xf32>
    %14 = math.sin %12 : vector<32x128xf32>
    %c0_4 = arith.constant 0 : index
    %c0_5 = arith.constant 0 : index
    %c0_6 = arith.constant 0 : index
    %15 = vector.load %arg3[%c0_4, %c0_5, %c0_6] : memref<1x16x128xf32, #tpu.memory_space<vmem>>, vector<1x16x128xf32>
    %16 = vector.shape_cast %15 : vector<1x16x128xf32> to vector<16x128xf32>
    %c0_7 = arith.constant 0 : index
    %c0_8 = arith.constant 0 : index
    %c0_9 = arith.constant 0 : index
    %17 = vector.load %arg4[%c0_7, %c0_8, %c0_9] : memref<1x1x128xf32, #tpu.memory_space<vmem>>, vector<1x1x128xf32>
    %18 = vector.shape_cast %17 : vector<1x1x128xf32> to vector<1x128xf32>
    %19 = vector.broadcast %18 : vector<1x128xf32> to vector<16x128xf32>
    %20 = arith.mulf %16, %19 : vector<16x128xf32>
    %21 = vector.extract_strided_slice %20 {offsets = [8, 0], sizes = [8, 128], strides = [1, 1]} : vector<16x128xf32> to vector<8x128xf32>
    %cst = arith.constant 0.000000e+00 : f32
    %22 = vector.broadcast %cst : f32 to vector<8x128xf32>
    %23 = arith.subf %22, %21 : vector<8x128xf32>
    %24 = vector.extract_strided_slice %20 {offsets = [0, 0], sizes = [8, 128], strides = [1, 1]} : vector<16x128xf32> to vector<8x128xf32>
    %25 = tpu.concatenate %23, %24 in 0 : vector<8x128xf32>, vector<8x128xf32> -> vector<16x128xf32>
    %26 = vector.shape_cast %20 : vector<16x128xf32> to vector<16x1x128xf32>
    %27 = vector.shape_cast %13 : vector<32x128xf32> to vector<1x32x128xf32>
    %28 = vector.broadcast %26 : vector<16x1x128xf32> to vector<16x32x128xf32>
    %29 = vector.broadcast %27 : vector<1x32x128xf32> to vector<16x32x128xf32>
    %30 = arith.mulf %28, %29 : vector<16x32x128xf32>
    %31 = vector.shape_cast %25 : vector<16x128xf32> to vector<16x1x128xf32>
    %32 = vector.shape_cast %14 : vector<32x128xf32> to vector<1x32x128xf32>
    %33 = vector.broadcast %31 : vector<16x1x128xf32> to vector<16x32x128xf32>
    %34 = vector.broadcast %32 : vector<1x32x128xf32> to vector<16x32x128xf32>
    %35 = arith.mulf %33, %34 : vector<16x32x128xf32>
    %36 = arith.addf %30, %35 : vector<16x32x128xf32>
    %37 = vector.shape_cast %36 : vector<16x32x128xf32> to vector<512x128xf32>
    %38 = arith.truncf %37 : vector<512x128xf32> to vector<512x128xbf16>
    %c0_10 = arith.constant 0 : index
    %c0_11 = arith.constant 0 : index
    %39 = vector.load %arg10[%c0_10, %c0_11] : memref<512x16xf32, #tpu.memory_space<vmem>>, vector<512x16xf32>
    %c0_12 = arith.constant 0 : index
    %c0_13 = arith.constant 0 : index
    %c0_14 = arith.constant 0 : index
    %c0_15 = arith.constant 0 : index
    %40 = vector.load %arg6[%c0_12, %c0_13, %c0_14, %c0_15] : memref<1x2x128x16xbf16, #tpu.memory_space<vmem>>, vector<1x1x128x16xbf16>
    %41 = vector.shape_cast %40 : vector<1x1x128x16xbf16> to vector<128x16xbf16>
    %cst_16 = arith.constant dense<0.000000e+00> : vector<512x16xf32>
    %42 = tpu.matmul %38, %41, %cst_16 {dimension_numbers = #tpu.dot_dimension_numbers<[1], [0], [0], [1], [0, 0, 1, 1], [], []>} : vector<512x128xbf16>, vector<128x16xbf16>, vector<512x16xf32> -> vector<512x16xf32>
    %43 = arith.addf %39, %42 : vector<512x16xf32>
    %c0_17 = arith.constant 0 : index
    %c0_18 = arith.constant 0 : index
    %44 = vector.load %arg10[%c0_17, %c0_18] : memref<512x16xf32, #tpu.memory_space<vmem>>, vector<512x16xf32>
    tpu.vector_store %arg10[%c0_17, %c0_18], %43 {strides = array<i32>} : memref<512x16xf32, #tpu.memory_space<vmem>>, vector<512x16xf32>,
    %c0_19 = arith.constant 0 : index
    %c0_20 = arith.constant 0 : index
    %45 = vector.load %arg11[%c0_19, %c0_20] : memref<512x16xf32, #tpu.memory_space<vmem>>, vector<512x16xf32>
    %c0_21 = arith.constant 0 : index
    %c1 = arith.constant 1 : index
    %c0_22 = arith.constant 0 : index
    %c0_23 = arith.constant 0 : index
    %46 = vector.load %arg6[%c0_21, %c1, %c0_22, %c0_23] : memref<1x2x128x16xbf16, #tpu.memory_space<vmem>>, vector<1x1x128x16xbf16>
    %47 = vector.shape_cast %46 : vector<1x1x128x16xbf16> to vector<128x16xbf16>
    %cst_24 = arith.constant dense<0.000000e+00> : vector<512x16xf32>
    %48 = tpu.matmul %38, %47, %cst_24 {dimension_numbers = #tpu.dot_dimension_numbers<[1], [0], [0], [1], [0, 0, 1, 1], [], []>} : vector<512x128xbf16>, vector<128x16xbf16>, vector<512x16xf32> -> vector<512x16xf32>
    %49 = arith.addf %45, %48 : vector<512x16xf32>
    %c0_25 = arith.constant 0 : index
    %c0_26 = arith.constant 0 : index
    %50 = vector.load %arg11[%c0_25, %c0_26] : memref<512x16xf32, #tpu.memory_space<vmem>>, vector<512x16xf32>
    tpu.vector_store %arg11[%c0_25, %c0_26], %49 {strides = array<i32>} : memref<512x16xf32, #tpu.memory_space<vmem>>, vector<512x16xf32>,
    %c2_i32 = arith.constant 2 : i32
    %51 = arith.cmpi eq, %arg2, %c2_i32 : i32
    %52 = arith.extui %51 : i1 to i32
    %c0_i32_27 = arith.constant 0 : i32
    %53 = arith.cmpi ne, %52, %c0_i32_27 : i32
    scf.if %53 {
      %c0_28 = arith.constant 0 : index
      %c0_29 = arith.constant 0 : index
      %54 = vector.load %arg10[%c0_28, %c0_29] : memref<512x16xf32, #tpu.memory_space<vmem>>, vector<512x16xf32>
      %c0_30 = arith.constant 0 : index
      %c0_31 = arith.constant 0 : index
      %55 = vector.load %arg11[%c0_30, %c0_31] : memref<512x16xf32, #tpu.memory_space<vmem>>, vector<512x16xf32>
      %56 = vector.extract_strided_slice %54 {offsets = [0, 0], sizes = [256, 16], strides = [1, 1]} : vector<512x16xf32> to vector<256x16xf32>
      %57 = vector.extract_strided_slice %55 {offsets = [256, 0], sizes = [256, 16], strides = [1, 1]} : vector<512x16xf32> to vector<256x16xf32>
      %58 = arith.subf %56, %57 : vector<256x16xf32>
      %59 = vector.shape_cast %58 : vector<256x16xf32> to vector<8x32x16xf32>
      %60 = vector.extract_strided_slice %55 {offsets = [0, 0], sizes = [256, 16], strides = [1, 1]} : vector<512x16xf32> to vector<256x16xf32>
      %61 = vector.extract_strided_slice %54 {offsets = [256, 0], sizes = [256, 16], strides = [1, 1]} : vector<512x16xf32> to vector<256x16xf32>
      %62 = arith.addf %60, %61 : vector<256x16xf32>
      %63 = vector.shape_cast %62 : vector<256x16xf32> to vector<8x32x16xf32>
      %c0_32 = arith.constant 0 : index
      %c0_33 = arith.constant 0 : index
      %c0_34 = arith.constant 0 : index
      %64 = vector.load %arg7[%c0_32, %c0_33, %c0_34] : memref<16x32x16xf32, #tpu.memory_space<vmem>>, vector<8x32x16xf32>
      %c8 = arith.constant 8 : index
      %c0_35 = arith.constant 0 : index
      %c0_36 = arith.constant 0 : index
      %65 = vector.load %arg7[%c8, %c0_35, %c0_36] : memref<16x32x16xf32, #tpu.memory_space<vmem>>, vector<8x32x16xf32>
      %66 = arith.mulf %64, %59 : vector<8x32x16xf32>
      %67 = arith.mulf %65, %63 : vector<8x32x16xf32>
      %68 = arith.addf %66, %67 : vector<8x32x16xf32>
      %cst_37 = arith.constant dense<0.000000e+00> : vector<32x16xf32>
      %69 = vector.multi_reduction <add>, %68, %cst_37 [0] : vector<8x32x16xf32> to vector<32x16xf32>
      %cst_38 = arith.constant 3.125000e-02 : f32
      %70 = vector.broadcast %cst_38 : f32 to vector<32x16xf32>
      %71 = arith.mulf %69, %70 : vector<32x16xf32>
      %c0_39 = arith.constant 0 : index
      %c0_40 = arith.constant 0 : index
      %c0_41 = arith.constant 0 : index
      %72 = vector.load %arg8[%c0_39, %c0_40, %c0_41] : memref<1x32x16xf32, #tpu.memory_space<vmem>>, vector<1x32x16xf32>
      %73 = vector.shape_cast %72 : vector<1x32x16xf32> to vector<32x16xf32>
      %74 = vector.shape_cast %71 : vector<32x16xf32> to vector<1x32x16xf32>
      tpu.vector_store %arg8[%c0_39, %c0_40, %c0_41], %74 {strides = array<i32>} : memref<1x32x16xf32, #tpu.memory_space<vmem>>, vector<1x32x16xf32>,
      %75 = arith.mulf %64, %63 : vector<8x32x16xf32>
      %76 = arith.mulf %65, %59 : vector<8x32x16xf32>
      %77 = arith.subf %75, %76 : vector<8x32x16xf32>
      %cst_42 = arith.constant dense<0.000000e+00> : vector<32x16xf32>
      %78 = vector.multi_reduction <add>, %77, %cst_42 [0] : vector<8x32x16xf32> to vector<32x16xf32>
      %cst_43 = arith.constant 3.125000e-02 : f32
      %79 = vector.broadcast %cst_43 : f32 to vector<32x16xf32>
      %80 = arith.mulf %78, %79 : vector<32x16xf32>
      %c0_44 = arith.constant 0 : index
      %c0_45 = arith.constant 0 : index
      %c0_46 = arith.constant 0 : index
      %81 = vector.load %arg9[%c0_44, %c0_45, %c0_46] : memref<1x32x16xf32, #tpu.memory_space<vmem>>, vector<1x32x16xf32>
      %82 = vector.shape_cast %81 : vector<1x32x16xf32> to vector<32x16xf32>
      %83 = vector.shape_cast %80 : vector<32x16xf32> to vector<1x32x16xf32>
      tpu.vector_store %arg9[%c0_44, %c0_45, %c0_46], %83 {strides = array<i32>} : memref<1x32x16xf32, #tpu.memory_space<vmem>>, vector<1x32x16xf32>,
    } else {
    }
    return
  }
  func.func @transform_0(%arg0: i32, %arg1: i32, %arg2: i32) -> (i32, i32, i32) {
    %c0_i32 = arith.constant 0 : i32
    %c0_i32_0 = arith.constant 0 : i32
    return %arg0, %c0_i32, %arg2 : i32, i32, i32
  }
  func.func @transform_1(%arg0: i32, %arg1: i32, %arg2: i32) -> (i32, i32, i32) {
    %c0_i32 = arith.constant 0 : i32
    %c0_i32_0 = arith.constant 0 : i32
    return %arg0, %c0_i32, %arg2 : i32, i32, i32
  }
  func.func @transform_2(%arg0: i32, %arg1: i32, %arg2: i32) -> (i32, i32, i32) {
    %c0_i32 = arith.constant 0 : i32
    %c0_i32_0 = arith.constant 0 : i32
    return %arg0, %c0_i32, %arg2 : i32, i32, i32
  }
  func.func @transform_3(%arg0: i32, %arg1: i32, %arg2: i32) -> (i32, i32, i32, i32) {
    %c0_i32 = arith.constant 0 : i32
    %c0_i32_0 = arith.constant 0 : i32
    %c0_i32_1 = arith.constant 0 : i32
    return %arg0, %c0_i32, %arg2, %c0_i32_0 : i32, i32, i32, i32
  }
  func.func @transform_4(%arg0: i32, %arg1: i32, %arg2: i32) -> (i32, i32, i32) {
    %c0_i32 = arith.constant 0 : i32
    %c0_i32_0 = arith.constant 0 : i32
    %c0_i32_1 = arith.constant 0 : i32
    return %c0_i32, %arg1, %c0_i32_0 : i32, i32, i32
  }
  func.func @transform_5(%arg0: i32, %arg1: i32, %arg2: i32) -> (i32, i32, i32) {
    %c0_i32 = arith.constant 0 : i32
    %c0_i32_0 = arith.constant 0 : i32
    return %arg0, %arg1, %c0_i32 : i32, i32, i32
  }
  func.func @transform_6(%arg0: i32, %arg1: i32, %arg2: i32) -> (i32, i32, i32) {
    %c0_i32 = arith.constant 0 : i32
    %c0_i32_0 = arith.constant 0 : i32
    return %arg0, %arg1, %c0_i32 : i32, i32, i32
  }
}

</mosaic_0001>

<llo_original>
// kernel: tpu_custom_call.1
$region0: #{tpu_custom_call.1}
  #allocation0 [shape = 'u32[]', space=smem, size = 0x4, offset = 0x4, fixed_abs, tag = 'smem constant byte address 0x4 - core index']
  #allocation1 [shape = 'u32[144,128]{1,0:T(1,128)}', space=vmem, size = 0x12000, scoped, tag = 'internal scratch']
  #allocation2 [shape = 'f32[512,16]{1,0:T(8,128)}', space=vmem, size = 0x40000, scoped, tag = 'scratch operand']
  #allocation3 [shape = 'f32[512,16]{1,0:T(8,128)}', space=vmem, size = 0x40000, scoped, tag = 'scratch operand']
  #allocation16 [shape = 's32[]', space=sflag, size = 0x4, offset = 0, fixed_abs, tag = 'sflag constant byte address 0x0 - dummy sync flag']
  #allocation18 [shape = 's32[]', space=sflag, size = 0x4, offset = 0, fixed_abs, tag = 'sflag constant byte address 0x0 - dummy sync flag']
  %s0 = inlined_call_operand.hbm [shape: f32[2,16,384], index: 0, kind: input, shape index: {}]
  %s1 = inlined_call_operand.hbm [shape: f32[2,1,384], index: 1, kind: input, shape index: {}]
  %s2 = inlined_call_operand.hbm [shape: f32[2,1,384], index: 2, kind: input, shape index: {}]
  %s3 = inlined_call_operand.hbm [shape: bf16[2,2,384,16], index: 3, kind: input, shape index: {}]
  %s4 = inlined_call_operand.hbm [shape: f32[16,64,16], index: 4, kind: input, shape index: {}]
  %s5 = inlined_call_operand.hbm [shape: f32[2,64,16], index: 5, kind: output, shape index: {0}]
  %s6 = inlined_call_operand.hbm [shape: f32[2,64,16], index: 6, kind: output, shape index: {1}]
  %7 = xla_tuple %s5, %s6
  %s8 = sld [smem:[#allocation0]]
  $region89: #{tpu_custom_call.1} parent=0
    _
  %s10 = ssub.s32 1, %s8
  %s11 = scalar_select 0, %s10, %s8
  $region1: #{tpu_custom_call.1} parent=0
    #allocation4 [shape = 'u8[16384]{0}', space=vmem, size = 0x4000, scoped, tag = 'input window, operand 0']
    #allocation5 [shape = 's32[2]{0}', space=sflag, size = 0x8, scoped, tag = 'scoped memory for tpu_custom_call.1']
    #allocation6 [shape = 's32[2]{0}', space=sflag, size = 0x8, scoped, tag = 'scoped memory for tpu_custom_call.1']
    #allocation7 [shape = 'u8[1024]{0}', space=vmem, size = 0x400, scoped, tag = 'input window, operand 1']
    #allocation8 [shape = 's32[2]{0}', space=sflag, size = 0x8, scoped, tag = 'scoped memory for tpu_custom_call.1']
    #allocation9 [shape = 'u8[1024]{0}', space=vmem, size = 0x400, scoped, tag = 'input window, operand 2']
    #allocation10 [shape = 'u8[131072]{0}', space=vmem, size = 0x20000, scoped, tag = 'input window, operand 3']
    #allocation11 [shape = 's32[2]{0}', space=sflag, size = 0x8, scoped, tag = 'scoped memory for tpu_custom_call.1']
    #allocation12 [shape = 'u8[524288]{0}', space=vmem, size = 0x80000, scoped, tag = 'input window, operand 4']
    #allocation13 [shape = 'u8[32768]{0}', space=vmem, size = 0x8000, scoped, tag = 'output window, operand 0']
    #allocation14 [shape = 'u8[32768]{0}', space=vmem, size = 0x8000, scoped, tag = 'output window, operand 1']
    #allocation15 [shape = 's32[2]{0}', space=sflag, size = 0x8, scoped, tag = 'scoped memory for tpu_custom_call.1']
    %12 = vsyncpa [#allocation5], 0
    %s13 = scalar_lea.sflag [#allocation5], 1
    %14 = vsyncpa %s13, 0
    %15 = vsyncpa [#allocation8], 0
    %s16 = scalar_lea.sflag [#allocation8], 1
    %17 = vsyncpa %s16, 0
    %18 = vsyncpa [#allocation11], 0
    %s19 = scalar_lea.sflag [#allocation11], 1
    %20 = vsyncpa %s19, 0
    %21 = vsyncpa [#allocation6], 0
    %s22 = scalar_lea.sflag [#allocation6], 1
    %23 = vsyncpa %s22, 0
    %24 = vsyncpa [#allocation15], 0
    %s25 = scalar_lea.sflag [#allocation15], 1
    %26 = vsyncpa %s25, 0
    loop: start=0, step=1, limit=14
    $region2: #{tpu_custom_call.1} parent=1 // loop_pre_header
      _
    $region3: #{tpu_custom_call.1} parent=1 // loop_header
      %s28 = sphi 0, %s32
      %p29 = scmp.ge.s32.totalorder %s28, 14
      %s35 = sphi 0, %s54
      %s36 = sphi 0, %s50
      %s37 = sphi 0, %s46
      %s38 = sphi 0, %s35
      %s39 = sphi 0, %s36
      %s40 = sphi 0, %s37
      %s41 = sphi 0, %s38
      %s42 = sphi 0, %s39
      %s43 = sphi 0, %s40
      %s59 = sphi 0, %s61
      %s62 = sphi 0, %s59
      %s63 = sphi 0, %s62
      %s79 = sphi 0, %s63
      %s87 = sphi 0, %s89
      %s90 = sphi 0, %s87
      %s91 = sphi 0, %s90
      %s107 = sphi 0, %s91
      %s115 = sphi 0, %s117
      %s118 = sphi 0, %s115
      %s119 = sphi 0, %s118
      %s135 = sphi 0, %s119
      %s143 = sphi 0, %s145
      %s146 = sphi 0, %s143
      %s147 = sphi 0, %s146
      %s163 = sphi 0, %s147
      %s169 = sphi 0, %s171
      %s172 = sphi 0, %s169
      %s173 = sphi 0, %s172
      %s189 = sphi 0, %s173
      %s197 = sphi 0, %s199
      %s200 = sphi 0, %s197
      %s201 = sphi 0, %s200
      %s217 = sphi 0, %s201
      %s225 = sphi 0, %s227
      %s228 = sphi 0, %s225
      %s229 = sphi 0, %s228
      %s245 = sphi 0, %s229
    $region4: #{tpu_custom_call.1} parent=1 // loop_header_branch
      %31 = sbr.rel (%p29) target = $region8
    $region5: #{tpu_custom_call.1} parent=1 // loop_body
      %s33 = ssub.s32 %s28, 1
      %s34 = ssub.s32 %s28, 2
      %s44 = sadd.s32 1, %s37
      %p45 = scmp.ge.s32.totalorder %s44, 3
      %s46 = scalar_select %p45, 0, %s44
      %s47 = sadd.s32 1, %s36
      %s48 = scalar_select %p45, %s47, %s36
      %p49 = scmp.ge.s32.totalorder %s48, 2
      %s50 = scalar_select %p49, 0, %s48
      %s51 = sadd.s32 1, %s35
      %s52 = scalar_select %p49, %s51, %s35
      %p53 = scmp.ge.s32.totalorder %s52, 2
      %s54 = scalar_select %p53, 0, %s52
      %s55 = ssub.s32 %s35, %s54
      %s56 = ssub.s32 %s37, %s46
      %s57 = sor.u32 %s55, %s56
      %p58 = scmp.eq.s32.totalorder %s57, 0
      %s60 = sadd.s32 %s59, 1
      %s61 = scalar_select %p58, %s59, %s60
      %p64 = pneg %p58
      %p65 = scmp.eq.s32.totalorder %s28, 11
      %p66 = por %p64, %p65
      %p67 = scmp.ne.s32.totalorder %s59, %s62
      %p68 = scmp.eq.s32.totalorder %s28, 0
      %p69 = por %p67, %p68
      %p70 = scmp.ne.s32.totalorder %s59, %s62
      %p71 = scmp.eq.s32.totalorder %s33, 11
      %p72 = por %p70, %p71
      %p73 = scmp.ne.s32.totalorder %s62, %s63
      %p74 = scmp.eq.s32.totalorder %s33, 0
      %p75 = por %p73, %p74
      %p76 = scmp.ne.s32.totalorder %s62, %s63
      %p77 = scmp.eq.s32.totalorder %s34, 11
      %p78 = por %p76, %p77
      %p80 = scmp.ne.s32.totalorder %s63, %s79
      %p81 = scmp.eq.s32.totalorder %s34, 0
      %p82 = por %p80, %p81
      %s83 = ssub.s32 %s35, %s54
      %s84 = ssub.s32 %s37, %s46
      %s85 = sor.u32 %s83, %s84
      %p86 = scmp.eq.s32.totalorder %s85, 0
      %s88 = sadd.s32 %s87, 1
      %s89 = scalar_select %p86, %s87, %s88
      %p92 = pneg %p86
      %p93 = scmp.eq.s32.totalorder %s28, 11
      %p94 = por %p92, %p93
      %p95 = scmp.ne.s32.totalorder %s87, %s90
      %p96 = scmp.eq.s32.totalorder %s28, 0
      %p97 = por %p95, %p96
      %p98 = scmp.ne.s32.totalorder %s87, %s90
      %p99 = scmp.eq.s32.totalorder %s33, 11
      %p100 = por %p98, %p99
      %p101 = scmp.ne.s32.totalorder %s90, %s91
      %p102 = scmp.eq.s32.totalorder %s33, 0
      %p103 = por %p101, %p102
      %p104 = scmp.ne.s32.totalorder %s90, %s91
      %p105 = scmp.eq.s32.totalorder %s34, 11
      %p106 = por %p104, %p105
      %p108 = scmp.ne.s32.totalorder %s91, %s107
      %p109 = scmp.eq.s32.totalorder %s34, 0
      %p110 = por %p108, %p109
      %s111 = ssub.s32 %s35, %s54
      %s112 = ssub.s32 %s37, %s46
      %s113 = sor.u32 %s111, %s112
      %p114 = scmp.eq.s32.totalorder %s113, 0
      %s116 = sadd.s32 %s115, 1
      %s117 = scalar_select %p114, %s115, %s116
      %p120 = pneg %p114
      %p121 = scmp.eq.s32.totalorder %s28, 11
      %p122 = por %p120, %p121
      %p123 = scmp.ne.s32.totalorder %s115, %s118
      %p124 = scmp.eq.s32.totalorder %s28, 0
      %p125 = por %p123, %p124
      %p126 = scmp.ne.s32.totalorder %s115, %s118
      %p127 = scmp.eq.s32.totalorder %s33, 11
      %p128 = por %p126, %p127
      %p129 = scmp.ne.s32.totalorder %s118, %s119
      %p130 = scmp.eq.s32.totalorder %s33, 0
      %p131 = por %p129, %p130
      %p132 = scmp.ne.s32.totalorder %s118, %s119
      %p133 = scmp.eq.s32.totalorder %s34, 11
      %p134 = por %p132, %p133
      %p136 = scmp.ne.s32.totalorder %s119, %s135
      %p137 = scmp.eq.s32.totalorder %s34, 0
      %p138 = por %p136, %p137
      %s139 = ssub.s32 %s35, %s54
      %s140 = ssub.s32 %s37, %s46
      %s141 = sor.u32 %s139, %s140
      %p142 = scmp.eq.s32.totalorder %s141, 0
      %s144 = sadd.s32 %s143, 1
      %s145 = scalar_select %p142, %s143, %s144
      %p148 = pneg %p142
      %p149 = scmp.eq.s32.totalorder %s28, 11
      %p150 = por %p148, %p149
      %p151 = scmp.ne.s32.totalorder %s143, %s146
      %p152 = scmp.eq.s32.totalorder %s28, 0
      %p153 = por %p151, %p152
      %p154 = scmp.ne.s32.totalorder %s143, %s146
      %p155 = scmp.eq.s32.totalorder %s33, 11
      %p156 = por %p154, %p155
      %p157 = scmp.ne.s32.totalorder %s146, %s147
      %p158 = scmp.eq.s32.totalorder %s33, 0
      %p159 = por %p157, %p158
      %p160 = scmp.ne.s32.totalorder %s146, %s147
      %p161 = scmp.eq.s32.totalorder %s34, 11
      %p162 = por %p160, %p161
      %p164 = scmp.ne.s32.totalorder %s147, %s163
      %p165 = scmp.eq.s32.totalorder %s34, 0
      %p166 = por %p164, %p165
      %s167 = ssub.s32 %s36, %s50
      %p168 = scmp.eq.s32.totalorder %s167, 0
      %s170 = sadd.s32 %s169, 1
      %s171 = scalar_select %p168, %s169, %s170
      %p174 = pneg %p168
      %p175 = scmp.eq.s32.totalorder %s28, 11
      %p176 = por %p174, %p175
      %p177 = scmp.ne.s32.totalorder %s169, %s172
      %p178 = scmp.eq.s32.totalorder %s28, 0
      %p179 = por %p177, %p178
      %p180 = scmp.ne.s32.totalorder %s169, %s172
      %p181 = scmp.eq.s32.totalorder %s33, 11
      %p182 = por %p180, %p181
      %p183 = scmp.ne.s32.totalorder %s172, %s173
      %p184 = scmp.eq.s32.totalorder %s33, 0
      %p185 = por %p183, %p184
      %p186 = scmp.ne.s32.totalorder %s172, %s173
      %p187 = scmp.eq.s32.totalorder %s34, 11
      %p188 = por %p186, %p187
      %p190 = scmp.ne.s32.totalorder %s173, %s189
      %p191 = scmp.eq.s32.totalorder %s34, 0
      %p192 = por %p190, %p191
      %s193 = ssub.s32 %s35, %s54
      %s194 = ssub.s32 %s36, %s50
      %s195 = sor.u32 %s193, %s194
      %p196 = scmp.eq.s32.totalorder %s195, 0
      %s198 = sadd.s32 %s197, 1
      %s199 = scalar_select %p196, %s197, %s198
      %p202 = pneg %p196
      %p203 = scmp.eq.s32.totalorder %s28, 11
      %p204 = por %p202, %p203
      %p205 = scmp.ne.s32.totalorder %s197, %s200
      %p206 = scmp.eq.s32.totalorder %s28, 0
      %p207 = por %p205, %p206
      %p208 = scmp.ne.s32.totalorder %s197, %s200
      %p209 = scmp.eq.s32.totalorder %s33, 11
      %p210 = por %p208, %p209
      %p211 = scmp.ne.s32.totalorder %s200, %s201
      %p212 = scmp.eq.s32.totalorder %s33, 0
      %p213 = por %p211, %p212
      %p214 = scmp.ne.s32.totalorder %s200, %s201
      %p215 = scmp.eq.s32.totalorder %s34, 11
      %p216 = por %p214, %p215
      %p218 = scmp.ne.s32.totalorder %s201, %s217
      %p219 = scmp.eq.s32.totalorder %s34, 0
      %p220 = por %p218, %p219
      %s221 = ssub.s32 %s35, %s54
      %s222 = ssub.s32 %s36, %s50
      %s223 = sor.u32 %s221, %s222
      %p224 = scmp.eq.s32.totalorder %s223, 0
      %s226 = sadd.s32 %s225, 1
      %s227 = scalar_select %p224, %s225, %s226
      %p230 = pneg %p224
      %p231 = scmp.eq.s32.totalorder %s28, 11
      %p232 = por %p230, %p231
      %p233 = scmp.ne.s32.totalorder %s225, %s228
      %p234 = scmp.eq.s32.totalorder %s28, 0
      %p235 = por %p233, %p234
      %p236 = scmp.ne.s32.totalorder %s225, %s228
      %p237 = scmp.eq.s32.totalorder %s33, 11
      %p238 = por %p236, %p237
      %p239 = scmp.ne.s32.totalorder %s228, %s229
      %p240 = scmp.eq.s32.totalorder %s33, 0
      %p241 = por %p239, %p240
      %p242 = scmp.ne.s32.totalorder %s228, %s229
      %p243 = scmp.eq.s32.totalorder %s34, 11
      %p244 = por %p242, %p243
      %p246 = scmp.ne.s32.totalorder %s229, %s245
      %p247 = scmp.eq.s32.totalorder %s34, 0
      %p248 = por %p246, %p247
      %p249 = scmp.le.s32.totalorder 1, %s28
      %p250 = scmp.lt.s32.totalorder %s28, 13
      %p251 = pnand %p249, %p250
      %p252 = pneg %p251
      // Predicated region
      $region9: #{tpu_custom_call.1} parent=5 // pred_check
        _
      $region10: #{tpu_custom_call.1} parent=5 // pred_check_branch
        %254 = sbr.rel (%p251) target = $region12
      $region11: #{tpu_custom_call.1} parent=5 // pred_region
        %s255 = ssub.s32 %s28, 1
      $region12: #{tpu_custom_call.1} parent=5 // pred_fallthru
        _
      %p256 = scmp.lt.s32.totalorder %s28, 12
      // Predicated region
      $region13: #{tpu_custom_call.1} parent=5 // pred_check
        %p257 = pneg %p256
      $region14: #{tpu_custom_call.1} parent=5 // pred_check_branch
        %259 = sbr.rel (%p257) target = $region16
      $region15: #{tpu_custom_call.1} parent=5 // pred_region
        // Predicated region
        $region17: #{tpu_custom_call.1} parent=15 // pred_check
          %p260 = pneg %p69
        $region18: #{tpu_custom_call.1} parent=15 // pred_check_branch
          %262 = sbr.rel (%p260) target = $region20
        $region19: #{tpu_custom_call.1} parent=15 // pred_region
          %s263 = sand.u32 %s59, 1
          %s264 = scalar_lea.sflag [#allocation5], %s263
          %s265 = sand.u32 %s59, 1
          %s266 = smul.addr %s265, 16
          %s267 = scalar_lea.vmem [#allocation4], %s266
          %s269 = ssub.s32 256, 256
          %270 = vsyncadd %s264, %s269
          %s271 = smul.addr %s35, 6
          %s272 = sadd.s32 %s37, %s271
          %s273 = smul.addr %s272, 128
          %s274 = scalar_lea.hbm %s0, %s273
          %s275 = sshll.u32 %s267, 4
          %s276 = int_to_ptr.vmem [resolvable:$true] %s275
          %281 = dma.hbm_to_vmem [thread:$0]  %s274, 256, %s276, %s264, 384, 128, 8
        $region20: #{tpu_custom_call.1} parent=15 // pred_fallthru
          _
        // Predicated region
        $region21: #{tpu_custom_call.1} parent=15 // pred_check
          %p282 = pneg %p97
        $region22: #{tpu_custom_call.1} parent=15 // pred_check_branch
          %284 = sbr.rel (%p282) target = $region24
        $region23: #{tpu_custom_call.1} parent=15 // pred_region
          %s285 = sand.u32 %s28, 1
          %s286 = scalar_lea.sflag [#allocation8], %s285
          %s287 = sand.u32 %s87, 1
          %s288 = scalar_lea.vmem [#allocation7], %s287
          %s290 = ssub.s32 16, 16
          %291 = vsyncadd %s286, %s290
          %s292 = smul.addr %s35, 3
          %s293 = sadd.s32 %s37, %s292
          %s294 = smul.addr %s293, 16
          %s295 = scalar_lea.hbm %s1, %s294
          %s297 = sshll.u32 %s288, 4
          %s298 = int_to_ptr.vmem [resolvable:$true] %s297
          %300 = dma.hbm_to_vmem [thread:$0]  %s295, 16, %s298, %s286
        $region24: #{tpu_custom_call.1} parent=15 // pred_fallthru
          _
        // Predicated region
        $region25: #{tpu_custom_call.1} parent=15 // pred_check
          %p301 = pneg %p125
        $region26: #{tpu_custom_call.1} parent=15 // pred_check_branch
          %303 = sbr.rel (%p301) target = $region28
        $region27: #{tpu_custom_call.1} parent=15 // pred_region
          %s304 = sand.u32 %s28, 1
          %s305 = scalar_lea.sflag [#allocation8], %s304
          %s306 = sand.u32 %s115, 1
          %s307 = scalar_lea.vmem [#allocation9], %s306
          %s309 = ssub.s32 16, 16
          %310 = vsyncadd %s305, %s309
          %s311 = smul.addr %s35, 3
          %s312 = sadd.s32 %s37, %s311
          %s313 = smul.addr %s312, 16
          %s314 = scalar_lea.hbm %s2, %s313
          %s316 = sshll.u32 %s307, 4
          %s317 = int_to_ptr.vmem [resolvable:$true] %s316
          %319 = dma.hbm_to_vmem [thread:$0]  %s314, 16, %s317, %s305
        $region28: #{tpu_custom_call.1} parent=15 // pred_fallthru
          _
        // Predicated region
        $region29: #{tpu_custom_call.1} parent=15 // pred_check
          %p320 = pneg %p153
        $region30: #{tpu_custom_call.1} parent=15 // pred_check_branch
          %322 = sbr.rel (%p320) target = $region32
        $region31: #{tpu_custom_call.1} parent=15 // pred_region
          #allocation17 [shape = 'u32[6]{0}', space=smem, size = 0x18, scoped, tag = 'DMA stride descriptor']
          %s323 = sand.u32 %s28, 1
          %s324 = scalar_lea.sflag [#allocation11], %s323
          %s325 = sand.u32 %s143, 1
          %s326 = smul.addr %s325, 128
          %s327 = scalar_lea.vmem [#allocation10], %s326
          %s328 = smul.u32 16, %s37
          %s330 = ssub.s32 2048, 2048
          %331 = vsyncadd %s324, %s330
          %s332 = smul.addr %s35, 96
          %s333 = sadd.s32 %s328, %s332
          %s334 = smul.addr %s333, 64
          %s335 = scalar_lea.hbm %s3, %s334
          %s337 = sshll.u32 1, 14
          %s338 = sxor.u32 4294967295, %s337
          %s340 = sld [smem:[#allocation0]]
          %s341 = sadd.s32 2, %s340
          %s343 = sshll.u32 7, 26
          %s344 = sxor.u32 4294967295, %s343
          %s345 = sand.u32 0, %s344
          %s346 = sshll.u32 %s341, 26
          %s347 = sor.u32 %s345, %s346
          %s348 = sshll.u32 %s327, 4
          %s349 = int_to_ptr.vmem [resolvable:$true] %s348
          %355 = sst [smem:[#allocation17]] 3072
          %s356 = scalar_lea.smem [#allocation17], 1
          %357 = sst [smem:[%s356]] 1024
          %s358 = scalar_lea.smem [#allocation17], 2
          %359 = sst [smem:[%s358]] 16
          %s360 = scalar_lea.smem [#allocation17], 3
          %361 = sst [smem:[%s360]] 64
          %s362 = scalar_lea.smem [#allocation17], 4
          %363 = sst [smem:[%s362]] 64
          %s364 = scalar_lea.smem [#allocation17], 5
          %365 = sst [smem:[%s364]] 4
          %367 = dma.general %s335, 2048, %s349, %s324, [#allocation16], [#allocation17], %s347, 0
        $region32: #{tpu_custom_call.1} parent=15 // pred_fallthru
          _
        // Predicated region
        $region33: #{tpu_custom_call.1} parent=15 // pred_check
          %p368 = pneg %p179
        $region34: #{tpu_custom_call.1} parent=15 // pred_check_branch
          %370 = sbr.rel (%p368) target = $region36
        $region35: #{tpu_custom_call.1} parent=15 // pred_region
          #allocation19 [shape = 'u32[6]{0}', space=smem, size = 0x18, scoped, tag = 'DMA stride descriptor']
          %s371 = sand.u32 %s28, 1
          %s372 = scalar_lea.sflag [#allocation11], %s371
          %s373 = sand.u32 %s169, 1
          %s374 = smul.addr %s373, 512
          %s375 = scalar_lea.vmem [#allocation12], %s374
          %s376 = smul.u32 4, %s36
          %s378 = ssub.s32 8192, 8192
          %379 = vsyncadd %s372, %s378
          %s380 = smul.addr %s376, 128
          %s381 = scalar_lea.hbm %s4, %s380
          %s383 = sshll.u32 1, 14
          %s384 = sxor.u32 4294967295, %s383
          %s386 = sld [smem:[#allocation0]]
          %s387 = sadd.s32 2, %s386
          %s389 = sshll.u32 7, 26
          %s390 = sxor.u32 4294967295, %s389
          %s391 = sand.u32 0, %s390
          %s392 = sshll.u32 %s387, 26
          %s393 = sor.u32 %s391, %s392
          %s394 = sshll.u32 %s375, 4
          %s395 = int_to_ptr.vmem [resolvable:$true] %s394
          %401 = sst [smem:[#allocation19]] 1024
          %s402 = scalar_lea.smem [#allocation19], 1
          %403 = sst [smem:[%s402]] 512
          %s404 = scalar_lea.smem [#allocation19], 2
          %405 = sst [smem:[%s404]] 4
          %s406 = scalar_lea.smem [#allocation19], 3
          %407 = sst [smem:[%s406]] 128
          %s408 = scalar_lea.smem [#allocation19], 4
          %409 = sst [smem:[%s408]] 128
          %s410 = scalar_lea.smem [#allocation19], 5
          %411 = sst [smem:[%s410]] 8
          %413 = dma.general %s381, 8192, %s395, %s372, [#allocation18], [#allocation19], %s393, 0
        $region36: #{tpu_custom_call.1} parent=15 // pred_fallthru
          _
      $region16: #{tpu_custom_call.1} parent=5 // pred_fallthru
        _
      %p414 = scmp.le.s32.totalorder 1, %s28
      %p415 = scmp.lt.s32.totalorder %s28, 13
      %p416 = pnand %p414, %p415
      %p417 = pneg %p416
      // Predicated region
      $region37: #{tpu_custom_call.1} parent=5 // pred_check
        _
      $region38: #{tpu_custom_call.1} parent=5 // pred_check_branch
        %419 = sbr.rel (%p416) target = $region40
      $region39: #{tpu_custom_call.1} parent=5 // pred_region
        %s420 = ssub.s32 %s28, 1
        %s421 = sand.u32 %s62, 1
        %s422 = scalar_lea.sflag [#allocation5], %s421
        %s423 = sand.u32 %s62, 1
        %s424 = smul.addr %s423, 16
        %s425 = scalar_lea.vmem [#allocation4], %s424
        // Predicated region
        $region41: #{tpu_custom_call.1} parent=39 // pred_check
          %p426 = pneg %p75
        $region42: #{tpu_custom_call.1} parent=39 // pred_check_branch
          %428 = sbr.rel (%p426) target = $region44
        $region43: #{tpu_custom_call.1} parent=39 // pred_region
          %429 = dma.done %s422, 256
        $region44: #{tpu_custom_call.1} parent=39 // pred_fallthru
          _
        %s430 = sand.u32 %s33, 1
        %s431 = scalar_lea.sflag [#allocation8], %s430
        %s432 = sand.u32 %s90, 1
        %s433 = scalar_lea.vmem [#allocation7], %s432
        // Predicated region
        $region45: #{tpu_custom_call.1} parent=39 // pred_check
          %p434 = pneg %p103
        $region46: #{tpu_custom_call.1} parent=39 // pred_check_branch
          %436 = sbr.rel (%p434) target = $region48
        $region47: #{tpu_custom_call.1} parent=39 // pred_region
          %437 = dma.done %s431, 16
        $region48: #{tpu_custom_call.1} parent=39 // pred_fallthru
          _
        %s438 = sand.u32 %s33, 1
        %s439 = scalar_lea.sflag [#allocation8], %s438
        %s440 = sand.u32 %s118, 1
        %s441 = scalar_lea.vmem [#allocation9], %s440
        // Predicated region
        $region49: #{tpu_custom_call.1} parent=39 // pred_check
          %p442 = pneg %p131
        $region50: #{tpu_custom_call.1} parent=39 // pred_check_branch
          %444 = sbr.rel (%p442) target = $region52
        $region51: #{tpu_custom_call.1} parent=39 // pred_region
          %445 = dma.done %s439, 16
        $region52: #{tpu_custom_call.1} parent=39 // pred_fallthru
          _
        %s446 = sand.u32 %s33, 1
        %s447 = scalar_lea.sflag [#allocation11], %s446
        %s448 = sand.u32 %s146, 1
        %s449 = smul.addr %s448, 128
        %s450 = scalar_lea.vmem [#allocation10], %s449
        // Predicated region
        $region53: #{tpu_custom_call.1} parent=39 // pred_check
          %p451 = pneg %p159
        $region54: #{tpu_custom_call.1} parent=39 // pred_check_branch
          %453 = sbr.rel (%p451) target = $region56
        $region55: #{tpu_custom_call.1} parent=39 // pred_region
          %454 = dma.done %s447, 2048
        $region56: #{tpu_custom_call.1} parent=39 // pred_fallthru
          _
        %s455 = sand.u32 %s33, 1
        %s456 = scalar_lea.sflag [#allocation11], %s455
        %s457 = sand.u32 %s172, 1
        %s458 = smul.addr %s457, 512
        %s459 = scalar_lea.vmem [#allocation12], %s458
        // Predicated region
        $region57: #{tpu_custom_call.1} parent=39 // pred_check
          %p460 = pneg %p185
        $region58: #{tpu_custom_call.1} parent=39 // pred_check_branch
          %462 = sbr.rel (%p460) target = $region60
        $region59: #{tpu_custom_call.1} parent=39 // pred_region
          %463 = dma.done %s456, 8192
        $region60: #{tpu_custom_call.1} parent=39 // pred_fallthru
          _
        %s464 = sand.u32 %s62, 1
        %s465 = scalar_lea.sflag [#allocation5], %s464
        %s466 = sand.u32 %s62, 1
        %s467 = smul.addr %s466, 16
        %s468 = scalar_lea.vmem [#allocation4], %s467
        %p469 = pneg %p75
        %p470 = pneg %p72
        %s471 = sand.u32 %s33, 1
        %s472 = scalar_lea.sflag [#allocation8], %s471
        %s473 = sand.u32 %s90, 1
        %s474 = scalar_lea.vmem [#allocation7], %s473
        %p475 = pneg %p103
        %p476 = pneg %p100
        %s477 = sand.u32 %s33, 1
        %s478 = scalar_lea.sflag [#allocation8], %s477
        %s479 = sand.u32 %s118, 1
        %s480 = scalar_lea.vmem [#allocation9], %s479
        %p481 = pneg %p131
        %p482 = pneg %p128
        %s483 = sand.u32 %s33, 1
        %s484 = scalar_lea.sflag [#allocation11], %s483
        %s485 = sand.u32 %s146, 1
        %s486 = smul.addr %s485, 128
        %s487 = scalar_lea.vmem [#allocation10], %s486
        %p488 = pneg %p159
        %p489 = pneg %p156
        %s490 = sand.u32 %s33, 1
        %s491 = scalar_lea.sflag [#allocation11], %s490
        %s492 = sand.u32 %s172, 1
        %s493 = smul.addr %s492, 512
        %s494 = scalar_lea.vmem [#allocation12], %s493
        %p495 = pneg %p185
        %p496 = pneg %p182
        %p497 = pneg %p213
        %p498 = pneg %p210
        %s499 = sand.u32 %s200, 1
        %s500 = scalar_lea.sflag [#allocation6], %s499
        %s501 = sand.u32 %s200, 1
        %s502 = smul.addr %s501, 32
        %s503 = scalar_lea.vmem [#allocation13], %s502
        %p504 = pneg %p241
        %p505 = pneg %p238
        %s506 = sand.u32 %s228, 1
        %s507 = scalar_lea.sflag [#allocation15], %s506
        %s508 = sand.u32 %s228, 1
        %s509 = smul.addr %s508, 32
        %s510 = scalar_lea.vmem [#allocation14], %s509
        %s511 = smul.u32 16, %s40
        %s512 = smul.u32 4, %s39
        %s513 = smul.u32 4, %s39
        %s514 = smul.u32 4, %s39
        %p516 = scmp.eq.s32.totalorder %s40, 0
        // Predicated region
        $region61: #{tpu_custom_call.1} parent=39 // pred_check
          %p517 = pneg %p516
        $region62: #{tpu_custom_call.1} parent=39 // pred_check_branch
          %519 = sbr.rel (%p517) target = $region64
        $region63: #{tpu_custom_call.1} parent=39 // pred_region
          %vm520 = vcmask 130048
          %521 = vst.msk [vmem:[#allocation2] sm:$0xff] %vm520, 0.0
          %522 = vst.msk [vmem:[#allocation2 + $0x8] sm:$0xff] %vm520, 0.0
          %523 = vst.msk [vmem:[#allocation2 + $0x10] sm:$0xff] %vm520, 0.0
          %524 = vst.msk [vmem:[#allocation2 + $0x18] sm:$0xff] %vm520, 0.0
          %525 = vst.msk [vmem:[#allocation2 + $0x20] sm:$0xff] %vm520, 0.0
          %526 = vst.msk [vmem:[#allocation2 + $0x28] sm:$0xff] %vm520, 0.0
          %527 = vst.msk [vmem:[#allocation2 + $0x30] sm:$0xff] %vm520, 0.0
          %528 = vst.msk [vmem:[#allocation2 + $0x38] sm:$0xff] %vm520, 0.0
          %529 = vst.msk [vmem:[#allocation2 + $0x40] sm:$0xff] %vm520, 0.0
          %530 = vst.msk [vmem:[#allocation2 + $0x48] sm:$0xff] %vm520, 0.0
          %531 = vst.msk [vmem:[#allocation2 + $0x50] sm:$0xff] %vm520, 0.0
          %532 = vst.msk [vmem:[#allocation2 + $0x58] sm:$0xff] %vm520, 0.0
          %533 = vst.msk [vmem:[#allocation2 + $0x60] sm:$0xff] %vm520, 0.0
          %534 = vst.msk [vmem:[#allocation2 + $0x68] sm:$0xff] %vm520, 0.0
          %535 = vst.msk [vmem:[#allocation2 + $0x70] sm:$0xff] %vm520, 0.0
          %536 = vst.msk [vmem:[#allocation2 + $0x78] sm:$0xff] %vm520, 0.0
          %537 = vst.msk [vmem:[#allocation2 + $0x80] sm:$0xff] %vm520, 0.0
          %538 = vst.msk [vmem:[#allocation2 + $0x88] sm:$0xff] %vm520, 0.0
          %539 = vst.msk [vmem:[#allocation2 + $0x90] sm:$0xff] %vm520, 0.0
          %540 = vst.msk [vmem:[#allocation2 + $0x98] sm:$0xff] %vm520, 0.0
          %541 = vst.msk [vmem:[#allocation2 + $0xa0] sm:$0xff] %vm520, 0.0
          %542 = vst.msk [vmem:[#allocation2 + $0xa8] sm:$0xff] %vm520, 0.0
          %543 = vst.msk [vmem:[#allocation2 + $0xb0] sm:$0xff] %vm520, 0.0
          %544 = vst.msk [vmem:[#allocation2 + $0xb8] sm:$0xff] %vm520, 0.0
          %545 = vst.msk [vmem:[#allocation2 + $0xc0] sm:$0xff] %vm520, 0.0
          %546 = vst.msk [vmem:[#allocation2 + $0xc8] sm:$0xff] %vm520, 0.0
          %547 = vst.msk [vmem:[#allocation2 + $0xd0] sm:$0xff] %vm520, 0.0
          %548 = vst.msk [vmem:[#allocation2 + $0xd8] sm:$0xff] %vm520, 0.0
          %549 = vst.msk [vmem:[#allocation2 + $0xe0] sm:$0xff] %vm520, 0.0
          %550 = vst.msk [vmem:[#allocation2 + $0xe8] sm:$0xff] %vm520, 0.0
          %551 = vst.msk [vmem:[#allocation2 + $0xf0] sm:$0xff] %vm520, 0.0
          %552 = vst.msk [vmem:[#allocation2 + $0xf8] sm:$0xff] %vm520, 0.0
          %553 = vst.msk [vmem:[#allocation2 + $0x100] sm:$0xff] %vm520, 0.0
          %554 = vst.msk [vmem:[#allocation2 + $0x108] sm:$0xff] %vm520, 0.0
          %555 = vst.msk [vmem:[#allocation2 + $0x110] sm:$0xff] %vm520, 0.0
          %556 = vst.msk [vmem:[#allocation2 + $0x118] sm:$0xff] %vm520, 0.0
          %557 = vst.msk [vmem:[#allocation2 + $0x120] sm:$0xff] %vm520, 0.0
          %558 = vst.msk [vmem:[#allocation2 + $0x128] sm:$0xff] %vm520, 0.0
          %559 = vst.msk [vmem:[#allocation2 + $0x130] sm:$0xff] %vm520, 0.0
          %560 = vst.msk [vmem:[#allocation2 + $0x138] sm:$0xff] %vm520, 0.0
          %561 = vst.msk [vmem:[#allocation2 + $0x140] sm:$0xff] %vm520, 0.0
          %562 = vst.msk [vmem:[#allocation2 + $0x148] sm:$0xff] %vm520, 0.0
          %563 = vst.msk [vmem:[#allocation2 + $0x150] sm:$0xff] %vm520, 0.0
          %564 = vst.msk [vmem:[#allocation2 + $0x158] sm:$0xff] %vm520, 0.0
          %565 = vst.msk [vmem:[#allocation2 + $0x160] sm:$0xff] %vm520, 0.0
          %566 = vst.msk [vmem:[#allocation2 + $0x168] sm:$0xff] %vm520, 0.0
          %567 = vst.msk [vmem:[#allocation2 + $0x170] sm:$0xff] %vm520, 0.0
          %568 = vst.msk [vmem:[#allocation2 + $0x178] sm:$0xff] %vm520, 0.0
          %569 = vst.msk [vmem:[#allocation2 + $0x180] sm:$0xff] %vm520, 0.0
          %570 = vst.msk [vmem:[#allocation2 + $0x188] sm:$0xff] %vm520, 0.0
          %571 = vst.msk [vmem:[#allocation2 + $0x190] sm:$0xff] %vm520, 0.0
          %572 = vst.msk [vmem:[#allocation2 + $0x198] sm:$0xff] %vm520, 0.0
          %573 = vst.msk [vmem:[#allocation2 + $0x1a0] sm:$0xff] %vm520, 0.0
          %574 = vst.msk [vmem:[#allocation2 + $0x1a8] sm:$0xff] %vm520, 0.0
          %575 = vst.msk [vmem:[#allocation2 + $0x1b0] sm:$0xff] %vm520, 0.0
          %576 = vst.msk [vmem:[#allocation2 + $0x1b8] sm:$0xff] %vm520, 0.0
          %577 = vst.msk [vmem:[#allocation2 + $0x1c0] sm:$0xff] %vm520, 0.0
          %578 = vst.msk [vmem:[#allocation2 + $0x1c8] sm:$0xff] %vm520, 0.0
          %579 = vst.msk [vmem:[#allocation2 + $0x1d0] sm:$0xff] %vm520, 0.0
          %580 = vst.msk [vmem:[#allocation2 + $0x1d8] sm:$0xff] %vm520, 0.0
          %581 = vst.msk [vmem:[#allocation2 + $0x1e0] sm:$0xff] %vm520, 0.0
          %582 = vst.msk [vmem:[#allocation2 + $0x1e8] sm:$0xff] %vm520, 0.0
          %583 = vst.msk [vmem:[#allocation2 + $0x1f0] sm:$0xff] %vm520, 0.0
          %584 = vst.msk [vmem:[#allocation2 + $0x1f8] sm:$0xff] %vm520, 0.0
          %585 = vst.msk [vmem:[#allocation3] sm:$0xff] %vm520, 0.0
          %586 = vst.msk [vmem:[#allocation3 + $0x8] sm:$0xff] %vm520, 0.0
          %587 = vst.msk [vmem:[#allocation3 + $0x10] sm:$0xff] %vm520, 0.0
          %588 = vst.msk [vmem:[#allocation3 + $0x18] sm:$0xff] %vm520, 0.0
          %589 = vst.msk [vmem:[#allocation3 + $0x20] sm:$0xff] %vm520, 0.0
          %590 = vst.msk [vmem:[#allocation3 + $0x28] sm:$0xff] %vm520, 0.0
          %591 = vst.msk [vmem:[#allocation3 + $0x30] sm:$0xff] %vm520, 0.0
          %592 = vst.msk [vmem:[#allocation3 + $0x38] sm:$0xff] %vm520, 0.0
          %593 = vst.msk [vmem:[#allocation3 + $0x40] sm:$0xff] %vm520, 0.0
          %594 = vst.msk [vmem:[#allocation3 + $0x48] sm:$0xff] %vm520, 0.0
          %595 = vst.msk [vmem:[#allocation3 + $0x50] sm:$0xff] %vm520, 0.0
          %596 = vst.msk [vmem:[#allocation3 + $0x58] sm:$0xff] %vm520, 0.0
          %597 = vst.msk [vmem:[#allocation3 + $0x60] sm:$0xff] %vm520, 0.0
          %598 = vst.msk [vmem:[#allocation3 + $0x68] sm:$0xff] %vm520, 0.0
          %599 = vst.msk [vmem:[#allocation3 + $0x70] sm:$0xff] %vm520, 0.0
          %600 = vst.msk [vmem:[#allocation3 + $0x78] sm:$0xff] %vm520, 0.0
          %601 = vst.msk [vmem:[#allocation3 + $0x80] sm:$0xff] %vm520, 0.0
          %602 = vst.msk [vmem:[#allocation3 + $0x88] sm:$0xff] %vm520, 0.0
          %603 = vst.msk [vmem:[#allocation3 + $0x90] sm:$0xff] %vm520, 0.0
          %604 = vst.msk [vmem:[#allocation3 + $0x98] sm:$0xff] %vm520, 0.0
          %605 = vst.msk [vmem:[#allocation3 + $0xa0] sm:$0xff] %vm520, 0.0
          %606 = vst.msk [vmem:[#allocation3 + $0xa8] sm:$0xff] %vm520, 0.0
          %607 = vst.msk [vmem:[#allocation3 + $0xb0] sm:$0xff] %vm520, 0.0
          %608 = vst.msk [vmem:[#allocation3 + $0xb8] sm:$0xff] %vm520, 0.0
          %609 = vst.msk [vmem:[#allocation3 + $0xc0] sm:$0xff] %vm520, 0.0
          %610 = vst.msk [vmem:[#allocation3 + $0xc8] sm:$0xff] %vm520, 0.0
          %611 = vst.msk [vmem:[#allocation3 + $0xd0] sm:$0xff] %vm520, 0.0
          %612 = vst.msk [vmem:[#allocation3 + $0xd8] sm:$0xff] %vm520, 0.0
          %613 = vst.msk [vmem:[#allocation3 + $0xe0] sm:$0xff] %vm520, 0.0
          %614 = vst.msk [vmem:[#allocation3 + $0xe8] sm:$0xff] %vm520, 0.0
          %615 = vst.msk [vmem:[#allocation3 + $0xf0] sm:$0xff] %vm520, 0.0
          %616 = vst.msk [vmem:[#allocation3 + $0xf8] sm:$0xff] %vm520, 0.0
          %617 = vst.msk [vmem:[#allocation3 + $0x100] sm:$0xff] %vm520, 0.0
          %618 = vst.msk [vmem:[#allocation3 + $0x108] sm:$0xff] %vm520, 0.0
          %619 = vst.msk [vmem:[#allocation3 + $0x110] sm:$0xff] %vm520, 0.0
          %620 = vst.msk [vmem:[#allocation3 + $0x118] sm:$0xff] %vm520, 0.0
          %621 = vst.msk [vmem:[#allocation3 + $0x120] sm:$0xff] %vm520, 0.0
          %622 = vst.msk [vmem:[#allocation3 + $0x128] sm:$0xff] %vm520, 0.0
          %623 = vst.msk [vmem:[#allocation3 + $0x130] sm:$0xff] %vm520, 0.0
          %624 = vst.msk [vmem:[#allocation3 + $0x138] sm:$0xff] %vm520, 0.0
          %625 = vst.msk [vmem:[#allocation3 + $0x140] sm:$0xff] %vm520, 0.0
          %626 = vst.msk [vmem:[#allocation3 + $0x148] sm:$0xff] %vm520, 0.0
          %627 = vst.msk [vmem:[#allocation3 + $0x150] sm:$0xff] %vm520, 0.0
          %628 = vst.msk [vmem:[#allocation3 + $0x158] sm:$0xff] %vm520, 0.0
          %629 = vst.msk [vmem:[#allocation3 + $0x160] sm:$0xff] %vm520, 0.0
          %630 = vst.msk [vmem:[#allocation3 + $0x168] sm:$0xff] %vm520, 0.0
          %631 = vst.msk [vmem:[#allocation3 + $0x170] sm:$0xff] %vm520, 0.0
          %632 = vst.msk [vmem:[#allocation3 + $0x178] sm:$0xff] %vm520, 0.0
          %633 = vst.msk [vmem:[#allocation3 + $0x180] sm:$0xff] %vm520, 0.0
          %634 = vst.msk [vmem:[#allocation3 + $0x188] sm:$0xff] %vm520, 0.0
          %635 = vst.msk [vmem:[#allocation3 + $0x190] sm:$0xff] %vm520, 0.0
          %636 = vst.msk [vmem:[#allocation3 + $0x198] sm:$0xff] %vm520, 0.0
          %637 = vst.msk [vmem:[#allocation3 + $0x1a0] sm:$0xff] %vm520, 0.0
          %638 = vst.msk [vmem:[#allocation3 + $0x1a8] sm:$0xff] %vm520, 0.0
          %639 = vst.msk [vmem:[#allocation3 + $0x1b0] sm:$0xff] %vm520, 0.0
          %640 = vst.msk [vmem:[#allocation3 + $0x1b8] sm:$0xff] %vm520, 0.0
          %641 = vst.msk [vmem:[#allocation3 + $0x1c0] sm:$0xff] %vm520, 0.0
          %642 = vst.msk [vmem:[#allocation3 + $0x1c8] sm:$0xff] %vm520, 0.0
          %643 = vst.msk [vmem:[#allocation3 + $0x1d0] sm:$0xff] %vm520, 0.0
          %644 = vst.msk [vmem:[#allocation3 + $0x1d8] sm:$0xff] %vm520, 0.0
          %645 = vst.msk [vmem:[#allocation3 + $0x1e0] sm:$0xff] %vm520, 0.0
          %646 = vst.msk [vmem:[#allocation3 + $0x1e8] sm:$0xff] %vm520, 0.0
          %647 = vst.msk [vmem:[#allocation3 + $0x1f0] sm:$0xff] %vm520, 0.0
          %648 = vst.msk [vmem:[#allocation3 + $0x1f8] sm:$0xff] %vm520, 0.0
        $region64: #{tpu_custom_call.1} parent=39 // pred_fallthru
          _
        %v649 = vlaneseq
        %v650 = vshrl.u32 %v649, 7
        %v651 = vadd.s32 %v650, 8
        %v652 = vadd.s32 %v650, 16
        %v653 = vadd.s32 %v650, 24
        %s654 = smul.u32 %s39, 32
        %s655 = ssub.s32 %s654, 32
        %v656 = vstv %s655
        %v657 = vadd.s32 %v650, %v656
        %v658 = vadd.s32 %v651, %v656
        %v659 = vadd.s32 %v652, %v656
        %v660 = vadd.s32 %v653, %v656
        %v661 = vcvt.s32.f32 %v657
        %v662 = vcvt.s32.f32 %v658
        %v663 = vcvt.s32.f32 %v659
        %v664 = vcvt.s32.f32 %v660
        %v665 = vld [vmem:[%s441] sm:$0x1]
        %v667 = vlaneseq
        %v668 = vshrl.u32 %v667, 7
        %v669 = vsub.s32 0, %v668
        %v670 = vrot.slane %v665, %v669
        %v672 = vmul.f32 %v661, %v670
        %v673 = vmul.f32 %v662, %v670
        %v674 = vmul.f32 %v663, %v670
        %v675 = vmul.f32 %v664, %v670
        %v676 = vand.u32 2147483647, %v672
        %vm677 = vcmp.le.f32.partialorder %v676, 0.7853982
        %vm678 = vcmp.lt.s32.totalorder %v672, 0
        %v679 = vand.u32 %v672, 2139095040
        %v680 = vshrl.u32 %v679, 23
        %v681 = vsub.s32 %v680, 127
        %v682 = vand.u32 2147483647, %v672
        %v683 = vand.u32 %v682, 8388607
        %v684 = vor.u32 %v683, 8388608
        %v685 = vsub.s32 0, %v684
        %v686 = vadd.s32 %v681, 1
        %vm687 = vcmp.gt.s32.totalorder %v686, 0
        %v688 = vsel %vm687, %v686, 0
        %v689 = vshrl.u32 %v688, 5
        %v690 = vand.u32 %v688, 31
        %v691 = vsub.s32 32, %v690
        %v692 = vshrl.u32 683565275, %v691
        %v693 = vshll.u32 683565275, %v690
        %v694 = vshrl.u32 2475754826, %v691
        %v695 = vor.u32 %v693, %v694
        %v696 = vshll.u32 2475754826, %v690
        %v697 = vshrl.u32 2131351028, %v691
        %v698 = vor.u32 %v696, %v697
        %v699 = vshll.u32 2131351028, %v690
        %v700 = vshrl.u32 2102212464, %v691
        %v701 = vor.u32 %v699, %v700
        %v702 = vshll.u32 2102212464, %v690
        %v703 = vshrl.u32 920167782, %v691
        %v704 = vor.u32 %v702, %v703
        %v705 = vshll.u32 920167782, %v690
        %v706 = vshrl.u32 1326507024, %v691
        %v707 = vor.u32 %v705, %v706
        %vm708 = vcmp.lt.s32.totalorder %v689, 1
        %vm709 = vcmp.lt.s32.totalorder %v689, 2
        %vm710 = vcmp.lt.s32.totalorder %v689, 3
        %vm711 = vcmp.lt.s32.totalorder %v689, 4
        %v712 = vsel %vm708, %v692, %v695
        %v713 = vsel %vm711, %v701, 2102212464
        %v714 = vsel %vm710, %v698, %v713
        %v715 = vsel %vm709, %v712, %v714
        %v716 = vsel %vm708, %v695, %v698
        %v717 = vsel %vm711, %v704, 920167782
        %v718 = vsel %vm710, %v701, %v717
        %v719 = vsel %vm709, %v716, %v718
        %v720 = vsel %vm708, %v698, %v701
        %v721 = vsel %vm711, %v707, 1326507024
        %v722 = vsel %vm710, %v704, %v721
        %v723 = vsel %vm709, %v720, %v722
        %v724 = vshll.u32 %v684, 8
        %v725 = vmul.u32.u64.compose %v724, %v723
        %v726 = vextract.low.u32 %v725
        %v727 = vextract.high.u32 %v725
        %v728 = vmul.u32.u64.compose %v724, %v719
        %v729 = vextract.low.u32 %v728
        %v730 = vextract.high.u32 %v728
        %v731 = vmul.u32 %v724, %v715
        %v732 = vadd.s32 %v727, %v729
        %vm733 = vc.u32 %v727, %v729
        %v734 = vadd.s32 %v730, 1
        %v735 = vsel %vm733, %v734, %v730
        %v736 = vadd.s32 %v731, %v735
        %v737 = vadd.s32 %v736, 536870912
        %v738 = vshrl.u32 %v737, 30
        %v739 = vshll.u32 %v738, 30
        %v740 = vsub.s32 %v736, %v739
        %vm741 = vcmp.lt.s32.totalorder %v740, 0
        %v742 = vsub.s32 0, %v740
        %v743 = vsel %vm741, %v742, %v740
        %v744 = vclz %v743
        %v745 = vsub.s32 %v744, 2
        %vm746 = vcmp.gt.s32.totalorder 0, %v745
        %v747 = vsel %vm746, 0, %v745
        %v748 = vsub.s32 32, %v747
        %v749 = vshll.u32 %v740, %v747
        %v750 = vshrl.u32 %v732, %v748
        %v751 = vor.u32 %v749, %v750
        %v752 = vsub.s32 4294967266, %v747
        %v753 = vadd.s32 %v752, 127
        %v754 = vshll.u32 %v753, 23
        %v755 = vor.u32 4788187, %v754
        %v756 = vand.u32 2147483647, %v755
        %v758 = vcvt.s32.f32 %v751
        %v759 = vmul.f32 %v758, %v756
        %v760 = vxor.u32 %v759, 2147483648
        %v761 = vsel %vm678, %v760, %v759
        %v762 = vsub.s32 4, %v738
        %v763 = vsel %vm678, %v762, %v738
        %v764 = vsel %vm677, %v672, %v761
        %v765 = vsel %vm677, 0, %v763
        %v766 = vcosq.f32.pop %v764
        %v767 = vsinq.f32.pop %v764
        %vm768 = vweird.f32 %v672
        %v769 = vand.u32 %v765, 3
        %vm770 = vcmp.lt.s32.totalorder %v769, 2
        %vm771 = vcmp.eq.s32.totalorder %v769, 0
        %v772 = vxor.u32 %v767, 2147483648
        %v773 = vsel %vm771, %v766, %v772
        %vm774 = vcmp.eq.s32.totalorder %v769, 2
        %v775 = vxor.u32 %v766, 2147483648
        %v776 = vsel %vm774, %v775, %v767
        %v777 = vsel %vm770, %v773, %v776
        %v778 = vsel %vm768, nan, %v777
        %v779 = vand.u32 2147483647, %v673
        %vm780 = vcmp.le.f32.partialorder %v779, 0.7853982
        %vm781 = vcmp.lt.s32.totalorder %v673, 0
        %v782 = vand.u32 %v673, 2139095040
        %v783 = vshrl.u32 %v782, 23
        %v784 = vsub.s32 %v783, 127
        %v785 = vand.u32 2147483647, %v673
        %v786 = vand.u32 %v785, 8388607
        %v787 = vor.u32 %v786, 8388608
        %v788 = vsub.s32 0, %v787
        %v789 = vadd.s32 %v784, 1
        %vm790 = vcmp.gt.s32.totalorder %v789, 0
        %v791 = vsel %vm790, %v789, 0
        %v792 = vshrl.u32 %v791, 5
        %v793 = vand.u32 %v791, 31
        %v794 = vsub.s32 32, %v793
        %v795 = vshrl.u32 683565275, %v794
        %v796 = vshll.u32 683565275, %v793
        %v797 = vshrl.u32 2475754826, %v794
        %v798 = vor.u32 %v796, %v797
        %v799 = vshll.u32 2475754826, %v793
        %v800 = vshrl.u32 2131351028, %v794
        %v801 = vor.u32 %v799, %v800
        %v802 = vshll.u32 2131351028, %v793
        %v803 = vshrl.u32 2102212464, %v794
        %v804 = vor.u32 %v802, %v803
        %v805 = vshll.u32 2102212464, %v793
        %v806 = vshrl.u32 920167782, %v794
        %v807 = vor.u32 %v805, %v806
        %v808 = vshll.u32 920167782, %v793
        %v809 = vshrl.u32 1326507024, %v794
        %v810 = vor.u32 %v808, %v809
        %vm811 = vcmp.lt.s32.totalorder %v792, 1
        %vm812 = vcmp.lt.s32.totalorder %v792, 2
        %vm813 = vcmp.lt.s32.totalorder %v792, 3
        %vm814 = vcmp.lt.s32.totalorder %v792, 4
        %v815 = vsel %vm811, %v795, %v798
        %v816 = vsel %vm814, %v804, 2102212464
        %v817 = vsel %vm813, %v801, %v816
        %v818 = vsel %vm812, %v815, %v817
        %v819 = vsel %vm811, %v798, %v801
        %v820 = vsel %vm814, %v807, 920167782
        %v821 = vsel %vm813, %v804, %v820
        %v822 = vsel %vm812, %v819, %v821
        %v823 = vsel %vm811, %v801, %v804
        %v824 = vsel %vm814, %v810, 1326507024
        %v825 = vsel %vm813, %v807, %v824
        %v826 = vsel %vm812, %v823, %v825
        %v827 = vshll.u32 %v787, 8
        %v828 = vmul.u32.u64.compose %v827, %v826
        %v829 = vextract.low.u32 %v828
        %v830 = vextract.high.u32 %v828
        %v831 = vmul.u32.u64.compose %v827, %v822
        %v832 = vextract.low.u32 %v831
        %v833 = vextract.high.u32 %v831
        %v834 = vmul.u32 %v827, %v818
        %v835 = vadd.s32 %v830, %v832
        %vm836 = vc.u32 %v830, %v832
        %v837 = vadd.s32 %v833, 1
        %v838 = vsel %vm836, %v837, %v833
        %v839 = vadd.s32 %v834, %v838
        %v840 = vadd.s32 %v839, 536870912
        %v841 = vshrl.u32 %v840, 30
        %v842 = vshll.u32 %v841, 30
        %v843 = vsub.s32 %v839, %v842
        %vm844 = vcmp.lt.s32.totalorder %v843, 0
        %v845 = vsub.s32 0, %v843
        %v846 = vsel %vm844, %v845, %v843
        %v847 = vclz %v846
        %v848 = vsub.s32 %v847, 2
        %vm849 = vcmp.gt.s32.totalorder 0, %v848
        %v850 = vsel %vm849, 0, %v848
        %v851 = vsub.s32 32, %v850
        %v852 = vshll.u32 %v843, %v850
        %v853 = vshrl.u32 %v835, %v851
        %v854 = vor.u32 %v852, %v853
        %v855 = vsub.s32 4294967266, %v850
        %v856 = vadd.s32 %v855, 127
        %v857 = vshll.u32 %v856, 23
        %v858 = vor.u32 4788187, %v857
        %v859 = vand.u32 2147483647, %v858
        %v861 = vcvt.s32.f32 %v854
        %v862 = vmul.f32 %v861, %v859
        %v863 = vxor.u32 %v862, 2147483648
        %v864 = vsel %vm781, %v863, %v862
        %v865 = vsub.s32 4, %v841
        %v866 = vsel %vm781, %v865, %v841
        %v867 = vsel %vm780, %v673, %v864
        %v868 = vsel %vm780, 0, %v866
        %v869 = vcosq.f32.pop %v867
        %v870 = vsinq.f32.pop %v867
        %vm871 = vweird.f32 %v673
        %v872 = vand.u32 %v868, 3
        %vm873 = vcmp.lt.s32.totalorder %v872, 2
        %vm874 = vcmp.eq.s32.totalorder %v872, 0
        %v875 = vxor.u32 %v870, 2147483648
        %v876 = vsel %vm874, %v869, %v875
        %vm877 = vcmp.eq.s32.totalorder %v872, 2
        %v878 = vxor.u32 %v869, 2147483648
        %v879 = vsel %vm877, %v878, %v870
        %v880 = vsel %vm873, %v876, %v879
        %v881 = vsel %vm871, nan, %v880
        %v882 = vand.u32 2147483647, %v674
        %vm883 = vcmp.le.f32.partialorder %v882, 0.7853982
        %vm884 = vcmp.lt.s32.totalorder %v674, 0
        %v885 = vand.u32 %v674, 2139095040
        %v886 = vshrl.u32 %v885, 23
        %v887 = vsub.s32 %v886, 127
        %v888 = vand.u32 2147483647, %v674
        %v889 = vand.u32 %v888, 8388607
        %v890 = vor.u32 %v889, 8388608
        %v891 = vsub.s32 0, %v890
        %v892 = vadd.s32 %v887, 1
        %vm893 = vcmp.gt.s32.totalorder %v892, 0
        %v894 = vsel %vm893, %v892, 0
        %v895 = vshrl.u32 %v894, 5
        %v896 = vand.u32 %v894, 31
        %v897 = vsub.s32 32, %v896
        %v898 = vshrl.u32 683565275, %v897
        %v899 = vshll.u32 683565275, %v896
        %v900 = vshrl.u32 2475754826, %v897
        %v901 = vor.u32 %v899, %v900
        %v902 = vshll.u32 2475754826, %v896
        %v903 = vshrl.u32 2131351028, %v897
        %v904 = vor.u32 %v902, %v903
        %v905 = vshll.u32 2131351028, %v896
        %v906 = vshrl.u32 2102212464, %v897
        %v907 = vor.u32 %v905, %v906
        %v908 = vshll.u32 2102212464, %v896
        %v909 = vshrl.u32 920167782, %v897
        %v910 = vor.u32 %v908, %v909
        %v911 = vshll.u32 920167782, %v896
        %v912 = vshrl.u32 1326507024, %v897
        %v913 = vor.u32 %v911, %v912
        %vm914 = vcmp.lt.s32.totalorder %v895, 1
        %vm915 = vcmp.lt.s32.totalorder %v895, 2
        %vm916 = vcmp.lt.s32.totalorder %v895, 3
        %vm917 = vcmp.lt.s32.totalorder %v895, 4
        %v918 = vsel %vm914, %v898, %v901
        %v919 = vsel %vm917, %v907, 2102212464
        %v920 = vsel %vm916, %v904, %v919
        %v921 = vsel %vm915, %v918, %v920
        %v922 = vsel %vm914, %v901, %v904
        %v923 = vsel %vm917, %v910, 920167782
        %v924 = vsel %vm916, %v907, %v923
        %v925 = vsel %vm915, %v922, %v924
        %v926 = vsel %vm914, %v904, %v907
        %v927 = vsel %vm917, %v913, 1326507024
        %v928 = vsel %vm916, %v910, %v927
        %v929 = vsel %vm915, %v926, %v928
        %v930 = vshll.u32 %v890, 8
        %v931 = vmul.u32.u64.compose %v930, %v929
        %v932 = vextract.low.u32 %v931
        %v933 = vextract.high.u32 %v931
        %v934 = vmul.u32.u64.compose %v930, %v925
        %v935 = vextract.low.u32 %v934
        %v936 = vextract.high.u32 %v934
        %v937 = vmul.u32 %v930, %v921
        %v938 = vadd.s32 %v933, %v935
        %vm939 = vc.u32 %v933, %v935
        %v940 = vadd.s32 %v936, 1
        %v941 = vsel %vm939, %v940, %v936
        %v942 = vadd.s32 %v937, %v941
        %v943 = vadd.s32 %v942, 536870912
        %v944 = vshrl.u32 %v943, 30
        %v945 = vshll.u32 %v944, 30
        %v946 = vsub.s32 %v942, %v945
        %vm947 = vcmp.lt.s32.totalorder %v946, 0
        %v948 = vsub.s32 0, %v946
        %v949 = vsel %vm947, %v948, %v946
        %v950 = vclz %v949
        %v951 = vsub.s32 %v950, 2
        %vm952 = vcmp.gt.s32.totalorder 0, %v951
        %v953 = vsel %vm952, 0, %v951
        %v954 = vsub.s32 32, %v953
        %v955 = vshll.u32 %v946, %v953
        %v956 = vshrl.u32 %v938, %v954
        %v957 = vor.u32 %v955, %v956
        %v958 = vsub.s32 4294967266, %v953
        %v959 = vadd.s32 %v958, 127
        %v960 = vshll.u32 %v959, 23
        %v961 = vor.u32 4788187, %v960
        %v962 = vand.u32 2147483647, %v961
        %v964 = vcvt.s32.f32 %v957
        %v965 = vmul.f32 %v964, %v962
        %v966 = vxor.u32 %v965, 2147483648
        %v967 = vsel %vm884, %v966, %v965
        %v968 = vsub.s32 4, %v944
        %v969 = vsel %vm884, %v968, %v944
        %v970 = vsel %vm883, %v674, %v967
        %v971 = vsel %vm883, 0, %v969
        %v972 = vcosq.f32.pop %v970
        %v973 = vsinq.f32.pop %v970
        %vm974 = vweird.f32 %v674
        %v975 = vand.u32 %v971, 3
        %vm976 = vcmp.lt.s32.totalorder %v975, 2
        %vm977 = vcmp.eq.s32.totalorder %v975, 0
        %v978 = vxor.u32 %v973, 2147483648
        %v979 = vsel %vm977, %v972, %v978
        %vm980 = vcmp.eq.s32.totalorder %v975, 2
        %v981 = vxor.u32 %v972, 2147483648
        %v982 = vsel %vm980, %v981, %v973
        %v983 = vsel %vm976, %v979, %v982
        %v984 = vsel %vm974, nan, %v983
        %v985 = vand.u32 2147483647, %v675
        %vm986 = vcmp.le.f32.partialorder %v985, 0.7853982
        %vm987 = vcmp.lt.s32.totalorder %v675, 0
        %v988 = vand.u32 %v675, 2139095040
        %v989 = vshrl.u32 %v988, 23
        %v990 = vsub.s32 %v989, 127
        %v991 = vand.u32 2147483647, %v675
        %v992 = vand.u32 %v991, 8388607
        %v993 = vor.u32 %v992, 8388608
        %v994 = vsub.s32 0, %v993
        %v995 = vadd.s32 %v990, 1
        %vm996 = vcmp.gt.s32.totalorder %v995, 0
        %v997 = vsel %vm996, %v995, 0
        %v998 = vshrl.u32 %v997, 5
        %v999 = vand.u32 %v997, 31
        %v1000 = vsub.s32 32, %v999
        %v1001 = vshrl.u32 683565275, %v1000
        %v1002 = vshll.u32 683565275, %v999
        %v1003 = vshrl.u32 2475754826, %v1000
        %v1004 = vor.u32 %v1002, %v1003
        %v1005 = vshll.u32 2475754826, %v999
        %v1006 = vshrl.u32 2131351028, %v1000
        %v1007 = vor.u32 %v1005, %v1006
        %v1008 = vshll.u32 2131351028, %v999
        %v1009 = vshrl.u32 2102212464, %v1000
        %v1010 = vor.u32 %v1008, %v1009
        %v1011 = vshll.u32 2102212464, %v999
        %v1012 = vshrl.u32 920167782, %v1000
        %v1013 = vor.u32 %v1011, %v1012
        %v1014 = vshll.u32 920167782, %v999
        %v1015 = vshrl.u32 1326507024, %v1000
        %v1016 = vor.u32 %v1014, %v1015
        %vm1017 = vcmp.lt.s32.totalorder %v998, 1
        %vm1018 = vcmp.lt.s32.totalorder %v998, 2
        %vm1019 = vcmp.lt.s32.totalorder %v998, 3
        %vm1020 = vcmp.lt.s32.totalorder %v998, 4
        %v1021 = vsel %vm1017, %v1001, %v1004
        %v1022 = vsel %vm1020, %v1010, 2102212464
        %v1023 = vsel %vm1019, %v1007, %v1022
        %v1024 = vsel %vm1018, %v1021, %v1023
        %v1025 = vsel %vm1017, %v1004, %v1007
        %v1026 = vsel %vm1020, %v1013, 920167782
        %v1027 = vsel %vm1019, %v1010, %v1026
        %v1028 = vsel %vm1018, %v1025, %v1027
        %v1029 = vsel %vm1017, %v1007, %v1010
        %v1030 = vsel %vm1020, %v1016, 1326507024
        %v1031 = vsel %vm1019, %v1013, %v1030
        %v1032 = vsel %vm1018, %v1029, %v1031
        %v1033 = vshll.u32 %v993, 8
        %v1034 = vmul.u32.u64.compose %v1033, %v1032
        %v1035 = vextract.low.u32 %v1034
        %v1036 = vextract.high.u32 %v1034
        %v1037 = vmul.u32.u64.compose %v1033, %v1028
        %v1038 = vextract.low.u32 %v1037
        %v1039 = vextract.high.u32 %v1037
        %v1040 = vmul.u32 %v1033, %v1024
        %v1041 = vadd.s32 %v1036, %v1038
        %vm1042 = vc.u32 %v1036, %v1038
        %v1043 = vadd.s32 %v1039, 1
        %v1044 = vsel %vm1042, %v1043, %v1039
        %v1045 = vadd.s32 %v1040, %v1044
        %v1046 = vadd.s32 %v1045, 536870912
        %v1047 = vshrl.u32 %v1046, 30
        %v1048 = vshll.u32 %v1047, 30
        %v1049 = vsub.s32 %v1045, %v1048
        %vm1050 = vcmp.lt.s32.totalorder %v1049, 0
        %v1051 = vsub.s32 0, %v1049
        %v1052 = vsel %vm1050, %v1051, %v1049
        %v1053 = vclz %v1052
        %v1054 = vsub.s32 %v1053, 2
        %vm1055 = vcmp.gt.s32.totalorder 0, %v1054
        %v1056 = vsel %vm1055, 0, %v1054
        %v1057 = vsub.s32 32, %v1056
        %v1058 = vshll.u32 %v1049, %v1056
        %v1059 = vshrl.u32 %v1041, %v1057
        %v1060 = vor.u32 %v1058, %v1059
        %v1061 = vsub.s32 4294967266, %v1056
        %v1062 = vadd.s32 %v1061, 127
        %v1063 = vshll.u32 %v1062, 23
        %v1064 = vor.u32 4788187, %v1063
        %v1065 = vand.u32 2147483647, %v1064
        %v1067 = vcvt.s32.f32 %v1060
        %v1068 = vmul.f32 %v1067, %v1065
        %v1069 = vxor.u32 %v1068, 2147483648
        %v1070 = vsel %vm987, %v1069, %v1068
        %v1071 = vsub.s32 4, %v1047
        %v1072 = vsel %vm987, %v1071, %v1047
        %v1073 = vsel %vm986, %v675, %v1070
        %v1074 = vsel %vm986, 0, %v1072
        %v1075 = vcosq.f32.pop %v1073
        %v1076 = vsinq.f32.pop %v1073
        %vm1077 = vweird.f32 %v675
        %v1078 = vand.u32 %v1074, 3
        %vm1079 = vcmp.lt.s32.totalorder %v1078, 2
        %vm1080 = vcmp.eq.s32.totalorder %v1078, 0
        %v1081 = vxor.u32 %v1076, 2147483648
        %v1082 = vsel %vm1080, %v1075, %v1081
        %vm1083 = vcmp.eq.s32.totalorder %v1078, 2
        %v1084 = vxor.u32 %v1075, 2147483648
        %v1085 = vsel %vm1083, %v1084, %v1076
        %v1086 = vsel %vm1079, %v1082, %v1085
        %v1087 = vsel %vm1077, nan, %v1086
        %v1088 = vand.u32 2147483647, %v672
        %vm1089 = vcmp.le.f32.partialorder %v1088, 0.7853982
        %vm1090 = vcmp.lt.s32.totalorder %v672, 0
        %v1091 = vand.u32 %v672, 2139095040
        %v1092 = vshrl.u32 %v1091, 23
        %v1093 = vsub.s32 %v1092, 127
        %v1094 = vand.u32 2147483647, %v672
        %v1095 = vand.u32 %v1094, 8388607
        %v1096 = vor.u32 %v1095, 8388608
        %v1097 = vsub.s32 0, %v1096
        %v1098 = vadd.s32 %v1093, 1
        %vm1099 = vcmp.gt.s32.totalorder %v1098, 0
        %v1100 = vsel %vm1099, %v1098, 0
        %v1101 = vshrl.u32 %v1100, 5
        %v1102 = vand.u32 %v1100, 31
        %v1103 = vsub.s32 32, %v1102
        %v1104 = vshrl.u32 683565275, %v1103
        %v1105 = vshll.u32 683565275, %v1102
        %v1106 = vshrl.u32 2475754826, %v1103
        %v1107 = vor.u32 %v1105, %v1106
        %v1108 = vshll.u32 2475754826, %v1102
        %v1109 = vshrl.u32 2131351028, %v1103
        %v1110 = vor.u32 %v1108, %v1109
        %v1111 = vshll.u32 2131351028, %v1102
        %v1112 = vshrl.u32 2102212464, %v1103
        %v1113 = vor.u32 %v1111, %v1112
        %v1114 = vshll.u32 2102212464, %v1102
        %v1115 = vshrl.u32 920167782, %v1103
        %v1116 = vor.u32 %v1114, %v1115
        %v1117 = vshll.u32 920167782, %v1102
        %v1118 = vshrl.u32 1326507024, %v1103
        %v1119 = vor.u32 %v1117, %v1118
        %vm1120 = vcmp.lt.s32.totalorder %v1101, 1
        %vm1121 = vcmp.lt.s32.totalorder %v1101, 2
        %vm1122 = vcmp.lt.s32.totalorder %v1101, 3
        %vm1123 = vcmp.lt.s32.totalorder %v1101, 4
        %v1124 = vsel %vm1120, %v1104, %v1107
        %v1125 = vsel %vm1123, %v1113, 2102212464
        %v1126 = vsel %vm1122, %v1110, %v1125
        %v1127 = vsel %vm1121, %v1124, %v1126
        %v1128 = vsel %vm1120, %v1107, %v1110
        %v1129 = vsel %vm1123, %v1116, 920167782
        %v1130 = vsel %vm1122, %v1113, %v1129
        %v1131 = vsel %vm1121, %v1128, %v1130
        %v1132 = vsel %vm1120, %v1110, %v1113
        %v1133 = vsel %vm1123, %v1119, 1326507024
        %v1134 = vsel %vm1122, %v1116, %v1133
        %v1135 = vsel %vm1121, %v1132, %v1134
        %v1136 = vshll.u32 %v1096, 8
        %v1137 = vmul.u32.u64.compose %v1136, %v1135
        %v1138 = vextract.low.u32 %v1137
        %v1139 = vextract.high.u32 %v1137
        %v1140 = vmul.u32.u64.compose %v1136, %v1131
        %v1141 = vextract.low.u32 %v1140
        %v1142 = vextract.high.u32 %v1140
        %v1143 = vmul.u32 %v1136, %v1127
        %v1144 = vadd.s32 %v1139, %v1141
        %vm1145 = vc.u32 %v1139, %v1141
        %v1146 = vadd.s32 %v1142, 1
        %v1147 = vsel %vm1145, %v1146, %v1142
        %v1148 = vadd.s32 %v1143, %v1147
        %v1149 = vadd.s32 %v1148, 536870912
        %v1150 = vshrl.u32 %v1149, 30
        %v1151 = vshll.u32 %v1150, 30
        %v1152 = vsub.s32 %v1148, %v1151
        %vm1153 = vcmp.lt.s32.totalorder %v1152, 0
        %v1154 = vsub.s32 0, %v1152
        %v1155 = vsel %vm1153, %v1154, %v1152
        %v1156 = vclz %v1155
        %v1157 = vsub.s32 %v1156, 2
        %vm1158 = vcmp.gt.s32.totalorder 0, %v1157
        %v1159 = vsel %vm1158, 0, %v1157
        %v1160 = vsub.s32 32, %v1159
        %v1161 = vshll.u32 %v1152, %v1159
        %v1162 = vshrl.u32 %v1144, %v1160
        %v1163 = vor.u32 %v1161, %v1162
        %v1164 = vsub.s32 4294967266, %v1159
        %v1165 = vadd.s32 %v1164, 127
        %v1166 = vshll.u32 %v1165, 23
        %v1167 = vor.u32 4788187, %v1166
        %v1168 = vand.u32 2147483647, %v1167
        %v1170 = vcvt.s32.f32 %v1163
        %v1171 = vmul.f32 %v1170, %v1168
        %v1172 = vxor.u32 %v1171, 2147483648
        %v1173 = vsel %vm1090, %v1172, %v1171
        %v1174 = vsub.s32 4, %v1150
        %v1175 = vsel %vm1090, %v1174, %v1150
        %v1176 = vsel %vm1089, %v672, %v1173
        %v1177 = vsel %vm1089, 0, %v1175
        %v1178 = vcosq.f32.pop %v1176
        %v1179 = vsinq.f32.pop %v1176
        %vm1180 = vweird.f32 %v672
        %v1181 = vadd.s32 %v1177, 3
        %v1182 = vand.u32 %v1181, 3
        %vm1183 = vcmp.lt.s32.totalorder %v1182, 2
        %vm1184 = vcmp.eq.s32.totalorder %v1182, 0
        %v1185 = vxor.u32 %v1179, 2147483648
        %v1186 = vsel %vm1184, %v1178, %v1185
        %vm1187 = vcmp.eq.s32.totalorder %v1182, 2
        %v1188 = vxor.u32 %v1178, 2147483648
        %v1189 = vsel %vm1187, %v1188, %v1179
        %v1190 = vsel %vm1183, %v1186, %v1189
        %v1191 = vsel %vm1180, nan, %v1190
        %v1192 = vand.u32 2147483647, %v673
        %vm1193 = vcmp.le.f32.partialorder %v1192, 0.7853982
        %vm1194 = vcmp.lt.s32.totalorder %v673, 0
        %v1195 = vand.u32 %v673, 2139095040
        %v1196 = vshrl.u32 %v1195, 23
        %v1197 = vsub.s32 %v1196, 127
        %v1198 = vand.u32 2147483647, %v673
        %v1199 = vand.u32 %v1198, 8388607
        %v1200 = vor.u32 %v1199, 8388608
        %v1201 = vsub.s32 0, %v1200
        %v1202 = vadd.s32 %v1197, 1
        %vm1203 = vcmp.gt.s32.totalorder %v1202, 0
        %v1204 = vsel %vm1203, %v1202, 0
        %v1205 = vshrl.u32 %v1204, 5
        %v1206 = vand.u32 %v1204, 31
        %v1207 = vsub.s32 32, %v1206
        %v1208 = vshrl.u32 683565275, %v1207
        %v1209 = vshll.u32 683565275, %v1206
        %v1210 = vshrl.u32 2475754826, %v1207
        %v1211 = vor.u32 %v1209, %v1210
        %v1212 = vshll.u32 2475754826, %v1206
        %v1213 = vshrl.u32 2131351028, %v1207
        %v1214 = vor.u32 %v1212, %v1213
        %v1215 = vshll.u32 2131351028, %v1206
        %v1216 = vshrl.u32 2102212464, %v1207
        %v1217 = vor.u32 %v1215, %v1216
        %v1218 = vshll.u32 2102212464, %v1206
        %v1219 = vshrl.u32 920167782, %v1207
        %v1220 = vor.u32 %v1218, %v1219
        %v1221 = vshll.u32 920167782, %v1206
        %v1222 = vshrl.u32 1326507024, %v1207
        %v1223 = vor.u32 %v1221, %v1222
        %vm1224 = vcmp.lt.s32.totalorder %v1205, 1
        %vm1225 = vcmp.lt.s32.totalorder %v1205, 2
        %vm1226 = vcmp.lt.s32.totalorder %v1205, 3
        %vm1227 = vcmp.lt.s32.totalorder %v1205, 4
        %v1228 = vsel %vm1224, %v1208, %v1211
        %v1229 = vsel %vm1227, %v1217, 2102212464
        %v1230 = vsel %vm1226, %v1214, %v1229
        %v1231 = vsel %vm1225, %v1228, %v1230
        %v1232 = vsel %vm1224, %v1211, %v1214
        %v1233 = vsel %vm1227, %v1220, 920167782
        %v1234 = vsel %vm1226, %v1217, %v1233
        %v1235 = vsel %vm1225, %v1232, %v1234
        %v1236 = vsel %vm1224, %v1214, %v1217
        %v1237 = vsel %vm1227, %v1223, 1326507024
        %v1238 = vsel %vm1226, %v1220, %v1237
        %v1239 = vsel %vm1225, %v1236, %v1238
        %v1240 = vshll.u32 %v1200, 8
        %v1241 = vmul.u32.u64.compose %v1240, %v1239
        %v1242 = vextract.low.u32 %v1241
        %v1243 = vextract.high.u32 %v1241
        %v1244 = vmul.u32.u64.compose %v1240, %v1235
        %v1245 = vextract.low.u32 %v1244
        %v1246 = vextract.high.u32 %v1244
        %v1247 = vmul.u32 %v1240, %v1231
        %v1248 = vadd.s32 %v1243, %v1245
        %vm1249 = vc.u32 %v1243, %v1245
        %v1250 = vadd.s32 %v1246, 1
        %v1251 = vsel %vm1249, %v1250, %v1246
        %v1252 = vadd.s32 %v1247, %v1251
        %v1253 = vadd.s32 %v1252, 536870912
        %v1254 = vshrl.u32 %v1253, 30
        %v1255 = vshll.u32 %v1254, 30
        %v1256 = vsub.s32 %v1252, %v1255
        %vm1257 = vcmp.lt.s32.totalorder %v1256, 0
        %v1258 = vsub.s32 0, %v1256
        %v1259 = vsel %vm1257, %v1258, %v1256
        %v1260 = vclz %v1259
        %v1261 = vsub.s32 %v1260, 2
        %vm1262 = vcmp.gt.s32.totalorder 0, %v1261
        %v1263 = vsel %vm1262, 0, %v1261
        %v1264 = vsub.s32 32, %v1263
        %v1265 = vshll.u32 %v1256, %v1263
        %v1266 = vshrl.u32 %v1248, %v1264
        %v1267 = vor.u32 %v1265, %v1266
        %v1268 = vsub.s32 4294967266, %v1263
        %v1269 = vadd.s32 %v1268, 127
        %v1270 = vshll.u32 %v1269, 23
        %v1271 = vor.u32 4788187, %v1270
        %v1272 = vand.u32 2147483647, %v1271
        %v1274 = vcvt.s32.f32 %v1267
        %v1275 = vmul.f32 %v1274, %v1272
        %v1276 = vxor.u32 %v1275, 2147483648
        %v1277 = vsel %vm1194, %v1276, %v1275
        %v1278 = vsub.s32 4, %v1254
        %v1279 = vsel %vm1194, %v1278, %v1254
        %v1280 = vsel %vm1193, %v673, %v1277
        %v1281 = vsel %vm1193, 0, %v1279
        %v1282 = vcosq.f32.pop %v1280
        %v1283 = vsinq.f32.pop %v1280
        %vm1284 = vweird.f32 %v673
        %v1285 = vadd.s32 %v1281, 3
        %v1286 = vand.u32 %v1285, 3
        %vm1287 = vcmp.lt.s32.totalorder %v1286, 2
        %vm1288 = vcmp.eq.s32.totalorder %v1286, 0
        %v1289 = vxor.u32 %v1283, 2147483648
        %v1290 = vsel %vm1288, %v1282, %v1289
        %vm1291 = vcmp.eq.s32.totalorder %v1286, 2
        %v1292 = vxor.u32 %v1282, 2147483648
        %v1293 = vsel %vm1291, %v1292, %v1283
        %v1294 = vsel %vm1287, %v1290, %v1293
        %v1295 = vsel %vm1284, nan, %v1294
        %v1296 = vand.u32 2147483647, %v674
        %vm1297 = vcmp.le.f32.partialorder %v1296, 0.7853982
        %vm1298 = vcmp.lt.s32.totalorder %v674, 0
        %v1299 = vand.u32 %v674, 2139095040
        %v1300 = vshrl.u32 %v1299, 23
        %v1301 = vsub.s32 %v1300, 127
        %v1302 = vand.u32 2147483647, %v674
        %v1303 = vand.u32 %v1302, 8388607
        %v1304 = vor.u32 %v1303, 8388608
        %v1305 = vsub.s32 0, %v1304
        %v1306 = vadd.s32 %v1301, 1
        %vm1307 = vcmp.gt.s32.totalorder %v1306, 0
        %v1308 = vsel %vm1307, %v1306, 0
        %v1309 = vshrl.u32 %v1308, 5
        %v1310 = vand.u32 %v1308, 31
        %v1311 = vsub.s32 32, %v1310
        %v1312 = vshrl.u32 683565275, %v1311
        %v1313 = vshll.u32 683565275, %v1310
        %v1314 = vshrl.u32 2475754826, %v1311
        %v1315 = vor.u32 %v1313, %v1314
        %v1316 = vshll.u32 2475754826, %v1310
        %v1317 = vshrl.u32 2131351028, %v1311
        %v1318 = vor.u32 %v1316, %v1317
        %v1319 = vshll.u32 2131351028, %v1310
        %v1320 = vshrl.u32 2102212464, %v1311
        %v1321 = vor.u32 %v1319, %v1320
        %v1322 = vshll.u32 2102212464, %v1310
        %v1323 = vshrl.u32 920167782, %v1311
        %v1324 = vor.u32 %v1322, %v1323
        %v1325 = vshll.u32 920167782, %v1310
        %v1326 = vshrl.u32 1326507024, %v1311
        %v1327 = vor.u32 %v1325, %v1326
        %vm1328 = vcmp.lt.s32.totalorder %v1309, 1
        %vm1329 = vcmp.lt.s32.totalorder %v1309, 2
        %vm1330 = vcmp.lt.s32.totalorder %v1309, 3
        %vm1331 = vcmp.lt.s32.totalorder %v1309, 4
        %v1332 = vsel %vm1328, %v1312, %v1315
        %v1333 = vsel %vm1331, %v1321, 2102212464
        %v1334 = vsel %vm1330, %v1318, %v1333
        %v1335 = vsel %vm1329, %v1332, %v1334
        %v1336 = vsel %vm1328, %v1315, %v1318
        %v1337 = vsel %vm1331, %v1324, 920167782
        %v1338 = vsel %vm1330, %v1321, %v1337
        %v1339 = vsel %vm1329, %v1336, %v1338
        %v1340 = vsel %vm1328, %v1318, %v1321
        %v1341 = vsel %vm1331, %v1327, 1326507024
        %v1342 = vsel %vm1330, %v1324, %v1341
        %v1343 = vsel %vm1329, %v1340, %v1342
        %v1344 = vshll.u32 %v1304, 8
        %v1345 = vmul.u32.u64.compose %v1344, %v1343
        %v1346 = vextract.low.u32 %v1345
        %v1347 = vextract.high.u32 %v1345
        %v1348 = vmul.u32.u64.compose %v1344, %v1339
        %v1349 = vextract.low.u32 %v1348
        %v1350 = vextract.high.u32 %v1348
        %v1351 = vmul.u32 %v1344, %v1335
        %v1352 = vadd.s32 %v1347, %v1349
        %vm1353 = vc.u32 %v1347, %v1349
        %v1354 = vadd.s32 %v1350, 1
        %v1355 = vsel %vm1353, %v1354, %v1350
        %v1356 = vadd.s32 %v1351, %v1355
        %v1357 = vadd.s32 %v1356, 536870912
        %v1358 = vshrl.u32 %v1357, 30
        %v1359 = vshll.u32 %v1358, 30
        %v1360 = vsub.s32 %v1356, %v1359
        %vm1361 = vcmp.lt.s32.totalorder %v1360, 0
        %v1362 = vsub.s32 0, %v1360
        %v1363 = vsel %vm1361, %v1362, %v1360
        %v1364 = vclz %v1363
        %v1365 = vsub.s32 %v1364, 2
        %vm1366 = vcmp.gt.s32.totalorder 0, %v1365
        %v1367 = vsel %vm1366, 0, %v1365
        %v1368 = vsub.s32 32, %v1367
        %v1369 = vshll.u32 %v1360, %v1367
        %v1370 = vshrl.u32 %v1352, %v1368
        %v1371 = vor.u32 %v1369, %v1370
        %v1372 = vsub.s32 4294967266, %v1367
        %v1373 = vadd.s32 %v1372, 127
        %v1374 = vshll.u32 %v1373, 23
        %v1375 = vor.u32 4788187, %v1374
        %v1376 = vand.u32 2147483647, %v1375
        %v1378 = vcvt.s32.f32 %v1371
        %v1379 = vmul.f32 %v1378, %v1376
        %v1380 = vxor.u32 %v1379, 2147483648
        %v1381 = vsel %vm1298, %v1380, %v1379
        %v1382 = vsub.s32 4, %v1358
        %v1383 = vsel %vm1298, %v1382, %v1358
        %v1384 = vsel %vm1297, %v674, %v1381
        %v1385 = vsel %vm1297, 0, %v1383
        %v1386 = vcosq.f32.pop %v1384
        %v1387 = vsinq.f32.pop %v1384
        %vm1388 = vweird.f32 %v674
        %v1389 = vadd.s32 %v1385, 3
        %v1390 = vand.u32 %v1389, 3
        %vm1391 = vcmp.lt.s32.totalorder %v1390, 2
        %vm1392 = vcmp.eq.s32.totalorder %v1390, 0
        %v1393 = vxor.u32 %v1387, 2147483648
        %v1394 = vsel %vm1392, %v1386, %v1393
        %vm1395 = vcmp.eq.s32.totalorder %v1390, 2
        %v1396 = vxor.u32 %v1386, 2147483648
        %v1397 = vsel %vm1395, %v1396, %v1387
        %v1398 = vsel %vm1391, %v1394, %v1397
        %v1399 = vsel %vm1388, nan, %v1398
        %v1400 = vand.u32 2147483647, %v675
        %vm1401 = vcmp.le.f32.partialorder %v1400, 0.7853982
        %vm1402 = vcmp.lt.s32.totalorder %v675, 0
        %v1403 = vand.u32 %v675, 2139095040
        %v1404 = vshrl.u32 %v1403, 23
        %v1405 = vsub.s32 %v1404, 127
        %v1406 = vand.u32 2147483647, %v675
        %v1407 = vand.u32 %v1406, 8388607
        %v1408 = vor.u32 %v1407, 8388608
        %v1409 = vsub.s32 0, %v1408
        %v1410 = vadd.s32 %v1405, 1
        %vm1411 = vcmp.gt.s32.totalorder %v1410, 0
        %v1412 = vsel %vm1411, %v1410, 0
        %v1413 = vshrl.u32 %v1412, 5
        %v1414 = vand.u32 %v1412, 31
        %v1415 = vsub.s32 32, %v1414
        %v1416 = vshrl.u32 683565275, %v1415
        %v1417 = vshll.u32 683565275, %v1414
        %v1418 = vshrl.u32 2475754826, %v1415
        %v1419 = vor.u32 %v1417, %v1418
        %v1420 = vshll.u32 2475754826, %v1414
        %v1421 = vshrl.u32 2131351028, %v1415
        %v1422 = vor.u32 %v1420, %v1421
        %v1423 = vshll.u32 2131351028, %v1414
        %v1424 = vshrl.u32 2102212464, %v1415
        %v1425 = vor.u32 %v1423, %v1424
        %v1426 = vshll.u32 2102212464, %v1414
        %v1427 = vshrl.u32 920167782, %v1415
        %v1428 = vor.u32 %v1426, %v1427
        %v1429 = vshll.u32 920167782, %v1414
        %v1430 = vshrl.u32 1326507024, %v1415
        %v1431 = vor.u32 %v1429, %v1430
        %vm1432 = vcmp.lt.s32.totalorder %v1413, 1
        %vm1433 = vcmp.lt.s32.totalorder %v1413, 2
        %vm1434 = vcmp.lt.s32.totalorder %v1413, 3
        %vm1435 = vcmp.lt.s32.totalorder %v1413, 4
        %v1436 = vsel %vm1432, %v1416, %v1419
        %v1437 = vsel %vm1435, %v1425, 2102212464
        %v1438 = vsel %vm1434, %v1422, %v1437
        %v1439 = vsel %vm1433, %v1436, %v1438
        %v1440 = vsel %vm1432, %v1419, %v1422
        %v1441 = vsel %vm1435, %v1428, 920167782
        %v1442 = vsel %vm1434, %v1425, %v1441
        %v1443 = vsel %vm1433, %v1440, %v1442
        %v1444 = vsel %vm1432, %v1422, %v1425
        %v1445 = vsel %vm1435, %v1431, 1326507024
        %v1446 = vsel %vm1434, %v1428, %v1445
        %v1447 = vsel %vm1433, %v1444, %v1446
        %v1448 = vshll.u32 %v1408, 8
        %v1449 = vmul.u32.u64.compose %v1448, %v1447
        %v1450 = vextract.low.u32 %v1449
        %v1451 = vextract.high.u32 %v1449
        %v1452 = vmul.u32.u64.compose %v1448, %v1443
        %v1453 = vextract.low.u32 %v1452
        %v1454 = vextract.high.u32 %v1452
        %v1455 = vmul.u32 %v1448, %v1439
        %v1456 = vadd.s32 %v1451, %v1453
        %vm1457 = vc.u32 %v1451, %v1453
        %v1458 = vadd.s32 %v1454, 1
        %v1459 = vsel %vm1457, %v1458, %v1454
        %v1460 = vadd.s32 %v1455, %v1459
        %v1461 = vadd.s32 %v1460, 536870912
        %v1462 = vshrl.u32 %v1461, 30
        %v1463 = vshll.u32 %v1462, 30
        %v1464 = vsub.s32 %v1460, %v1463
        %vm1465 = vcmp.lt.s32.totalorder %v1464, 0
        %v1466 = vsub.s32 0, %v1464
        %v1467 = vsel %vm1465, %v1466, %v1464
        %v1468 = vclz %v1467
        %v1469 = vsub.s32 %v1468, 2
        %vm1470 = vcmp.gt.s32.totalorder 0, %v1469
        %v1471 = vsel %vm1470, 0, %v1469
        %v1472 = vsub.s32 32, %v1471
        %v1473 = vshll.u32 %v1464, %v1471
        %v1474 = vshrl.u32 %v1456, %v1472
        %v1475 = vor.u32 %v1473, %v1474
        %v1476 = vsub.s32 4294967266, %v1471
        %v1477 = vadd.s32 %v1476, 127
        %v1478 = vshll.u32 %v1477, 23
        %v1479 = vor.u32 4788187, %v1478
        %v1480 = vand.u32 2147483647, %v1479
        %v1482 = vcvt.s32.f32 %v1475
        %v1483 = vmul.f32 %v1482, %v1480
        %v1484 = vxor.u32 %v1483, 2147483648
        %v1485 = vsel %vm1402, %v1484, %v1483
        %v1486 = vsub.s32 4, %v1462
        %v1487 = vsel %vm1402, %v1486, %v1462
        %v1488 = vsel %vm1401, %v675, %v1485
        %v1489 = vsel %vm1401, 0, %v1487
        %v1490 = vcosq.f32.pop %v1488
        %v1491 = vsinq.f32.pop %v1488
        %vm1492 = vweird.f32 %v675
        %v1493 = vadd.s32 %v1489, 3
        %v1494 = vand.u32 %v1493, 3
        %vm1495 = vcmp.lt.s32.totalorder %v1494, 2
        %vm1496 = vcmp.eq.s32.totalorder %v1494, 0
        %v1497 = vxor.u32 %v1491, 2147483648
        %v1498 = vsel %vm1496, %v1490, %v1497
        %vm1499 = vcmp.eq.s32.totalorder %v1494, 2
        %v1500 = vxor.u32 %v1490, 2147483648
        %v1501 = vsel %vm1499, %v1500, %v1491
        %v1502 = vsel %vm1495, %v1498, %v1501
        %v1503 = vsel %vm1492, nan, %v1502
        %v1504 = vld [vmem:[%s425] sm:$0xff]
        %v1505 = vld [vmem:[%s425 + $0x8] sm:$0xff]
        %v1506 = vld [vmem:[%s433] sm:$0x1]
        %v1508 = vlaneseq
        %v1509 = vshrl.u32 %v1508, 7
        %v1510 = vsub.s32 0, %v1509
        %v1511 = vrot.slane %v1506, %v1510
        %v1513 = vmul.f32 %v1504, %v1511
        %v1514 = vmul.f32 %v1505, %v1511
        %v1515 = vsub.f32 0.0, %v1514
        %v1518 = vcombine.high %v1513, %v1513
        %v1520 = vunpack.c.l.s4 1966171168
        %v1521 = vunpack.c.0.s8 %v1520
        %v1522 = vlaneseq
        %v1523 = vshrl.u32 %v1522, 7
        %v1524 = vsub.s32 %v1521, %v1523
        %v1525 = vrot.slane %v1513, %v1524
        %v1527 = vunpack.c.l.s4 1966171168
        %v1528 = vunpack.c.0.s8 %v1527
        %v1529 = vlaneseq
        %v1530 = vshrl.u32 %v1529, 7
        %v1531 = vsub.s32 %v1528, %v1530
        %v1532 = vrot.slane %v1518, %v1531
        %v1533 = vcombine.high %v1525, %v1525
        %v1534 = vcombine.high %v1532, %v1532
        %v1536 = vunpack.c.l.s4 1966171168
        %v1537 = vunpack.c.0.s8 %v1536
        %v1538 = vlaneseq
        %v1539 = vshrl.u32 %v1538, 7
        %v1540 = vsub.s32 %v1537, %v1539
        %v1541 = vrot.slane %v1525, %v1540
        %v1543 = vunpack.c.l.s4 1966171168
        %v1544 = vunpack.c.0.s8 %v1543
        %v1545 = vlaneseq
        %v1546 = vshrl.u32 %v1545, 7
        %v1547 = vsub.s32 %v1544, %v1546
        %v1548 = vrot.slane %v1532, %v1547
        %v1550 = vunpack.c.l.s4 1966171168
        %v1551 = vunpack.c.0.s8 %v1550
        %v1552 = vlaneseq
        %v1553 = vshrl.u32 %v1552, 7
        %v1554 = vsub.s32 %v1551, %v1553
        %v1555 = vrot.slane %v1533, %v1554
        %v1557 = vunpack.c.l.s4 1966171168
        %v1558 = vunpack.c.0.s8 %v1557
        %v1559 = vlaneseq
        %v1560 = vshrl.u32 %v1559, 7
        %v1561 = vsub.s32 %v1558, %v1560
        %v1562 = vrot.slane %v1534, %v1561
        %v1563 = vcombine.high %v1541, %v1541
        %v1564 = vcombine.high %v1548, %v1548
        %v1565 = vcombine.high %v1555, %v1555
        %v1566 = vcombine.high %v1562, %v1562
        %v1567 = vcombine.high %v1514, %v1514
        %v1569 = vunpack.c.l.s4 1966171168
        %v1570 = vunpack.c.0.s8 %v1569
        %v1571 = vlaneseq
        %v1572 = vshrl.u32 %v1571, 7
        %v1573 = vsub.s32 %v1570, %v1572
        %v1574 = vrot.slane %v1514, %v1573
        %v1576 = vunpack.c.l.s4 1966171168
        %v1577 = vunpack.c.0.s8 %v1576
        %v1578 = vlaneseq
        %v1579 = vshrl.u32 %v1578, 7
        %v1580 = vsub.s32 %v1577, %v1579
        %v1581 = vrot.slane %v1567, %v1580
        %v1582 = vcombine.high %v1574, %v1574
        %v1583 = vcombine.high %v1581, %v1581
        %v1585 = vunpack.c.l.s4 1966171168
        %v1586 = vunpack.c.0.s8 %v1585
        %v1587 = vlaneseq
        %v1588 = vshrl.u32 %v1587, 7
        %v1589 = vsub.s32 %v1586, %v1588
        %v1590 = vrot.slane %v1574, %v1589
        %v1592 = vunpack.c.l.s4 1966171168
        %v1593 = vunpack.c.0.s8 %v1592
        %v1594 = vlaneseq
        %v1595 = vshrl.u32 %v1594, 7
        %v1596 = vsub.s32 %v1593, %v1595
        %v1597 = vrot.slane %v1581, %v1596
        %v1599 = vunpack.c.l.s4 1966171168
        %v1600 = vunpack.c.0.s8 %v1599
        %v1601 = vlaneseq
        %v1602 = vshrl.u32 %v1601, 7
        %v1603 = vsub.s32 %v1600, %v1602
        %v1604 = vrot.slane %v1582, %v1603
        %v1606 = vunpack.c.l.s4 1966171168
        %v1607 = vunpack.c.0.s8 %v1606
        %v1608 = vlaneseq
        %v1609 = vshrl.u32 %v1608, 7
        %v1610 = vsub.s32 %v1607, %v1609
        %v1611 = vrot.slane %v1583, %v1610
        %v1612 = vcombine.high %v1590, %v1590
        %v1613 = vcombine.high %v1597, %v1597
        %v1614 = vcombine.high %v1604, %v1604
        %v1615 = vcombine.high %v1611, %v1611
        %v1616 = vlaneseq
        %v1617 = vshrl.u32 %v1616, 7
        %v1618 = vsub.s32 0, %v1617
        %v1619 = vrot.slane %v1541, %v1618
        %v1620 = vlaneseq
        %v1621 = vshrl.u32 %v1620, 7
        %v1622 = vsub.s32 0, %v1621
        %v1623 = vrot.slane %v1555, %v1622
        %v1624 = vlaneseq
        %v1625 = vshrl.u32 %v1624, 7
        %v1626 = vsub.s32 0, %v1625
        %v1627 = vrot.slane %v1563, %v1626
        %v1628 = vlaneseq
        %v1629 = vshrl.u32 %v1628, 7
        %v1630 = vsub.s32 0, %v1629
        %v1631 = vrot.slane %v1565, %v1630
        %v1632 = vlaneseq
        %v1633 = vshrl.u32 %v1632, 7
        %v1634 = vsub.s32 0, %v1633
        %v1635 = vrot.slane %v1548, %v1634
        %v1636 = vlaneseq
        %v1637 = vshrl.u32 %v1636, 7
        %v1638 = vsub.s32 0, %v1637
        %v1639 = vrot.slane %v1562, %v1638
        %v1640 = vlaneseq
        %v1641 = vshrl.u32 %v1640, 7
        %v1642 = vsub.s32 0, %v1641
        %v1643 = vrot.slane %v1564, %v1642
        %v1644 = vlaneseq
        %v1645 = vshrl.u32 %v1644, 7
        %v1646 = vsub.s32 0, %v1645
        %v1647 = vrot.slane %v1566, %v1646
        %v1648 = vlaneseq
        %v1649 = vshrl.u32 %v1648, 7
        %v1650 = vsub.s32 0, %v1649
        %v1651 = vrot.slane %v1590, %v1650
        %v1652 = vlaneseq
        %v1653 = vshrl.u32 %v1652, 7
        %v1654 = vsub.s32 0, %v1653
        %v1655 = vrot.slane %v1604, %v1654
        %v1656 = vlaneseq
        %v1657 = vshrl.u32 %v1656, 7
        %v1658 = vsub.s32 0, %v1657
        %v1659 = vrot.slane %v1612, %v1658
        %v1660 = vlaneseq
        %v1661 = vshrl.u32 %v1660, 7
        %v1662 = vsub.s32 0, %v1661
        %v1663 = vrot.slane %v1614, %v1662
        %v1664 = vlaneseq
        %v1665 = vshrl.u32 %v1664, 7
        %v1666 = vsub.s32 0, %v1665
        %v1667 = vrot.slane %v1597, %v1666
        %v1668 = vlaneseq
        %v1669 = vshrl.u32 %v1668, 7
        %v1670 = vsub.s32 0, %v1669
        %v1671 = vrot.slane %v1611, %v1670
        %v1672 = vlaneseq
        %v1673 = vshrl.u32 %v1672, 7
        %v1674 = vsub.s32 0, %v1673
        %v1675 = vrot.slane %v1613, %v1674
        %v1676 = vlaneseq
        %v1677 = vshrl.u32 %v1676, 7
        %v1678 = vsub.s32 0, %v1677
        %v1679 = vrot.slane %v1615, %v1678
        %v1696 = vmul.f32 %v1619, %v778
        %v1697 = vmul.f32 %v1619, %v881
        %v1698 = vmul.f32 %v1619, %v984
        %v1699 = vmul.f32 %v1619, %v1087
        %v1700 = vmul.f32 %v1623, %v778
        %v1701 = vmul.f32 %v1623, %v881
        %v1702 = vmul.f32 %v1623, %v984
        %v1703 = vmul.f32 %v1623, %v1087
        %v1704 = vmul.f32 %v1627, %v778
        %v1705 = vmul.f32 %v1627, %v881
        %v1706 = vmul.f32 %v1627, %v984
        %v1707 = vmul.f32 %v1627, %v1087
        %v1708 = vmul.f32 %v1631, %v778
        %v1709 = vmul.f32 %v1631, %v881
        %v1710 = vmul.f32 %v1631, %v984
        %v1711 = vmul.f32 %v1631, %v1087
        %v1712 = vmul.f32 %v1635, %v778
        %v1713 = vmul.f32 %v1635, %v881
        %v1714 = vmul.f32 %v1635, %v984
        %v1715 = vmul.f32 %v1635, %v1087
        %v1716 = vmul.f32 %v1639, %v778
        %v1717 = vmul.f32 %v1639, %v881
        %v1718 = vmul.f32 %v1639, %v984
        %v1719 = vmul.f32 %v1639, %v1087
        %v1720 = vmul.f32 %v1643, %v778
        %v1721 = vmul.f32 %v1643, %v881
        %v1722 = vmul.f32 %v1643, %v984
        %v1723 = vmul.f32 %v1643, %v1087
        %v1724 = vmul.f32 %v1647, %v778
        %v1725 = vmul.f32 %v1647, %v881
        %v1726 = vmul.f32 %v1647, %v984
        %v1727 = vmul.f32 %v1647, %v1087
        %v1728 = vmul.f32 %v1651, %v778
        %v1729 = vmul.f32 %v1651, %v881
        %v1730 = vmul.f32 %v1651, %v984
        %v1731 = vmul.f32 %v1651, %v1087
        %v1732 = vmul.f32 %v1655, %v778
        %v1733 = vmul.f32 %v1655, %v881
        %v1734 = vmul.f32 %v1655, %v984
        %v1735 = vmul.f32 %v1655, %v1087
        %v1736 = vmul.f32 %v1659, %v778
        %v1737 = vmul.f32 %v1659, %v881
        %v1738 = vmul.f32 %v1659, %v984
        %v1739 = vmul.f32 %v1659, %v1087
        %v1740 = vmul.f32 %v1663, %v778
        %v1741 = vmul.f32 %v1663, %v881
        %v1742 = vmul.f32 %v1663, %v984
        %v1743 = vmul.f32 %v1663, %v1087
        %v1744 = vmul.f32 %v1667, %v778
        %v1745 = vmul.f32 %v1667, %v881
        %v1746 = vmul.f32 %v1667, %v984
        %v1747 = vmul.f32 %v1667, %v1087
        %v1748 = vmul.f32 %v1671, %v778
        %v1749 = vmul.f32 %v1671, %v881
        %v1750 = vmul.f32 %v1671, %v984
        %v1751 = vmul.f32 %v1671, %v1087
        %v1752 = vmul.f32 %v1675, %v778
        %v1753 = vmul.f32 %v1675, %v881
        %v1754 = vmul.f32 %v1675, %v984
        %v1755 = vmul.f32 %v1675, %v1087
        %v1756 = vmul.f32 %v1679, %v778
        %v1757 = vmul.f32 %v1679, %v881
        %v1758 = vmul.f32 %v1679, %v984
        %v1759 = vmul.f32 %v1679, %v1087
        %v1761 = vcombine.high %v1515, %v1515
        %v1763 = vunpack.c.l.s4 1966171168
        %v1764 = vunpack.c.0.s8 %v1763
        %v1765 = vlaneseq
        %v1766 = vshrl.u32 %v1765, 7
        %v1767 = vsub.s32 %v1764, %v1766
        %v1768 = vrot.slane %v1515, %v1767
        %v1770 = vunpack.c.l.s4 1966171168
        %v1771 = vunpack.c.0.s8 %v1770
        %v1772 = vlaneseq
        %v1773 = vshrl.u32 %v1772, 7
        %v1774 = vsub.s32 %v1771, %v1773
        %v1775 = vrot.slane %v1761, %v1774
        %v1776 = vcombine.high %v1768, %v1768
        %v1777 = vcombine.high %v1775, %v1775
        %v1779 = vunpack.c.l.s4 1966171168
        %v1780 = vunpack.c.0.s8 %v1779
        %v1781 = vlaneseq
        %v1782 = vshrl.u32 %v1781, 7
        %v1783 = vsub.s32 %v1780, %v1782
        %v1784 = vrot.slane %v1768, %v1783
        %v1786 = vunpack.c.l.s4 1966171168
        %v1787 = vunpack.c.0.s8 %v1786
        %v1788 = vlaneseq
        %v1789 = vshrl.u32 %v1788, 7
        %v1790 = vsub.s32 %v1787, %v1789
        %v1791 = vrot.slane %v1775, %v1790
        %v1793 = vunpack.c.l.s4 1966171168
        %v1794 = vunpack.c.0.s8 %v1793
        %v1795 = vlaneseq
        %v1796 = vshrl.u32 %v1795, 7
        %v1797 = vsub.s32 %v1794, %v1796
        %v1798 = vrot.slane %v1776, %v1797
        %v1800 = vunpack.c.l.s4 1966171168
        %v1801 = vunpack.c.0.s8 %v1800
        %v1802 = vlaneseq
        %v1803 = vshrl.u32 %v1802, 7
        %v1804 = vsub.s32 %v1801, %v1803
        %v1805 = vrot.slane %v1777, %v1804
        %v1806 = vcombine.high %v1784, %v1784
        %v1807 = vcombine.high %v1791, %v1791
        %v1808 = vcombine.high %v1798, %v1798
        %v1809 = vcombine.high %v1805, %v1805
        %v1810 = vlaneseq
        %v1811 = vshrl.u32 %v1810, 7
        %v1812 = vsub.s32 0, %v1811
        %v1813 = vrot.slane %v1784, %v1812
        %v1814 = vlaneseq
        %v1815 = vshrl.u32 %v1814, 7
        %v1816 = vsub.s32 0, %v1815
        %v1817 = vrot.slane %v1798, %v1816
        %v1818 = vlaneseq
        %v1819 = vshrl.u32 %v1818, 7
        %v1820 = vsub.s32 0, %v1819
        %v1821 = vrot.slane %v1806, %v1820
        %v1822 = vlaneseq
        %v1823 = vshrl.u32 %v1822, 7
        %v1824 = vsub.s32 0, %v1823
        %v1825 = vrot.slane %v1808, %v1824
        %v1826 = vlaneseq
        %v1827 = vshrl.u32 %v1826, 7
        %v1828 = vsub.s32 0, %v1827
        %v1829 = vrot.slane %v1791, %v1828
        %v1830 = vlaneseq
        %v1831 = vshrl.u32 %v1830, 7
        %v1832 = vsub.s32 0, %v1831
        %v1833 = vrot.slane %v1805, %v1832
        %v1834 = vlaneseq
        %v1835 = vshrl.u32 %v1834, 7
        %v1836 = vsub.s32 0, %v1835
        %v1837 = vrot.slane %v1807, %v1836
        %v1838 = vlaneseq
        %v1839 = vshrl.u32 %v1838, 7
        %v1840 = vsub.s32 0, %v1839
        %v1841 = vrot.slane %v1809, %v1840
        %v1850 = vmul.f32 %v1813, %v1191
        %v1851 = vmul.f32 %v1813, %v1295
        %v1852 = vmul.f32 %v1813, %v1399
        %v1853 = vmul.f32 %v1813, %v1503
        %v1854 = vmul.f32 %v1817, %v1191
        %v1855 = vmul.f32 %v1817, %v1295
        %v1856 = vmul.f32 %v1817, %v1399
        %v1857 = vmul.f32 %v1817, %v1503
        %v1858 = vmul.f32 %v1821, %v1191
        %v1859 = vmul.f32 %v1821, %v1295
        %v1860 = vmul.f32 %v1821, %v1399
        %v1861 = vmul.f32 %v1821, %v1503
        %v1862 = vmul.f32 %v1825, %v1191
        %v1863 = vmul.f32 %v1825, %v1295
        %v1864 = vmul.f32 %v1825, %v1399
        %v1865 = vmul.f32 %v1825, %v1503
        %v1866 = vmul.f32 %v1829, %v1191
        %v1867 = vmul.f32 %v1829, %v1295
        %v1868 = vmul.f32 %v1829, %v1399
        %v1869 = vmul.f32 %v1829, %v1503
        %v1870 = vmul.f32 %v1833, %v1191
        %v1871 = vmul.f32 %v1833, %v1295
        %v1872 = vmul.f32 %v1833, %v1399
        %v1873 = vmul.f32 %v1833, %v1503
        %v1874 = vmul.f32 %v1837, %v1191
        %v1875 = vmul.f32 %v1837, %v1295
        %v1876 = vmul.f32 %v1837, %v1399
        %v1877 = vmul.f32 %v1837, %v1503
        %v1878 = vmul.f32 %v1841, %v1191
        %v1879 = vmul.f32 %v1841, %v1295
        %v1880 = vmul.f32 %v1841, %v1399
        %v1881 = vmul.f32 %v1841, %v1503
        %v1882 = vmul.f32 %v1619, %v1191
        %v1883 = vmul.f32 %v1619, %v1295
        %v1884 = vmul.f32 %v1619, %v1399
        %v1885 = vmul.f32 %v1619, %v1503
        %v1886 = vmul.f32 %v1623, %v1191
        %v1887 = vmul.f32 %v1623, %v1295
        %v1888 = vmul.f32 %v1623, %v1399
        %v1889 = vmul.f32 %v1623, %v1503
        %v1890 = vmul.f32 %v1627, %v1191
        %v1891 = vmul.f32 %v1627, %v1295
        %v1892 = vmul.f32 %v1627, %v1399
        %v1893 = vmul.f32 %v1627, %v1503
        %v1894 = vmul.f32 %v1631, %v1191
        %v1895 = vmul.f32 %v1631, %v1295
        %v1896 = vmul.f32 %v1631, %v1399
        %v1897 = vmul.f32 %v1631, %v1503
        %v1898 = vmul.f32 %v1635, %v1191
        %v1899 = vmul.f32 %v1635, %v1295
        %v1900 = vmul.f32 %v1635, %v1399
        %v1901 = vmul.f32 %v1635, %v1503
        %v1902 = vmul.f32 %v1639, %v1191
        %v1903 = vmul.f32 %v1639, %v1295
        %v1904 = vmul.f32 %v1639, %v1399
        %v1905 = vmul.f32 %v1639, %v1503
        %v1906 = vmul.f32 %v1643, %v1191
        %v1907 = vmul.f32 %v1643, %v1295
        %v1908 = vmul.f32 %v1643, %v1399
        %v1909 = vmul.f32 %v1643, %v1503
        %v1910 = vmul.f32 %v1647, %v1191
        %v1911 = vmul.f32 %v1647, %v1295
        %v1912 = vmul.f32 %v1647, %v1399
        %v1913 = vmul.f32 %v1647, %v1503
        %v1914 = vadd.f32 %v1696, %v1850
        %v1915 = vadd.f32 %v1697, %v1851
        %v1916 = vadd.f32 %v1698, %v1852
        %v1917 = vadd.f32 %v1699, %v1853
        %v1918 = vadd.f32 %v1700, %v1854
        %v1919 = vadd.f32 %v1701, %v1855
        %v1920 = vadd.f32 %v1702, %v1856
        %v1921 = vadd.f32 %v1703, %v1857
        %v1922 = vadd.f32 %v1704, %v1858
        %v1923 = vadd.f32 %v1705, %v1859
        %v1924 = vadd.f32 %v1706, %v1860
        %v1925 = vadd.f32 %v1707, %v1861
        %v1926 = vadd.f32 %v1708, %v1862
        %v1927 = vadd.f32 %v1709, %v1863
        %v1928 = vadd.f32 %v1710, %v1864
        %v1929 = vadd.f32 %v1711, %v1865
        %v1930 = vadd.f32 %v1712, %v1866
        %v1931 = vadd.f32 %v1713, %v1867
        %v1932 = vadd.f32 %v1714, %v1868
        %v1933 = vadd.f32 %v1715, %v1869
        %v1934 = vadd.f32 %v1716, %v1870
        %v1935 = vadd.f32 %v1717, %v1871
        %v1936 = vadd.f32 %v1718, %v1872
        %v1937 = vadd.f32 %v1719, %v1873
        %v1938 = vadd.f32 %v1720, %v1874
        %v1939 = vadd.f32 %v1721, %v1875
        %v1940 = vadd.f32 %v1722, %v1876
        %v1941 = vadd.f32 %v1723, %v1877
        %v1942 = vadd.f32 %v1724, %v1878
        %v1943 = vadd.f32 %v1725, %v1879
        %v1944 = vadd.f32 %v1726, %v1880
        %v1945 = vadd.f32 %v1727, %v1881
        %v1946 = vadd.f32 %v1728, %v1882
        %v1947 = vadd.f32 %v1729, %v1883
        %v1948 = vadd.f32 %v1730, %v1884
        %v1949 = vadd.f32 %v1731, %v1885
        %v1950 = vadd.f32 %v1732, %v1886
        %v1951 = vadd.f32 %v1733, %v1887
        %v1952 = vadd.f32 %v1734, %v1888
        %v1953 = vadd.f32 %v1735, %v1889
        %v1954 = vadd.f32 %v1736, %v1890
        %v1955 = vadd.f32 %v1737, %v1891
        %v1956 = vadd.f32 %v1738, %v1892
        %v1957 = vadd.f32 %v1739, %v1893
        %v1958 = vadd.f32 %v1740, %v1894
        %v1959 = vadd.f32 %v1741, %v1895
        %v1960 = vadd.f32 %v1742, %v1896
        %v1961 = vadd.f32 %v1743, %v1897
        %v1962 = vadd.f32 %v1744, %v1898
        %v1963 = vadd.f32 %v1745, %v1899
        %v1964 = vadd.f32 %v1746, %v1900
        %v1965 = vadd.f32 %v1747, %v1901
        %v1966 = vadd.f32 %v1748, %v1902
        %v1967 = vadd.f32 %v1749, %v1903
        %v1968 = vadd.f32 %v1750, %v1904
        %v1969 = vadd.f32 %v1751, %v1905
        %v1970 = vadd.f32 %v1752, %v1906
        %v1971 = vadd.f32 %v1753, %v1907
        %v1972 = vadd.f32 %v1754, %v1908
        %v1973 = vadd.f32 %v1755, %v1909
        %v1974 = vadd.f32 %v1756, %v1910
        %v1975 = vadd.f32 %v1757, %v1911
        %v1976 = vadd.f32 %v1758, %v1912
        %v1977 = vadd.f32 %v1759, %v1913
        %v1978 = vpack.c.bf16 %v1915, %v1914
        %v1979 = vpack.c.bf16 %v1917, %v1916
        %v1980 = vpack.c.bf16 %v1919, %v1918
        %v1981 = vpack.c.bf16 %v1921, %v1920
        %v1982 = vpack.c.bf16 %v1923, %v1922
        %v1983 = vpack.c.bf16 %v1925, %v1924
        %v1984 = vpack.c.bf16 %v1927, %v1926
        %v1985 = vpack.c.bf16 %v1929, %v1928
        %v1986 = vpack.c.bf16 %v1931, %v1930
        %v1987 = vpack.c.bf16 %v1933, %v1932
        %v1988 = vpack.c.bf16 %v1935, %v1934
        %v1989 = vpack.c.bf16 %v1937, %v1936
        %v1990 = vpack.c.bf16 %v1939, %v1938
        %v1991 = vpack.c.bf16 %v1941, %v1940
        %v1992 = vpack.c.bf16 %v1943, %v1942
        %v1993 = vpack.c.bf16 %v1945, %v1944
        %v1994 = vpack.c.bf16 %v1947, %v1946
        %v1995 = vpack.c.bf16 %v1949, %v1948
        %v1996 = vpack.c.bf16 %v1951, %v1950
        %v1997 = vpack.c.bf16 %v1953, %v1952
        %v1998 = vpack.c.bf16 %v1955, %v1954
        %v1999 = vpack.c.bf16 %v1957, %v1956
        %v2000 = vpack.c.bf16 %v1959, %v1958
        %v2001 = vpack.c.bf16 %v1961, %v1960
        %v2002 = vpack.c.bf16 %v1963, %v1962
        %v2003 = vpack.c.bf16 %v1965, %v1964
        %v2004 = vpack.c.bf16 %v1967, %v1966
        %v2005 = vpack.c.bf16 %v1969, %v1968
        %v2006 = vpack.c.bf16 %v1971, %v1970
        %v2007 = vpack.c.bf16 %v1973, %v1972
        %v2008 = vpack.c.bf16 %v1975, %v1974
        %v2009 = vpack.c.bf16 %v1977, %v1976
        %v2010 = vld [vmem:[#allocation2] sm:$0xff]
        %v2011 = vld [vmem:[#allocation2 + $0x8] sm:$0xff]
        %v2012 = vld [vmem:[#allocation2 + $0x10] sm:$0xff]
        %v2013 = vld [vmem:[#allocation2 + $0x18] sm:$0xff]
        %v2014 = vld [vmem:[#allocation2 + $0x20] sm:$0xff]
        %v2015 = vld [vmem:[#allocation2 + $0x28] sm:$0xff]
        %v2016 = vld [vmem:[#allocation2 + $0x30] sm:$0xff]
        %v2017 = vld [vmem:[#allocation2 + $0x38] sm:$0xff]
        %v2018 = vld [vmem:[#allocation2 + $0x40] sm:$0xff]
        %v2019 = vld [vmem:[#allocation2 + $0x48] sm:$0xff]
        %v2020 = vld [vmem:[#allocation2 + $0x50] sm:$0xff]
        %v2021 = vld [vmem:[#allocation2 + $0x58] sm:$0xff]
        %v2022 = vld [vmem:[#allocation2 + $0x60] sm:$0xff]
        %v2023 = vld [vmem:[#allocation2 + $0x68] sm:$0xff]
        %v2024 = vld [vmem:[#allocation2 + $0x70] sm:$0xff]
        %v2025 = vld [vmem:[#allocation2 + $0x78] sm:$0xff]
        %v2026 = vld [vmem:[#allocation2 + $0x80] sm:$0xff]
        %v2027 = vld [vmem:[#allocation2 + $0x88] sm:$0xff]
        %v2028 = vld [vmem:[#allocation2 + $0x90] sm:$0xff]
        %v2029 = vld [vmem:[#allocation2 + $0x98] sm:$0xff]
        %v2030 = vld [vmem:[#allocation2 + $0xa0] sm:$0xff]
        %v2031 = vld [vmem:[#allocation2 + $0xa8] sm:$0xff]
        %v2032 = vld [vmem:[#allocation2 + $0xb0] sm:$0xff]
        %v2033 = vld [vmem:[#allocation2 + $0xb8] sm:$0xff]
        %v2034 = vld [vmem:[#allocation2 + $0xc0] sm:$0xff]
        %v2035 = vld [vmem:[#allocation2 + $0xc8] sm:$0xff]
        %v2036 = vld [vmem:[#allocation2 + $0xd0] sm:$0xff]
        %v2037 = vld [vmem:[#allocation2 + $0xd8] sm:$0xff]
        %v2038 = vld [vmem:[#allocation2 + $0xe0] sm:$0xff]
        %v2039 = vld [vmem:[#allocation2 + $0xe8] sm:$0xff]
        %v2040 = vld [vmem:[#allocation2 + $0xf0] sm:$0xff]
        %v2041 = vld [vmem:[#allocation2 + $0xf8] sm:$0xff]
        %v2042 = vld [vmem:[#allocation2 + $0x100] sm:$0xff]
        %v2043 = vld [vmem:[#allocation2 + $0x108] sm:$0xff]
        %v2044 = vld [vmem:[#allocation2 + $0x110] sm:$0xff]
        %v2045 = vld [vmem:[#allocation2 + $0x118] sm:$0xff]
        %v2046 = vld [vmem:[#allocation2 + $0x120] sm:$0xff]
        %v2047 = vld [vmem:[#allocation2 + $0x128] sm:$0xff]
        %v2048 = vld [vmem:[#allocation2 + $0x130] sm:$0xff]
        %v2049 = vld [vmem:[#allocation2 + $0x138] sm:$0xff]
        %v2050 = vld [vmem:[#allocation2 + $0x140] sm:$0xff]
        %v2051 = vld [vmem:[#allocation2 + $0x148] sm:$0xff]
        %v2052 = vld [vmem:[#allocation2 + $0x150] sm:$0xff]
        %v2053 = vld [vmem:[#allocation2 + $0x158] sm:$0xff]
        %v2054 = vld [vmem:[#allocation2 + $0x160] sm:$0xff]
        %v2055 = vld [vmem:[#allocation2 + $0x168] sm:$0xff]
        %v2056 = vld [vmem:[#allocation2 + $0x170] sm:$0xff]
        %v2057 = vld [vmem:[#allocation2 + $0x178] sm:$0xff]
        %v2058 = vld [vmem:[#allocation2 + $0x180] sm:$0xff]
        %v2059 = vld [vmem:[#allocation2 + $0x188] sm:$0xff]
        %v2060 = vld [vmem:[#allocation2 + $0x190] sm:$0xff]
        %v2061 = vld [vmem:[#allocation2 + $0x198] sm:$0xff]
        %v2062 = vld [vmem:[#allocation2 + $0x1a0] sm:$0xff]
        %v2063 = vld [vmem:[#allocation2 + $0x1a8] sm:$0xff]
        %v2064 = vld [vmem:[#allocation2 + $0x1b0] sm:$0xff]
        %v2065 = vld [vmem:[#allocation2 + $0x1b8] sm:$0xff]
        %v2066 = vld [vmem:[#allocation2 + $0x1c0] sm:$0xff]
        %v2067 = vld [vmem:[#allocation2 + $0x1c8] sm:$0xff]
        %v2068 = vld [vmem:[#allocation2 + $0x1d0] sm:$0xff]
        %v2069 = vld [vmem:[#allocation2 + $0x1d8] sm:$0xff]
        %v2070 = vld [vmem:[#allocation2 + $0x1e0] sm:$0xff]
        %v2071 = vld [vmem:[#allocation2 + $0x1e8] sm:$0xff]
        %v2072 = vld [vmem:[#allocation2 + $0x1f0] sm:$0xff]
        %v2073 = vld [vmem:[#allocation2 + $0x1f8] sm:$0xff]
        %v2074 = vld [vmem:[%s450] sm:$0xf]
        %v2075 = vld [vmem:[%s450 + $0x4] sm:$0xf]
        %v2076 = vld [vmem:[%s450 + $0x8] sm:$0xf]
        %v2077 = vld [vmem:[%s450 + $0xc] sm:$0xf]
        %v2078 = vld [vmem:[%s450 + $0x10] sm:$0xf]
        %v2079 = vld [vmem:[%s450 + $0x14] sm:$0xf]
        %v2080 = vld [vmem:[%s450 + $0x18] sm:$0xf]
        %v2081 = vld [vmem:[%s450 + $0x1c] sm:$0xf]
        %v2082 = vld [vmem:[%s450 + $0x20] sm:$0xf]
        %v2083 = vld [vmem:[%s450 + $0x24] sm:$0xf]
        %v2084 = vld [vmem:[%s450 + $0x28] sm:$0xf]
        %v2085 = vld [vmem:[%s450 + $0x2c] sm:$0xf]
        %v2086 = vld [vmem:[%s450 + $0x30] sm:$0xf]
        %v2087 = vld [vmem:[%s450 + $0x34] sm:$0xf]
        %v2088 = vld [vmem:[%s450 + $0x38] sm:$0xf]
        %v2089 = vld [vmem:[%s450 + $0x3c] sm:$0xf]
        %v2106 = vunpack.c.l.b16 %v2074
        %v2107 = vunpack.c.l.b16 %v2075
        %v2108 = vunpack.c.l.b16 %v2076
        %v2109 = vunpack.c.l.b16 %v2077
        %v2110 = vunpack.c.l.b16 %v2078
        %v2111 = vunpack.c.l.b16 %v2079
        %v2112 = vunpack.c.l.b16 %v2080
        %v2113 = vunpack.c.l.b16 %v2081
        %v2114 = vunpack.c.l.b16 %v2082
        %v2115 = vunpack.c.l.b16 %v2083
        %v2116 = vunpack.c.l.b16 %v2084
        %v2117 = vunpack.c.l.b16 %v2085
        %v2118 = vunpack.c.l.b16 %v2086
        %v2119 = vunpack.c.l.b16 %v2087
        %v2120 = vunpack.c.l.b16 %v2088
        %v2121 = vunpack.c.l.b16 %v2089
        %v2122 = vpack.c.b16 %v2107, %v2106
        %v2123 = vpack.c.b16 %v2109, %v2108
        %v2124 = vpack.c.b16 %v2111, %v2110
        %v2125 = vpack.c.b16 %v2113, %v2112
        %v2126 = vpack.c.b16 %v2115, %v2114
        %v2127 = vpack.c.b16 %v2117, %v2116
        %v2128 = vpack.c.b16 %v2119, %v2118
        %v2129 = vpack.c.b16 %v2121, %v2120
        %2138 = vmatprep.subr.bf16.mxu0 0
        %2139 = vmatpush1.bf16.msra.mxu0 %v2122
        %2140 = vmatprep.subr.bf16.mxu0 0
        %2141 = vmatpush1.bf16.msra.mxu0 %v2123
        %2142 = vmatprep.subr.bf16.mxu0 0
        %2143 = vmatpush1.bf16.msra.mxu0 %v2124
        %2144 = vmatprep.subr.bf16.mxu0 0
        %2145 = vmatpush1.bf16.msra.mxu0 %v2125
        %2146 = vmatprep.subr.bf16.mxu0 0
        %2147 = vmatpush1.bf16.msra.mxu0 %v2126
        %2148 = vmatprep.subr.bf16.mxu0 0
        %2149 = vmatpush1.bf16.msra.mxu0 %v2127
        %2150 = vmatprep.subr.bf16.mxu0 0
        %2151 = vmatpush1.bf16.msra.mxu0 %v2128
        %2152 = vmatprep.subr.bf16.mxu0 0
        %2153 = vmatpush1.bf16.msra.mxu0 %v2129
        %2154 = vmatprep.subr.bf16.mxu0 0
        %2155 = vmatpush1.bf16.msra.mxu0 0
        %2156 = vmatprep.subr.bf16.mxu0 0
        %2157 = vmatpush1.bf16.msra.mxu0 0
        %2158 = vmatprep.subr.bf16.mxu0 0
        %2159 = vmatpush1.bf16.msra.mxu0 0
        %2160 = vmatprep.subr.bf16.mxu0 0
        %2161 = vmatpush1.bf16.msra.mxu0 0
        %2162 = vmatprep.subr.bf16.mxu0 0
        %2163 = vmatpush1.bf16.msra.mxu0 0
        %2164 = vmatprep.subr.bf16.mxu0 0
        %2165 = vmatpush1.bf16.msra.mxu0 0
        %2166 = vmatprep.subr.bf16.mxu0 0
        %2167 = vmatpush1.bf16.msra.mxu0 0
        %2168 = vmatprep.subr.bf16.mxu0 0
        %2169 = vmatpush1.bf16.msra.mxu0 0
        %2170 = vmatprep.mubr.bf16.mxu0 0
        %2171 = vmatmul.mubr.bf16.gmra.mrb[0].mxu0 %v1978
        %v2172 = vpop.f32.mrb[0].mxu0
        %v2173 = vadd.f32 0.0, %v2172
        %v2174 = vpop.f32.mrb[0].mxu0
        %v2175 = vpop.f32.mrb[0].mxu0
        %v2176 = vadd.f32 0.0, %v2175
        %v2177 = vpop.f32.mrb[0].mxu0
        %2178 = vmatprep.mubr.bf16.mxu0 0
        %2179 = vmatmul.mubr.bf16.gmra.mrb[0].mxu0 %v1979
        %v2180 = vpop.f32.mrb[0].mxu0
        %v2181 = vadd.f32 0.0, %v2180
        %v2182 = vpop.f32.mrb[0].mxu0
        %v2183 = vpop.f32.mrb[0].mxu0
        %v2184 = vadd.f32 0.0, %v2183
        %v2185 = vpop.f32.mrb[0].mxu0
        %2186 = vmatprep.mubr.bf16.mxu0 0
        %2187 = vmatmul.mubr.bf16.gmra.mrb[0].mxu0 %v1980
        %v2188 = vpop.f32.mrb[0].mxu0
        %v2189 = vadd.f32 0.0, %v2188
        %v2190 = vpop.f32.mrb[0].mxu0
        %v2191 = vpop.f32.mrb[0].mxu0
        %v2192 = vadd.f32 0.0, %v2191
        %v2193 = vpop.f32.mrb[0].mxu0
        %2194 = vmatprep.mubr.bf16.mxu0 0
        %2195 = vmatmul.mubr.bf16.gmra.mrb[0].mxu0 %v1981
        %v2196 = vpop.f32.mrb[0].mxu0
        %v2197 = vadd.f32 0.0, %v2196
        %v2198 = vpop.f32.mrb[0].mxu0
        %v2199 = vpop.f32.mrb[0].mxu0
        %v2200 = vadd.f32 0.0, %v2199
        %v2201 = vpop.f32.mrb[0].mxu0
        %2202 = vmatprep.mubr.bf16.mxu0 0
        %2203 = vmatmul.mubr.bf16.gmra.mrb[0].mxu0 %v1982
        %v2204 = vpop.f32.mrb[0].mxu0
        %v2205 = vadd.f32 0.0, %v2204
        %v2206 = vpop.f32.mrb[0].mxu0
        %v2207 = vpop.f32.mrb[0].mxu0
        %v2208 = vadd.f32 0.0, %v2207
        %v2209 = vpop.f32.mrb[0].mxu0
        %2210 = vmatprep.mubr.bf16.mxu0 0
        %2211 = vmatmul.mubr.bf16.gmra.mrb[0].mxu0 %v1983
        %v2212 = vpop.f32.mrb[0].mxu0
        %v2213 = vadd.f32 0.0, %v2212
        %v2214 = vpop.f32.mrb[0].mxu0
        %v2215 = vpop.f32.mrb[0].mxu0
        %v2216 = vadd.f32 0.0, %v2215
        %v2217 = vpop.f32.mrb[0].mxu0
        %2218 = vmatprep.mubr.bf16.mxu0 0
        %2219 = vmatmul.mubr.bf16.gmra.mrb[0].mxu0 %v1984
        %v2220 = vpop.f32.mrb[0].mxu0
        %v2221 = vadd.f32 0.0, %v2220
        %v2222 = vpop.f32.mrb[0].mxu0
        %v2223 = vpop.f32.mrb[0].mxu0
        %v2224 = vadd.f32 0.0, %v2223
        %v2225 = vpop.f32.mrb[0].mxu0
        %2226 = vmatprep.mubr.bf16.mxu0 0
        %2227 = vmatmul.mubr.bf16.gmra.mrb[0].mxu0 %v1985
        %v2228 = vpop.f32.mrb[0].mxu0
        %v2229 = vadd.f32 0.0, %v2228
        %v2230 = vpop.f32.mrb[0].mxu0
        %v2231 = vpop.f32.mrb[0].mxu0
        %v2232 = vadd.f32 0.0, %v2231
        %v2233 = vpop.f32.mrb[0].mxu0
        %2234 = vmatprep.mubr.bf16.mxu0 0
        %2235 = vmatmul.mubr.bf16.gmra.mrb[0].mxu0 %v1986
        %v2236 = vpop.f32.mrb[0].mxu0
        %v2237 = vadd.f32 0.0, %v2236
        %v2238 = vpop.f32.mrb[0].mxu0
        %v2239 = vpop.f32.mrb[0].mxu0
        %v2240 = vadd.f32 0.0, %v2239
        %v2241 = vpop.f32.mrb[0].mxu0
        %2242 = vmatprep.mubr.bf16.mxu0 0
        %2243 = vmatmul.mubr.bf16.gmra.mrb[0].mxu0 %v1987
        %v2244 = vpop.f32.mrb[0].mxu0
        %v2245 = vadd.f32 0.0, %v2244
        %v2246 = vpop.f32.mrb[0].mxu0
        %v2247 = vpop.f32.mrb[0].mxu0
        %v2248 = vadd.f32 0.0, %v2247
        %v2249 = vpop.f32.mrb[0].mxu0
        %2250 = vmatprep.mubr.bf16.mxu0 0
        %2251 = vmatmul.mubr.bf16.gmra.mrb[0].mxu0 %v1988
        %v2252 = vpop.f32.mrb[0].mxu0
        %v2253 = vadd.f32 0.0, %v2252
        %v2254 = vpop.f32.mrb[0].mxu0
        %v2255 = vpop.f32.mrb[0].mxu0
        %v2256 = vadd.f32 0.0, %v2255
        %v2257 = vpop.f32.mrb[0].mxu0
        %2258 = vmatprep.mubr.bf16.mxu0 0
        %2259 = vmatmul.mubr.bf16.gmra.mrb[0].mxu0 %v1989
        %v2260 = vpop.f32.mrb[0].mxu0
        %v2261 = vadd.f32 0.0, %v2260
        %v2262 = vpop.f32.mrb[0].mxu0
        %v2263 = vpop.f32.mrb[0].mxu0
        %v2264 = vadd.f32 0.0, %v2263
        %v2265 = vpop.f32.mrb[0].mxu0
        %2266 = vmatprep.mubr.bf16.mxu0 0
        %2267 = vmatmul.mubr.bf16.gmra.mrb[0].mxu0 %v1990
        %v2268 = vpop.f32.mrb[0].mxu0
        %v2269 = vadd.f32 0.0, %v2268
        %v2270 = vpop.f32.mrb[0].mxu0
        %v2271 = vpop.f32.mrb[0].mxu0
        %v2272 = vadd.f32 0.0, %v2271
        %v2273 = vpop.f32.mrb[0].mxu0
        %2274 = vmatprep.mubr.bf16.mxu0 0
        %2275 = vmatmul.mubr.bf16.gmra.mrb[0].mxu0 %v1991
        %v2276 = vpop.f32.mrb[0].mxu0
        %v2277 = vadd.f32 0.0, %v2276
        %v2278 = vpop.f32.mrb[0].mxu0
        %v2279 = vpop.f32.mrb[0].mxu0
        %v2280 = vadd.f32 0.0, %v2279
        %v2281 = vpop.f32.mrb[0].mxu0
        %2282 = vmatprep.mubr.bf16.mxu0 0
        %2283 = vmatmul.mubr.bf16.gmra.mrb[0].mxu0 %v1992
        %v2284 = vpop.f32.mrb[0].mxu0
        %v2285 = vadd.f32 0.0, %v2284
        %v2286 = vpop.f32.mrb[0].mxu0
        %v2287 = vpop.f32.mrb[0].mxu0
        %v2288 = vadd.f32 0.0, %v2287
        %v2289 = vpop.f32.mrb[0].mxu0
        %2290 = vmatprep.mubr.bf16.mxu0 0
        %2291 = vmatmul.mubr.bf16.gmra.mrb[0].mxu0 %v1993
        %v2292 = vpop.f32.mrb[0].mxu0
        %v2293 = vadd.f32 0.0, %v2292
        %v2294 = vpop.f32.mrb[0].mxu0
        %v2295 = vpop.f32.mrb[0].mxu0
        %v2296 = vadd.f32 0.0, %v2295
        %v2297 = vpop.f32.mrb[0].mxu0
        %2298 = vmatprep.mubr.bf16.mxu0 0
        %2299 = vmatmul.mubr.bf16.gmra.mrb[0].mxu0 %v1994
        %v2300 = vpop.f32.mrb[0].mxu0
        %v2301 = vadd.f32 0.0, %v2300
        %v2302 = vpop.f32.mrb[0].mxu0
        %v2303 = vpop.f32.mrb[0].mxu0
        %v2304 = vadd.f32 0.0, %v2303
        %v2305 = vpop.f32.mrb[0].mxu0
        %2306 = vmatprep.mubr.bf16.mxu0 0
        %2307 = vmatmul.mubr.bf16.gmra.mrb[0].mxu0 %v1995
        %v2308 = vpop.f32.mrb[0].mxu0
        %v2309 = vadd.f32 0.0, %v2308
        %v2310 = vpop.f32.mrb[0].mxu0
        %v2311 = vpop.f32.mrb[0].mxu0
        %v2312 = vadd.f32 0.0, %v2311
        %v2313 = vpop.f32.mrb[0].mxu0
        %2314 = vmatprep.mubr.bf16.mxu0 0
        %2315 = vmatmul.mubr.bf16.gmra.mrb[0].mxu0 %v1996
        %v2316 = vpop.f32.mrb[0].mxu0
        %v2317 = vadd.f32 0.0, %v2316
        %v2318 = vpop.f32.mrb[0].mxu0
        %v2319 = vpop.f32.mrb[0].mxu0
        %v2320 = vadd.f32 0.0, %v2319
        %v2321 = vpop.f32.mrb[0].mxu0
        %2322 = vmatprep.mubr.bf16.mxu0 0
        %2323 = vmatmul.mubr.bf16.gmra.mrb[0].mxu0 %v1997
        %v2324 = vpop.f32.mrb[0].mxu0
        %v2325 = vadd.f32 0.0, %v2324
        %v2326 = vpop.f32.mrb[0].mxu0
        %v2327 = vpop.f32.mrb[0].mxu0
        %v2328 = vadd.f32 0.0, %v2327
        %v2329 = vpop.f32.mrb[0].mxu0
        %2330 = vmatprep.mubr.bf16.mxu0 0
        %2331 = vmatmul.mubr.bf16.gmra.mrb[0].mxu0 %v1998
        %v2332 = vpop.f32.mrb[0].mxu0
        %v2333 = vadd.f32 0.0, %v2332
        %v2334 = vpop.f32.mrb[0].mxu0
        %v2335 = vpop.f32.mrb[0].mxu0
        %v2336 = vadd.f32 0.0, %v2335
        %v2337 = vpop.f32.mrb[0].mxu0
        %2338 = vmatprep.mubr.bf16.mxu0 0
        %2339 = vmatmul.mubr.bf16.gmra.mrb[0].mxu0 %v1999
        %v2340 = vpop.f32.mrb[0].mxu0
        %v2341 = vadd.f32 0.0, %v2340
        %v2342 = vpop.f32.mrb[0].mxu0
        %v2343 = vpop.f32.mrb[0].mxu0
        %v2344 = vadd.f32 0.0, %v2343
        %v2345 = vpop.f32.mrb[0].mxu0
        %2346 = vmatprep.mubr.bf16.mxu0 0
        %2347 = vmatmul.mubr.bf16.gmra.mrb[0].mxu0 %v2000
        %v2348 = vpop.f32.mrb[0].mxu0
        %v2349 = vadd.f32 0.0, %v2348
        %v2350 = vpop.f32.mrb[0].mxu0
        %v2351 = vpop.f32.mrb[0].mxu0
        %v2352 = vadd.f32 0.0, %v2351
        %v2353 = vpop.f32.mrb[0].mxu0
        %2354 = vmatprep.mubr.bf16.mxu0 0
        %2355 = vmatmul.mubr.bf16.gmra.mrb[0].mxu0 %v2001
        %v2356 = vpop.f32.mrb[0].mxu0
        %v2357 = vadd.f32 0.0, %v2356
        %v2358 = vpop.f32.mrb[0].mxu0
        %v2359 = vpop.f32.mrb[0].mxu0
        %v2360 = vadd.f32 0.0, %v2359
        %v2361 = vpop.f32.mrb[0].mxu0
        %2362 = vmatprep.mubr.bf16.mxu0 0
        %2363 = vmatmul.mubr.bf16.gmra.mrb[0].mxu0 %v2002
        %v2364 = vpop.f32.mrb[0].mxu0
        %v2365 = vadd.f32 0.0, %v2364
        %v2366 = vpop.f32.mrb[0].mxu0
        %v2367 = vpop.f32.mrb[0].mxu0
        %v2368 = vadd.f32 0.0, %v2367
        %v2369 = vpop.f32.mrb[0].mxu0
        %2370 = vmatprep.mubr.bf16.mxu0 0
        %2371 = vmatmul.mubr.bf16.gmra.mrb[0].mxu0 %v2003
        %v2372 = vpop.f32.mrb[0].mxu0
        %v2373 = vadd.f32 0.0, %v2372
        %v2374 = vpop.f32.mrb[0].mxu0
        %v2375 = vpop.f32.mrb[0].mxu0
        %v2376 = vadd.f32 0.0, %v2375
        %v2377 = vpop.f32.mrb[0].mxu0
        %2378 = vmatprep.mubr.bf16.mxu0 0
        %2379 = vmatmul.mubr.bf16.gmra.mrb[0].mxu0 %v2004
        %v2380 = vpop.f32.mrb[0].mxu0
        %v2381 = vadd.f32 0.0, %v2380
        %v2382 = vpop.f32.mrb[0].mxu0
        %v2383 = vpop.f32.mrb[0].mxu0
        %v2384 = vadd.f32 0.0, %v2383
        %v2385 = vpop.f32.mrb[0].mxu0
        %2386 = vmatprep.mubr.bf16.mxu0 0
        %2387 = vmatmul.mubr.bf16.gmra.mrb[0].mxu0 %v2005
        %v2388 = vpop.f32.mrb[0].mxu0
        %v2389 = vadd.f32 0.0, %v2388
        %v2390 = vpop.f32.mrb[0].mxu0
        %v2391 = vpop.f32.mrb[0].mxu0
        %v2392 = vadd.f32 0.0, %v2391
        %v2393 = vpop.f32.mrb[0].mxu0
        %2394 = vmatprep.mubr.bf16.mxu0 0
        %2395 = vmatmul.mubr.bf16.gmra.mrb[0].mxu0 %v2006
        %v2396 = vpop.f32.mrb[0].mxu0
        %v2397 = vadd.f32 0.0, %v2396
        %v2398 = vpop.f32.mrb[0].mxu0
        %v2399 = vpop.f32.mrb[0].mxu0
        %v2400 = vadd.f32 0.0, %v2399
        %v2401 = vpop.f32.mrb[0].mxu0
        %2402 = vmatprep.mubr.bf16.mxu0 0
        %2403 = vmatmul.mubr.bf16.gmra.mrb[0].mxu0 %v2007
        %v2404 = vpop.f32.mrb[0].mxu0
        %v2405 = vadd.f32 0.0, %v2404
        %v2406 = vpop.f32.mrb[0].mxu0
        %v2407 = vpop.f32.mrb[0].mxu0
        %v2408 = vadd.f32 0.0, %v2407
        %v2409 = vpop.f32.mrb[0].mxu0
        %2410 = vmatprep.mubr.bf16.mxu0 0
        %2411 = vmatmul.mubr.bf16.gmra.mrb[0].mxu0 %v2008
        %v2412 = vpop.f32.mrb[0].mxu0
        %v2413 = vadd.f32 0.0, %v2412
        %v2414 = vpop.f32.mrb[0].mxu0
        %v2415 = vpop.f32.mrb[0].mxu0
        %v2416 = vadd.f32 0.0, %v2415
        %v2417 = vpop.f32.mrb[0].mxu0
        %2418 = vmatprep.mubr.bf16.mxu0 0
        %2419 = vmatmul.mubr.bf16.gmra.mrb[0].mxu0 %v2009
        %v2420 = vpop.f32.mrb[0].mxu0
        %v2421 = vadd.f32 0.0, %v2420
        %v2422 = vpop.f32.mrb[0].mxu0
        %v2423 = vpop.f32.mrb[0].mxu0
        %v2424 = vadd.f32 0.0, %v2423
        %v2425 = vpop.f32.mrb[0].mxu0
        %2426 = vdwg.mxu0
        %v2427 = vadd.f32 %v2010, %v2173
        %v2428 = vadd.f32 %v2011, %v2176
        %v2429 = vadd.f32 %v2012, %v2181
        %v2430 = vadd.f32 %v2013, %v2184
        %v2431 = vadd.f32 %v2014, %v2189
        %v2432 = vadd.f32 %v2015, %v2192
        %v2433 = vadd.f32 %v2016, %v2197
        %v2434 = vadd.f32 %v2017, %v2200
        %v2435 = vadd.f32 %v2018, %v2205
        %v2436 = vadd.f32 %v2019, %v2208
        %v2437 = vadd.f32 %v2020, %v2213
        %v2438 = vadd.f32 %v2021, %v2216
        %v2439 = vadd.f32 %v2022, %v2221
        %v2440 = vadd.f32 %v2023, %v2224
        %v2441 = vadd.f32 %v2024, %v2229
        %v2442 = vadd.f32 %v2025, %v2232
        %v2443 = vadd.f32 %v2026, %v2237
        %v2444 = vadd.f32 %v2027, %v2240
        %v2445 = vadd.f32 %v2028, %v2245
        %v2446 = vadd.f32 %v2029, %v2248
        %v2447 = vadd.f32 %v2030, %v2253
        %v2448 = vadd.f32 %v2031, %v2256
        %v2449 = vadd.f32 %v2032, %v2261
        %v2450 = vadd.f32 %v2033, %v2264
        %v2451 = vadd.f32 %v2034, %v2269
        %v2452 = vadd.f32 %v2035, %v2272
        %v2453 = vadd.f32 %v2036, %v2277
        %v2454 = vadd.f32 %v2037, %v2280
        %v2455 = vadd.f32 %v2038, %v2285
        %v2456 = vadd.f32 %v2039, %v2288
        %v2457 = vadd.f32 %v2040, %v2293
        %v2458 = vadd.f32 %v2041, %v2296
        %v2459 = vadd.f32 %v2042, %v2301
        %v2460 = vadd.f32 %v2043, %v2304
        %v2461 = vadd.f32 %v2044, %v2309
        %v2462 = vadd.f32 %v2045, %v2312
        %v2463 = vadd.f32 %v2046, %v2317
        %v2464 = vadd.f32 %v2047, %v2320
        %v2465 = vadd.f32 %v2048, %v2325
        %v2466 = vadd.f32 %v2049, %v2328
        %v2467 = vadd.f32 %v2050, %v2333
        %v2468 = vadd.f32 %v2051, %v2336
        %v2469 = vadd.f32 %v2052, %v2341
        %v2470 = vadd.f32 %v2053, %v2344
        %v2471 = vadd.f32 %v2054, %v2349
        %v2472 = vadd.f32 %v2055, %v2352
        %v2473 = vadd.f32 %v2056, %v2357
        %v2474 = vadd.f32 %v2057, %v2360
        %v2475 = vadd.f32 %v2058, %v2365
        %v2476 = vadd.f32 %v2059, %v2368
        %v2477 = vadd.f32 %v2060, %v2373
        %v2478 = vadd.f32 %v2061, %v2376
        %v2479 = vadd.f32 %v2062, %v2381
        %v2480 = vadd.f32 %v2063, %v2384
        %v2481 = vadd.f32 %v2064, %v2389
        %v2482 = vadd.f32 %v2065, %v2392
        %v2483 = vadd.f32 %v2066, %v2397
        %v2484 = vadd.f32 %v2067, %v2400
        %v2485 = vadd.f32 %v2068, %v2405
        %v2486 = vadd.f32 %v2069, %v2408
        %v2487 = vadd.f32 %v2070, %v2413
        %v2488 = vadd.f32 %v2071, %v2416
        %v2489 = vadd.f32 %v2072, %v2421
        %v2490 = vadd.f32 %v2073, %v2424
        %vm2491 = vcmask 130048
        %2492 = vst.msk [vmem:[#allocation2] sm:$0xff] %vm2491, %v2427
        %2493 = vst.msk [vmem:[#allocation2 + $0x8] sm:$0xff] %vm2491, %v2428
        %2494 = vst.msk [vmem:[#allocation2 + $0x10] sm:$0xff] %vm2491, %v2429
        %2495 = vst.msk [vmem:[#allocation2 + $0x18] sm:$0xff] %vm2491, %v2430
        %2496 = vst.msk [vmem:[#allocation2 + $0x20] sm:$0xff] %vm2491, %v2431
        %2497 = vst.msk [vmem:[#allocation2 + $0x28] sm:$0xff] %vm2491, %v2432
        %2498 = vst.msk [vmem:[#allocation2 + $0x30] sm:$0xff] %vm2491, %v2433
        %2499 = vst.msk [vmem:[#allocation2 + $0x38] sm:$0xff] %vm2491, %v2434
        %2500 = vst.msk [vmem:[#allocation2 + $0x40] sm:$0xff] %vm2491, %v2435
        %2501 = vst.msk [vmem:[#allocation2 + $0x48] sm:$0xff] %vm2491, %v2436
        %2502 = vst.msk [vmem:[#allocation2 + $0x50] sm:$0xff] %vm2491, %v2437
        %2503 = vst.msk [vmem:[#allocation2 + $0x58] sm:$0xff] %vm2491, %v2438
        %2504 = vst.msk [vmem:[#allocation2 + $0x60] sm:$0xff] %vm2491, %v2439
        %2505 = vst.msk [vmem:[#allocation2 + $0x68] sm:$0xff] %vm2491, %v2440
        %2506 = vst.msk [vmem:[#allocation2 + $0x70] sm:$0xff] %vm2491, %v2441
        %2507 = vst.msk [vmem:[#allocation2 + $0x78] sm:$0xff] %vm2491, %v2442
        %2508 = vst.msk [vmem:[#allocation2 + $0x80] sm:$0xff] %vm2491, %v2443
        %2509 = vst.msk [vmem:[#allocation2 + $0x88] sm:$0xff] %vm2491, %v2444
        %2510 = vst.msk [vmem:[#allocation2 + $0x90] sm:$0xff] %vm2491, %v2445
        %2511 = vst.msk [vmem:[#allocation2 + $0x98] sm:$0xff] %vm2491, %v2446
        %2512 = vst.msk [vmem:[#allocation2 + $0xa0] sm:$0xff] %vm2491, %v2447
        %2513 = vst.msk [vmem:[#allocation2 + $0xa8] sm:$0xff] %vm2491, %v2448
        %2514 = vst.msk [vmem:[#allocation2 + $0xb0] sm:$0xff] %vm2491, %v2449
        %2515 = vst.msk [vmem:[#allocation2 + $0xb8] sm:$0xff] %vm2491, %v2450
        %2516 = vst.msk [vmem:[#allocation2 + $0xc0] sm:$0xff] %vm2491, %v2451
        %2517 = vst.msk [vmem:[#allocation2 + $0xc8] sm:$0xff] %vm2491, %v2452
        %2518 = vst.msk [vmem:[#allocation2 + $0xd0] sm:$0xff] %vm2491, %v2453
        %2519 = vst.msk [vmem:[#allocation2 + $0xd8] sm:$0xff] %vm2491, %v2454
        %2520 = vst.msk [vmem:[#allocation2 + $0xe0] sm:$0xff] %vm2491, %v2455
        %2521 = vst.msk [vmem:[#allocation2 + $0xe8] sm:$0xff] %vm2491, %v2456
        %2522 = vst.msk [vmem:[#allocation2 + $0xf0] sm:$0xff] %vm2491, %v2457
        %2523 = vst.msk [vmem:[#allocation2 + $0xf8] sm:$0xff] %vm2491, %v2458
        %2524 = vst.msk [vmem:[#allocation2 + $0x100] sm:$0xff] %vm2491, %v2459
        %2525 = vst.msk [vmem:[#allocation2 + $0x108] sm:$0xff] %vm2491, %v2460
        %2526 = vst.msk [vmem:[#allocation2 + $0x110] sm:$0xff] %vm2491, %v2461
        %2527 = vst.msk [vmem:[#allocation2 + $0x118] sm:$0xff] %vm2491, %v2462
        %2528 = vst.msk [vmem:[#allocation2 + $0x120] sm:$0xff] %vm2491, %v2463
        %2529 = vst.msk [vmem:[#allocation2 + $0x128] sm:$0xff] %vm2491, %v2464
        %2530 = vst.msk [vmem:[#allocation2 + $0x130] sm:$0xff] %vm2491, %v2465
        %2531 = vst.msk [vmem:[#allocation2 + $0x138] sm:$0xff] %vm2491, %v2466
        %2532 = vst.msk [vmem:[#allocation2 + $0x140] sm:$0xff] %vm2491, %v2467
        %2533 = vst.msk [vmem:[#allocation2 + $0x148] sm:$0xff] %vm2491, %v2468
        %2534 = vst.msk [vmem:[#allocation2 + $0x150] sm:$0xff] %vm2491, %v2469
        %2535 = vst.msk [vmem:[#allocation2 + $0x158] sm:$0xff] %vm2491, %v2470
        %2536 = vst.msk [vmem:[#allocation2 + $0x160] sm:$0xff] %vm2491, %v2471
        %2537 = vst.msk [vmem:[#allocation2 + $0x168] sm:$0xff] %vm2491, %v2472
        %2538 = vst.msk [vmem:[#allocation2 + $0x170] sm:$0xff] %vm2491, %v2473
        %2539 = vst.msk [vmem:[#allocation2 + $0x178] sm:$0xff] %vm2491, %v2474
        %2540 = vst.msk [vmem:[#allocation2 + $0x180] sm:$0xff] %vm2491, %v2475
        %2541 = vst.msk [vmem:[#allocation2 + $0x188] sm:$0xff] %vm2491, %v2476
        %2542 = vst.msk [vmem:[#allocation2 + $0x190] sm:$0xff] %vm2491, %v2477
        %2543 = vst.msk [vmem:[#allocation2 + $0x198] sm:$0xff] %vm2491, %v2478
        %2544 = vst.msk [vmem:[#allocation2 + $0x1a0] sm:$0xff] %vm2491, %v2479
        %2545 = vst.msk [vmem:[#allocation2 + $0x1a8] sm:$0xff] %vm2491, %v2480
        %2546 = vst.msk [vmem:[#allocation2 + $0x1b0] sm:$0xff] %vm2491, %v2481
        %2547 = vst.msk [vmem:[#allocation2 + $0x1b8] sm:$0xff] %vm2491, %v2482
        %2548 = vst.msk [vmem:[#allocation2 + $0x1c0] sm:$0xff] %vm2491, %v2483
        %2549 = vst.msk [vmem:[#allocation2 + $0x1c8] sm:$0xff] %vm2491, %v2484
        %2550 = vst.msk [vmem:[#allocation2 + $0x1d0] sm:$0xff] %vm2491, %v2485
        %2551 = vst.msk [vmem:[#allocation2 + $0x1d8] sm:$0xff] %vm2491, %v2486
        %2552 = vst.msk [vmem:[#allocation2 + $0x1e0] sm:$0xff] %vm2491, %v2487
        %2553 = vst.msk [vmem:[#allocation2 + $0x1e8] sm:$0xff] %vm2491, %v2488
        %2554 = vst.msk [vmem:[#allocation2 + $0x1f0] sm:$0xff] %vm2491, %v2489
        %2555 = vst.msk [vmem:[#allocation2 + $0x1f8] sm:$0xff] %vm2491, %v2490
        %v2556 = vld [vmem:[#allocation3] sm:$0xff]
        %v2557 = vld [vmem:[#allocation3 + $0x8] sm:$0xff]
        %v2558 = vld [vmem:[#allocation3 + $0x10] sm:$0xff]
        %v2559 = vld [vmem:[#allocation3 + $0x18] sm:$0xff]
        %v2560 = vld [vmem:[#allocation3 + $0x20] sm:$0xff]
        %v2561 = vld [vmem:[#allocation3 + $0x28] sm:$0xff]
        %v2562 = vld [vmem:[#allocation3 + $0x30] sm:$0xff]
        %v2563 = vld [vmem:[#allocation3 + $0x38] sm:$0xff]
        %v2564 = vld [vmem:[#allocation3 + $0x40] sm:$0xff]
        %v2565 = vld [vmem:[#allocation3 + $0x48] sm:$0xff]
        %v2566 = vld [vmem:[#allocation3 + $0x50] sm:$0xff]
        %v2567 = vld [vmem:[#allocation3 + $0x58] sm:$0xff]
        %v2568 = vld [vmem:[#allocation3 + $0x60] sm:$0xff]
        %v2569 = vld [vmem:[#allocation3 + $0x68] sm:$0xff]
        %v2570 = vld [vmem:[#allocation3 + $0x70] sm:$0xff]
        %v2571 = vld [vmem:[#allocation3 + $0x78] sm:$0xff]
        %v2572 = vld [vmem:[#allocation3 + $0x80] sm:$0xff]
        %v2573 = vld [vmem:[#allocation3 + $0x88] sm:$0xff]
        %v2574 = vld [vmem:[#allocation3 + $0x90] sm:$0xff]
        %v2575 = vld [vmem:[#allocation3 + $0x98] sm:$0xff]
        %v2576 = vld [vmem:[#allocation3 + $0xa0] sm:$0xff]
        %v2577 = vld [vmem:[#allocation3 + $0xa8] sm:$0xff]
        %v2578 = vld [vmem:[#allocation3 + $0xb0] sm:$0xff]
        %v2579 = vld [vmem:[#allocation3 + $0xb8] sm:$0xff]
        %v2580 = vld [vmem:[#allocation3 + $0xc0] sm:$0xff]
        %v2581 = vld [vmem:[#allocation3 + $0xc8] sm:$0xff]
        %v2582 = vld [vmem:[#allocation3 + $0xd0] sm:$0xff]
        %v2583 = vld [vmem:[#allocation3 + $0xd8] sm:$0xff]
        %v2584 = vld [vmem:[#allocation3 + $0xe0] sm:$0xff]
        %v2585 = vld [vmem:[#allocation3 + $0xe8] sm:$0xff]
        %v2586 = vld [vmem:[#allocation3 + $0xf0] sm:$0xff]
        %v2587 = vld [vmem:[#allocation3 + $0xf8] sm:$0xff]
        %v2588 = vld [vmem:[#allocation3 + $0x100] sm:$0xff]
        %v2589 = vld [vmem:[#allocation3 + $0x108] sm:$0xff]
        %v2590 = vld [vmem:[#allocation3 + $0x110] sm:$0xff]
        %v2591 = vld [vmem:[#allocation3 + $0x118] sm:$0xff]
        %v2592 = vld [vmem:[#allocation3 + $0x120] sm:$0xff]
        %v2593 = vld [vmem:[#allocation3 + $0x128] sm:$0xff]
        %v2594 = vld [vmem:[#allocation3 + $0x130] sm:$0xff]
        %v2595 = vld [vmem:[#allocation3 + $0x138] sm:$0xff]
        %v2596 = vld [vmem:[#allocation3 + $0x140] sm:$0xff]
        %v2597 = vld [vmem:[#allocation3 + $0x148] sm:$0xff]
        %v2598 = vld [vmem:[#allocation3 + $0x150] sm:$0xff]
        %v2599 = vld [vmem:[#allocation3 + $0x158] sm:$0xff]
        %v2600 = vld [vmem:[#allocation3 + $0x160] sm:$0xff]
        %v2601 = vld [vmem:[#allocation3 + $0x168] sm:$0xff]
        %v2602 = vld [vmem:[#allocation3 + $0x170] sm:$0xff]
        %v2603 = vld [vmem:[#allocation3 + $0x178] sm:$0xff]
        %v2604 = vld [vmem:[#allocation3 + $0x180] sm:$0xff]
        %v2605 = vld [vmem:[#allocation3 + $0x188] sm:$0xff]
        %v2606 = vld [vmem:[#allocation3 + $0x190] sm:$0xff]
        %v2607 = vld [vmem:[#allocation3 + $0x198] sm:$0xff]
        %v2608 = vld [vmem:[#allocation3 + $0x1a0] sm:$0xff]
        %v2609 = vld [vmem:[#allocation3 + $0x1a8] sm:$0xff]
        %v2610 = vld [vmem:[#allocation3 + $0x1b0] sm:$0xff]
        %v2611 = vld [vmem:[#allocation3 + $0x1b8] sm:$0xff]
        %v2612 = vld [vmem:[#allocation3 + $0x1c0] sm:$0xff]
        %v2613 = vld [vmem:[#allocation3 + $0x1c8] sm:$0xff]
        %v2614 = vld [vmem:[#allocation3 + $0x1d0] sm:$0xff]
        %v2615 = vld [vmem:[#allocation3 + $0x1d8] sm:$0xff]
        %v2616 = vld [vmem:[#allocation3 + $0x1e0] sm:$0xff]
        %v2617 = vld [vmem:[#allocation3 + $0x1e8] sm:$0xff]
        %v2618 = vld [vmem:[#allocation3 + $0x1f0] sm:$0xff]
        %v2619 = vld [vmem:[#allocation3 + $0x1f8] sm:$0xff]
        %s2620 = scalar_lea.vmem %s450, 64 [#allocation10]
        %v2621 = vld [vmem:[%s2620] sm:$0xf]
        %v2622 = vld [vmem:[%s2620 + $0x4] sm:$0xf]
        %v2623 = vld [vmem:[%s2620 + $0x8] sm:$0xf]
        %v2624 = vld [vmem:[%s2620 + $0xc] sm:$0xf]
        %v2625 = vld [vmem:[%s2620 + $0x10] sm:$0xf]
        %v2626 = vld [vmem:[%s2620 + $0x14] sm:$0xf]
        %v2627 = vld [vmem:[%s2620 + $0x18] sm:$0xf]
        %v2628 = vld [vmem:[%s2620 + $0x1c] sm:$0xf]
        %v2629 = vld [vmem:[%s2620 + $0x20] sm:$0xf]
        %v2630 = vld [vmem:[%s2620 + $0x24] sm:$0xf]
        %v2631 = vld [vmem:[%s2620 + $0x28] sm:$0xf]
        %v2632 = vld [vmem:[%s2620 + $0x2c] sm:$0xf]
        %v2633 = vld [vmem:[%s2620 + $0x30] sm:$0xf]
        %v2634 = vld [vmem:[%s2620 + $0x34] sm:$0xf]
        %v2635 = vld [vmem:[%s2620 + $0x38] sm:$0xf]
        %v2636 = vld [vmem:[%s2620 + $0x3c] sm:$0xf]
        %v2653 = vunpack.c.l.b16 %v2621
        %v2654 = vunpack.c.l.b16 %v2622
        %v2655 = vunpack.c.l.b16 %v2623
        %v2656 = vunpack.c.l.b16 %v2624
        %v2657 = vunpack.c.l.b16 %v2625
        %v2658 = vunpack.c.l.b16 %v2626
        %v2659 = vunpack.c.l.b16 %v2627
        %v2660 = vunpack.c.l.b16 %v2628
        %v2661 = vunpack.c.l.b16 %v2629
        %v2662 = vunpack.c.l.b16 %v2630
        %v2663 = vunpack.c.l.b16 %v2631
        %v2664 = vunpack.c.l.b16 %v2632
        %v2665 = vunpack.c.l.b16 %v2633
        %v2666 = vunpack.c.l.b16 %v2634
        %v2667 = vunpack.c.l.b16 %v2635
        %v2668 = vunpack.c.l.b16 %v2636
        %v2669 = vpack.c.b16 %v2654, %v2653
        %v2670 = vpack.c.b16 %v2656, %v2655
        %v2671 = vpack.c.b16 %v2658, %v2657
        %v2672 = vpack.c.b16 %v2660, %v2659
        %v2673 = vpack.c.b16 %v2662, %v2661
        %v2674 = vpack.c.b16 %v2664, %v2663
        %v2675 = vpack.c.b16 %v2666, %v2665
        %v2676 = vpack.c.b16 %v2668, %v2667
        %2685 = vmatprep.subr.bf16.mxu0 0
        %2686 = vmatpush1.bf16.msra.mxu0 %v2669
        %2687 = vmatprep.subr.bf16.mxu0 0
        %2688 = vmatpush1.bf16.msra.mxu0 %v2670
        %2689 = vmatprep.subr.bf16.mxu0 0
        %2690 = vmatpush1.bf16.msra.mxu0 %v2671
        %2691 = vmatprep.subr.bf16.mxu0 0
        %2692 = vmatpush1.bf16.msra.mxu0 %v2672
        %2693 = vmatprep.subr.bf16.mxu0 0
        %2694 = vmatpush1.bf16.msra.mxu0 %v2673
        %2695 = vmatprep.subr.bf16.mxu0 0
        %2696 = vmatpush1.bf16.msra.mxu0 %v2674
        %2697 = vmatprep.subr.bf16.mxu0 0
        %2698 = vmatpush1.bf16.msra.mxu0 %v2675
        %2699 = vmatprep.subr.bf16.mxu0 0
        %2700 = vmatpush1.bf16.msra.mxu0 %v2676
        %2701 = vmatprep.subr.bf16.mxu0 0
        %2702 = vmatpush1.bf16.msra.mxu0 0
        %2703 = vmatprep.subr.bf16.mxu0 0
        %2704 = vmatpush1.bf16.msra.mxu0 0
        %2705 = vmatprep.subr.bf16.mxu0 0
        %2706 = vmatpush1.bf16.msra.mxu0 0
        %2707 = vmatprep.subr.bf16.mxu0 0
        %2708 = vmatpush1.bf16.msra.mxu0 0
        %2709 = vmatprep.subr.bf16.mxu0 0
        %2710 = vmatpush1.bf16.msra.mxu0 0
        %2711 = vmatprep.subr.bf16.mxu0 0
        %2712 = vmatpush1.bf16.msra.mxu0 0
        %2713 = vmatprep.subr.bf16.mxu0 0
        %2714 = vmatpush1.bf16.msra.mxu0 0
        %2715 = vmatprep.subr.bf16.mxu0 0
        %2716 = vmatpush1.bf16.msra.mxu0 0
        %2717 = vmatprep.mubr.bf16.mxu0 0
        %2718 = vmatmul.mubr.bf16.gmra.mrb[0].mxu0 %v1978
        %v2719 = vpop.f32.mrb[0].mxu0
        %v2720 = vadd.f32 0.0, %v2719
        %v2721 = vpop.f32.mrb[0].mxu0
        %v2722 = vpop.f32.mrb[0].mxu0
        %v2723 = vadd.f32 0.0, %v2722
        %v2724 = vpop.f32.mrb[0].mxu0
        %2725 = vmatprep.mubr.bf16.mxu0 0
        %2726 = vmatmul.mubr.bf16.gmra.mrb[0].mxu0 %v1979
        %v2727 = vpop.f32.mrb[0].mxu0
        %v2728 = vadd.f32 0.0, %v2727
        %v2729 = vpop.f32.mrb[0].mxu0
        %v2730 = vpop.f32.mrb[0].mxu0
        %v2731 = vadd.f32 0.0, %v2730
        %v2732 = vpop.f32.mrb[0].mxu0
        %2733 = vmatprep.mubr.bf16.mxu0 0
        %2734 = vmatmul.mubr.bf16.gmra.mrb[0].mxu0 %v1980
        %v2735 = vpop.f32.mrb[0].mxu0
        %v2736 = vadd.f32 0.0, %v2735
        %v2737 = vpop.f32.mrb[0].mxu0
        %v2738 = vpop.f32.mrb[0].mxu0
        %v2739 = vadd.f32 0.0, %v2738
        %v2740 = vpop.f32.mrb[0].mxu0
        %2741 = vmatprep.mubr.bf16.mxu0 0
        %2742 = vmatmul.mubr.bf16.gmra.mrb[0].mxu0 %v1981
        %v2743 = vpop.f32.mrb[0].mxu0
        %v2744 = vadd.f32 0.0, %v2743
        %v2745 = vpop.f32.mrb[0].mxu0
        %v2746 = vpop.f32.mrb[0].mxu0
        %v2747 = vadd.f32 0.0, %v2746
        %v2748 = vpop.f32.mrb[0].mxu0
        %2749 = vmatprep.mubr.bf16.mxu0 0
        %2750 = vmatmul.mubr.bf16.gmra.mrb[0].mxu0 %v1982
        %v2751 = vpop.f32.mrb[0].mxu0
        %v2752 = vadd.f32 0.0, %v2751
        %v2753 = vpop.f32.mrb[0].mxu0
        %v2754 = vpop.f32.mrb[0].mxu0
        %v2755 = vadd.f32 0.0, %v2754
        %v2756 = vpop.f32.mrb[0].mxu0
        %2757 = vmatprep.mubr.bf16.mxu0 0
        %2758 = vmatmul.mubr.bf16.gmra.mrb[0].mxu0 %v1983
        %v2759 = vpop.f32.mrb[0].mxu0
        %v2760 = vadd.f32 0.0, %v2759
        %v2761 = vpop.f32.mrb[0].mxu0
        %v2762 = vpop.f32.mrb[0].mxu0
        %v2763 = vadd.f32 0.0, %v2762
        %v2764 = vpop.f32.mrb[0].mxu0
        %2765 = vmatprep.mubr.bf16.mxu0 0
        %2766 = vmatmul.mubr.bf16.gmra.mrb[0].mxu0 %v1984
        %v2767 = vpop.f32.mrb[0].mxu0
        %v2768 = vadd.f32 0.0, %v2767
        %v2769 = vpop.f32.mrb[0].mxu0
        %v2770 = vpop.f32.mrb[0].mxu0
        %v2771 = vadd.f32 0.0, %v2770
        %v2772 = vpop.f32.mrb[0].mxu0
        %2773 = vmatprep.mubr.bf16.mxu0 0
        %2774 = vmatmul.mubr.bf16.gmra.mrb[0].mxu0 %v1985
        %v2775 = vpop.f32.mrb[0].mxu0
        %v2776 = vadd.f32 0.0, %v2775
        %v2777 = vpop.f32.mrb[0].mxu0
        %v2778 = vpop.f32.mrb[0].mxu0
        %v2779 = vadd.f32 0.0, %v2778
        %v2780 = vpop.f32.mrb[0].mxu0
        %2781 = vmatprep.mubr.bf16.mxu0 0
        %2782 = vmatmul.mubr.bf16.gmra.mrb[0].mxu0 %v1986
        %v2783 = vpop.f32.mrb[0].mxu0
        %v2784 = vadd.f32 0.0, %v2783
        %v2785 = vpop.f32.mrb[0].mxu0
        %v2786 = vpop.f32.mrb[0].mxu0
        %v2787 = vadd.f32 0.0, %v2786
        %v2788 = vpop.f32.mrb[0].mxu0
        %2789 = vmatprep.mubr.bf16.mxu0 0
        %2790 = vmatmul.mubr.bf16.gmra.mrb[0].mxu0 %v1987
        %v2791 = vpop.f32.mrb[0].mxu0
        %v2792 = vadd.f32 0.0, %v2791
        %v2793 = vpop.f32.mrb[0].mxu0
        %v2794 = vpop.f32.mrb[0].mxu0
        %v2795 = vadd.f32 0.0, %v2794
        %v2796 = vpop.f32.mrb[0].mxu0
        %2797 = vmatprep.mubr.bf16.mxu0 0
        %2798 = vmatmul.mubr.bf16.gmra.mrb[0].mxu0 %v1988
        %v2799 = vpop.f32.mrb[0].mxu0
        %v2800 = vadd.f32 0.0, %v2799
        %v2801 = vpop.f32.mrb[0].mxu0
        %v2802 = vpop.f32.mrb[0].mxu0
        %v2803 = vadd.f32 0.0, %v2802
        %v2804 = vpop.f32.mrb[0].mxu0
        %2805 = vmatprep.mubr.bf16.mxu0 0
        %2806 = vmatmul.mubr.bf16.gmra.mrb[0].mxu0 %v1989
        %v2807 = vpop.f32.mrb[0].mxu0
        %v2808 = vadd.f32 0.0, %v2807
        %v2809 = vpop.f32.mrb[0].mxu0
        %v2810 = vpop.f32.mrb[0].mxu0
        %v2811 = vadd.f32 0.0, %v2810
        %v2812 = vpop.f32.mrb[0].mxu0
        %2813 = vmatprep.mubr.bf16.mxu0 0
        %2814 = vmatmul.mubr.bf16.gmra.mrb[0].mxu0 %v1990
        %v2815 = vpop.f32.mrb[0].mxu0
        %v2816 = vadd.f32 0.0, %v2815
        %v2817 = vpop.f32.mrb[0].mxu0
        %v2818 = vpop.f32.mrb[0].mxu0
        %v2819 = vadd.f32 0.0, %v2818
        %v2820 = vpop.f32.mrb[0].mxu0
        %2821 = vmatprep.mubr.bf16.mxu0 0
        %2822 = vmatmul.mubr.bf16.gmra.mrb[0].mxu0 %v1991
        %v2823 = vpop.f32.mrb[0].mxu0
        %v2824 = vadd.f32 0.0, %v2823
        %v2825 = vpop.f32.mrb[0].mxu0
        %v2826 = vpop.f32.mrb[0].mxu0
        %v2827 = vadd.f32 0.0, %v2826
        %v2828 = vpop.f32.mrb[0].mxu0
        %2829 = vmatprep.mubr.bf16.mxu0 0
        %2830 = vmatmul.mubr.bf16.gmra.mrb[0].mxu0 %v1992
        %v2831 = vpop.f32.mrb[0].mxu0
        %v2832 = vadd.f32 0.0, %v2831
        %v2833 = vpop.f32.mrb[0].mxu0
        %v2834 = vpop.f32.mrb[0].mxu0
        %v2835 = vadd.f32 0.0, %v2834
        %v2836 = vpop.f32.mrb[0].mxu0
        %2837 = vmatprep.mubr.bf16.mxu0 0
        %2838 = vmatmul.mubr.bf16.gmra.mrb[0].mxu0 %v1993
        %v2839 = vpop.f32.mrb[0].mxu0
        %v2840 = vadd.f32 0.0, %v2839
        %v2841 = vpop.f32.mrb[0].mxu0
        %v2842 = vpop.f32.mrb[0].mxu0
        %v2843 = vadd.f32 0.0, %v2842
        %v2844 = vpop.f32.mrb[0].mxu0
        %2845 = vmatprep.mubr.bf16.mxu0 0
        %2846 = vmatmul.mubr.bf16.gmra.mrb[0].mxu0 %v1994
        %v2847 = vpop.f32.mrb[0].mxu0
        %v2848 = vadd.f32 0.0, %v2847
        %v2849 = vpop.f32.mrb[0].mxu0
        %v2850 = vpop.f32.mrb[0].mxu0
        %v2851 = vadd.f32 0.0, %v2850
        %v2852 = vpop.f32.mrb[0].mxu0
        %2853 = vmatprep.mubr.bf16.mxu0 0
        %2854 = vmatmul.mubr.bf16.gmra.mrb[0].mxu0 %v1995
        %v2855 = vpop.f32.mrb[0].mxu0
        %v2856 = vadd.f32 0.0, %v2855
        %v2857 = vpop.f32.mrb[0].mxu0
        %v2858 = vpop.f32.mrb[0].mxu0
        %v2859 = vadd.f32 0.0, %v2858
        %v2860 = vpop.f32.mrb[0].mxu0
        %2861 = vmatprep.mubr.bf16.mxu0 0
        %2862 = vmatmul.mubr.bf16.gmra.mrb[0].mxu0 %v1996
        %v2863 = vpop.f32.mrb[0].mxu0
        %v2864 = vadd.f32 0.0, %v2863
        %v2865 = vpop.f32.mrb[0].mxu0
        %v2866 = vpop.f32.mrb[0].mxu0
        %v2867 = vadd.f32 0.0, %v2866
        %v2868 = vpop.f32.mrb[0].mxu0
        %2869 = vmatprep.mubr.bf16.mxu0 0
        %2870 = vmatmul.mubr.bf16.gmra.mrb[0].mxu0 %v1997
        %v2871 = vpop.f32.mrb[0].mxu0
        %v2872 = vadd.f32 0.0, %v2871
        %v2873 = vpop.f32.mrb[0].mxu0
        %v2874 = vpop.f32.mrb[0].mxu0
        %v2875 = vadd.f32 0.0, %v2874
        %v2876 = vpop.f32.mrb[0].mxu0
        %2877 = vmatprep.mubr.bf16.mxu0 0
        %2878 = vmatmul.mubr.bf16.gmra.mrb[0].mxu0 %v1998
        %v2879 = vpop.f32.mrb[0].mxu0
        %v2880 = vadd.f32 0.0, %v2879
        %v2881 = vpop.f32.mrb[0].mxu0
        %v2882 = vpop.f32.mrb[0].mxu0
        %v2883 = vadd.f32 0.0, %v2882
        %v2884 = vpop.f32.mrb[0].mxu0
        %2885 = vmatprep.mubr.bf16.mxu0 0
        %2886 = vmatmul.mubr.bf16.gmra.mrb[0].mxu0 %v1999
        %v2887 = vpop.f32.mrb[0].mxu0
        %v2888 = vadd.f32 0.0, %v2887
        %v2889 = vpop.f32.mrb[0].mxu0
        %v2890 = vpop.f32.mrb[0].mxu0
        %v2891 = vadd.f32 0.0, %v2890
        %v2892 = vpop.f32.mrb[0].mxu0
        %2893 = vmatprep.mubr.bf16.mxu0 0
        %2894 = vmatmul.mubr.bf16.gmra.mrb[0].mxu0 %v2000
        %v2895 = vpop.f32.mrb[0].mxu0
        %v2896 = vadd.f32 0.0, %v2895
        %v2897 = vpop.f32.mrb[0].mxu0
        %v2898 = vpop.f32.mrb[0].mxu0
        %v2899 = vadd.f32 0.0, %v2898
        %v2900 = vpop.f32.mrb[0].mxu0
        %2901 = vmatprep.mubr.bf16.mxu0 0
        %2902 = vmatmul.mubr.bf16.gmra.mrb[0].mxu0 %v2001
        %v2903 = vpop.f32.mrb[0].mxu0
        %v2904 = vadd.f32 0.0, %v2903
        %v2905 = vpop.f32.mrb[0].mxu0
        %v2906 = vpop.f32.mrb[0].mxu0
        %v2907 = vadd.f32 0.0, %v2906
        %v2908 = vpop.f32.mrb[0].mxu0
        %2909 = vmatprep.mubr.bf16.mxu0 0
        %2910 = vmatmul.mubr.bf16.gmra.mrb[0].mxu0 %v2002
        %v2911 = vpop.f32.mrb[0].mxu0
        %v2912 = vadd.f32 0.0, %v2911
        %v2913 = vpop.f32.mrb[0].mxu0
        %v2914 = vpop.f32.mrb[0].mxu0
        %v2915 = vadd.f32 0.0, %v2914
        %v2916 = vpop.f32.mrb[0].mxu0
        %2917 = vmatprep.mubr.bf16.mxu0 0
        %2918 = vmatmul.mubr.bf16.gmra.mrb[0].mxu0 %v2003
        %v2919 = vpop.f32.mrb[0].mxu0
        %v2920 = vadd.f32 0.0, %v2919
        %v2921 = vpop.f32.mrb[0].mxu0
        %v2922 = vpop.f32.mrb[0].mxu0
        %v2923 = vadd.f32 0.0, %v2922
        %v2924 = vpop.f32.mrb[0].mxu0
        %2925 = vmatprep.mubr.bf16.mxu0 0
        %2926 = vmatmul.mubr.bf16.gmra.mrb[0].mxu0 %v2004
        %v2927 = vpop.f32.mrb[0].mxu0
        %v2928 = vadd.f32 0.0, %v2927
        %v2929 = vpop.f32.mrb[0].mxu0
        %v2930 = vpop.f32.mrb[0].mxu0
        %v2931 = vadd.f32 0.0, %v2930
        %v2932 = vpop.f32.mrb[0].mxu0
        %2933 = vmatprep.mubr.bf16.mxu0 0
        %2934 = vmatmul.mubr.bf16.gmra.mrb[0].mxu0 %v2005
        %v2935 = vpop.f32.mrb[0].mxu0
        %v2936 = vadd.f32 0.0, %v2935
        %v2937 = vpop.f32.mrb[0].mxu0
        %v2938 = vpop.f32.mrb[0].mxu0
        %v2939 = vadd.f32 0.0, %v2938
        %v2940 = vpop.f32.mrb[0].mxu0
        %2941 = vmatprep.mubr.bf16.mxu0 0
        %2942 = vmatmul.mubr.bf16.gmra.mrb[0].mxu0 %v2006
        %v2943 = vpop.f32.mrb[0].mxu0
        %v2944 = vadd.f32 0.0, %v2943
        %v2945 = vpop.f32.mrb[0].mxu0
        %v2946 = vpop.f32.mrb[0].mxu0
        %v2947 = vadd.f32 0.0, %v2946
        %v2948 = vpop.f32.mrb[0].mxu0
        %2949 = vmatprep.mubr.bf16.mxu0 0
        %2950 = vmatmul.mubr.bf16.gmra.mrb[0].mxu0 %v2007
        %v2951 = vpop.f32.mrb[0].mxu0
        %v2952 = vadd.f32 0.0, %v2951
        %v2953 = vpop.f32.mrb[0].mxu0
        %v2954 = vpop.f32.mrb[0].mxu0
        %v2955 = vadd.f32 0.0, %v2954
        %v2956 = vpop.f32.mrb[0].mxu0
        %2957 = vmatprep.mubr.bf16.mxu0 0
        %2958 = vmatmul.mubr.bf16.gmra.mrb[0].mxu0 %v2008
        %v2959 = vpop.f32.mrb[0].mxu0
        %v2960 = vadd.f32 0.0, %v2959
        %v2961 = vpop.f32.mrb[0].mxu0
        %v2962 = vpop.f32.mrb[0].mxu0
        %v2963 = vadd.f32 0.0, %v2962
        %v2964 = vpop.f32.mrb[0].mxu0
        %2965 = vmatprep.mubr.bf16.mxu0 0
        %2966 = vmatmul.mubr.bf16.gmra.mrb[0].mxu0 %v2009
        %v2967 = vpop.f32.mrb[0].mxu0
        %v2968 = vadd.f32 0.0, %v2967
        %v2969 = vpop.f32.mrb[0].mxu0
        %v2970 = vpop.f32.mrb[0].mxu0
        %v2971 = vadd.f32 0.0, %v2970
        %v2972 = vpop.f32.mrb[0].mxu0
        %2973 = vdwg.mxu0
        %v2974 = vadd.f32 %v2556, %v2720
        %v2975 = vadd.f32 %v2557, %v2723
        %v2976 = vadd.f32 %v2558, %v2728
        %v2977 = vadd.f32 %v2559, %v2731
        %v2978 = vadd.f32 %v2560, %v2736
        %v2979 = vadd.f32 %v2561, %v2739
        %v2980 = vadd.f32 %v2562, %v2744
        %v2981 = vadd.f32 %v2563, %v2747
        %v2982 = vadd.f32 %v2564, %v2752
        %v2983 = vadd.f32 %v2565, %v2755
        %v2984 = vadd.f32 %v2566, %v2760
        %v2985 = vadd.f32 %v2567, %v2763
        %v2986 = vadd.f32 %v2568, %v2768
        %v2987 = vadd.f32 %v2569, %v2771
        %v2988 = vadd.f32 %v2570, %v2776
        %v2989 = vadd.f32 %v2571, %v2779
        %v2990 = vadd.f32 %v2572, %v2784
        %v2991 = vadd.f32 %v2573, %v2787
        %v2992 = vadd.f32 %v2574, %v2792
        %v2993 = vadd.f32 %v2575, %v2795
        %v2994 = vadd.f32 %v2576, %v2800
        %v2995 = vadd.f32 %v2577, %v2803
        %v2996 = vadd.f32 %v2578, %v2808
        %v2997 = vadd.f32 %v2579, %v2811
        %v2998 = vadd.f32 %v2580, %v2816
        %v2999 = vadd.f32 %v2581, %v2819
        %v3000 = vadd.f32 %v2582, %v2824
        %v3001 = vadd.f32 %v2583, %v2827
        %v3002 = vadd.f32 %v2584, %v2832
        %v3003 = vadd.f32 %v2585, %v2835
        %v3004 = vadd.f32 %v2586, %v2840
        %v3005 = vadd.f32 %v2587, %v2843
        %v3006 = vadd.f32 %v2588, %v2848
        %v3007 = vadd.f32 %v2589, %v2851
        %v3008 = vadd.f32 %v2590, %v2856
        %v3009 = vadd.f32 %v2591, %v2859
        %v3010 = vadd.f32 %v2592, %v2864
        %v3011 = vadd.f32 %v2593, %v2867
        %v3012 = vadd.f32 %v2594, %v2872
        %v3013 = vadd.f32 %v2595, %v2875
        %v3014 = vadd.f32 %v2596, %v2880
        %v3015 = vadd.f32 %v2597, %v2883
        %v3016 = vadd.f32 %v2598, %v2888
        %v3017 = vadd.f32 %v2599, %v2891
        %v3018 = vadd.f32 %v2600, %v2896
        %v3019 = vadd.f32 %v2601, %v2899
        %v3020 = vadd.f32 %v2602, %v2904
        %v3021 = vadd.f32 %v2603, %v2907
        %v3022 = vadd.f32 %v2604, %v2912
        %v3023 = vadd.f32 %v2605, %v2915
        %v3024 = vadd.f32 %v2606, %v2920
        %v3025 = vadd.f32 %v2607, %v2923
        %v3026 = vadd.f32 %v2608, %v2928
        %v3027 = vadd.f32 %v2609, %v2931
        %v3028 = vadd.f32 %v2610, %v2936
        %v3029 = vadd.f32 %v2611, %v2939
        %v3030 = vadd.f32 %v2612, %v2944
        %v3031 = vadd.f32 %v2613, %v2947
        %v3032 = vadd.f32 %v2614, %v2952
        %v3033 = vadd.f32 %v2615, %v2955
        %v3034 = vadd.f32 %v2616, %v2960
        %v3035 = vadd.f32 %v2617, %v2963
        %v3036 = vadd.f32 %v2618, %v2968
        %v3037 = vadd.f32 %v2619, %v2971
        %3038 = vst.msk [vmem:[#allocation3] sm:$0xff] %vm2491, %v2974
        %3039 = vst.msk [vmem:[#allocation3 + $0x8] sm:$0xff] %vm2491, %v2975
        %3040 = vst.msk [vmem:[#allocation3 + $0x10] sm:$0xff] %vm2491, %v2976
        %3041 = vst.msk [vmem:[#allocation3 + $0x18] sm:$0xff] %vm2491, %v2977
        %3042 = vst.msk [vmem:[#allocation3 + $0x20] sm:$0xff] %vm2491, %v2978
        %3043 = vst.msk [vmem:[#allocation3 + $0x28] sm:$0xff] %vm2491, %v2979
        %3044 = vst.msk [vmem:[#allocation3 + $0x30] sm:$0xff] %vm2491, %v2980
        %3045 = vst.msk [vmem:[#allocation3 + $0x38] sm:$0xff] %vm2491, %v2981
        %3046 = vst.msk [vmem:[#allocation3 + $0x40] sm:$0xff] %vm2491, %v2982
        %3047 = vst.msk [vmem:[#allocation3 + $0x48] sm:$0xff] %vm2491, %v2983
        %3048 = vst.msk [vmem:[#allocation3 + $0x50] sm:$0xff] %vm2491, %v2984
        %3049 = vst.msk [vmem:[#allocation3 + $0x58] sm:$0xff] %vm2491, %v2985
        %3050 = vst.msk [vmem:[#allocation3 + $0x60] sm:$0xff] %vm2491, %v2986
        %3051 = vst.msk [vmem:[#allocation3 + $0x68] sm:$0xff] %vm2491, %v2987
        %3052 = vst.msk [vmem:[#allocation3 + $0x70] sm:$0xff] %vm2491, %v2988
        %3053 = vst.msk [vmem:[#allocation3 + $0x78] sm:$0xff] %vm2491, %v2989
        %3054 = vst.msk [vmem:[#allocation3 + $0x80] sm:$0xff] %vm2491, %v2990
        %3055 = vst.msk [vmem:[#allocation3 + $0x88] sm:$0xff] %vm2491, %v2991
        %3056 = vst.msk [vmem:[#allocation3 + $0x90] sm:$0xff] %vm2491, %v2992
        %3057 = vst.msk [vmem:[#allocation3 + $0x98] sm:$0xff] %vm2491, %v2993
        %3058 = vst.msk [vmem:[#allocation3 + $0xa0] sm:$0xff] %vm2491, %v2994
        %3059 = vst.msk [vmem:[#allocation3 + $0xa8] sm:$0xff] %vm2491, %v2995
        %3060 = vst.msk [vmem:[#allocation3 + $0xb0] sm:$0xff] %vm2491, %v2996
        %3061 = vst.msk [vmem:[#allocation3 + $0xb8] sm:$0xff] %vm2491, %v2997
        %3062 = vst.msk [vmem:[#allocation3 + $0xc0] sm:$0xff] %vm2491, %v2998
        %3063 = vst.msk [vmem:[#allocation3 + $0xc8] sm:$0xff] %vm2491, %v2999
        %3064 = vst.msk [vmem:[#allocation3 + $0xd0] sm:$0xff] %vm2491, %v3000
        %3065 = vst.msk [vmem:[#allocation3 + $0xd8] sm:$0xff] %vm2491, %v3001
        %3066 = vst.msk [vmem:[#allocation3 + $0xe0] sm:$0xff] %vm2491, %v3002
        %3067 = vst.msk [vmem:[#allocation3 + $0xe8] sm:$0xff] %vm2491, %v3003
        %3068 = vst.msk [vmem:[#allocation3 + $0xf0] sm:$0xff] %vm2491, %v3004
        %3069 = vst.msk [vmem:[#allocation3 + $0xf8] sm:$0xff] %vm2491, %v3005
        %3070 = vst.msk [vmem:[#allocation3 + $0x100] sm:$0xff] %vm2491, %v3006
        %3071 = vst.msk [vmem:[#allocation3 + $0x108] sm:$0xff] %vm2491, %v3007
        %3072 = vst.msk [vmem:[#allocation3 + $0x110] sm:$0xff] %vm2491, %v3008
        %3073 = vst.msk [vmem:[#allocation3 + $0x118] sm:$0xff] %vm2491, %v3009
        %3074 = vst.msk [vmem:[#allocation3 + $0x120] sm:$0xff] %vm2491, %v3010
        %3075 = vst.msk [vmem:[#allocation3 + $0x128] sm:$0xff] %vm2491, %v3011
        %3076 = vst.msk [vmem:[#allocation3 + $0x130] sm:$0xff] %vm2491, %v3012
        %3077 = vst.msk [vmem:[#allocation3 + $0x138] sm:$0xff] %vm2491, %v3013
        %3078 = vst.msk [vmem:[#allocation3 + $0x140] sm:$0xff] %vm2491, %v3014
        %3079 = vst.msk [vmem:[#allocation3 + $0x148] sm:$0xff] %vm2491, %v3015
        %3080 = vst.msk [vmem:[#allocation3 + $0x150] sm:$0xff] %vm2491, %v3016
        %3081 = vst.msk [vmem:[#allocation3 + $0x158] sm:$0xff] %vm2491, %v3017
        %3082 = vst.msk [vmem:[#allocation3 + $0x160] sm:$0xff] %vm2491, %v3018
        %3083 = vst.msk [vmem:[#allocation3 + $0x168] sm:$0xff] %vm2491, %v3019
        %3084 = vst.msk [vmem:[#allocation3 + $0x170] sm:$0xff] %vm2491, %v3020
        %3085 = vst.msk [vmem:[#allocation3 + $0x178] sm:$0xff] %vm2491, %v3021
        %3086 = vst.msk [vmem:[#allocation3 + $0x180] sm:$0xff] %vm2491, %v3022
        %3087 = vst.msk [vmem:[#allocation3 + $0x188] sm:$0xff] %vm2491, %v3023
        %3088 = vst.msk [vmem:[#allocation3 + $0x190] sm:$0xff] %vm2491, %v3024
        %3089 = vst.msk [vmem:[#allocation3 + $0x198] sm:$0xff] %vm2491, %v3025
        %3090 = vst.msk [vmem:[#allocation3 + $0x1a0] sm:$0xff] %vm2491, %v3026
        %3091 = vst.msk [vmem:[#allocation3 + $0x1a8] sm:$0xff] %vm2491, %v3027
        %3092 = vst.msk [vmem:[#allocation3 + $0x1b0] sm:$0xff] %vm2491, %v3028
        %3093 = vst.msk [vmem:[#allocation3 + $0x1b8] sm:$0xff] %vm2491, %v3029
        %3094 = vst.msk [vmem:[#allocation3 + $0x1c0] sm:$0xff] %vm2491, %v3030
        %3095 = vst.msk [vmem:[#allocation3 + $0x1c8] sm:$0xff] %vm2491, %v3031
        %3096 = vst.msk [vmem:[#allocation3 + $0x1d0] sm:$0xff] %vm2491, %v3032
        %3097 = vst.msk [vmem:[#allocation3 + $0x1d8] sm:$0xff] %vm2491, %v3033
        %3098 = vst.msk [vmem:[#allocation3 + $0x1e0] sm:$0xff] %vm2491, %v3034
        %3099 = vst.msk [vmem:[#allocation3 + $0x1e8] sm:$0xff] %vm2491, %v3035
        %3100 = vst.msk [vmem:[#allocation3 + $0x1f0] sm:$0xff] %vm2491, %v3036
        %3101 = vst.msk [vmem:[#allocation3 + $0x1f8] sm:$0xff] %vm2491, %v3037
        %p3102 = scmp.eq.s32.totalorder %s40, 2
        // Predicated region
        $region65: #{tpu_custom_call.1} parent=39 // pred_check
          %p3103 = pneg %p3102
        $region66: #{tpu_custom_call.1} parent=39 // pred_check_branch
          %3105 = sbr.rel (%p3103) target = $region68
        $region67: #{tpu_custom_call.1} parent=39 // pred_region
          %v3106 = vld [vmem:[#allocation2] sm:$0xff]
          %v3107 = vld [vmem:[#allocation2 + $0x8] sm:$0xff]
          %v3108 = vld [vmem:[#allocation2 + $0x10] sm:$0xff]
          %v3109 = vld [vmem:[#allocation2 + $0x18] sm:$0xff]
          %v3110 = vld [vmem:[#allocation2 + $0x20] sm:$0xff]
          %v3111 = vld [vmem:[#allocation2 + $0x28] sm:$0xff]
          %v3112 = vld [vmem:[#allocation2 + $0x30] sm:$0xff]
          %v3113 = vld [vmem:[#allocation2 + $0x38] sm:$0xff]
          %v3114 = vld [vmem:[#allocation2 + $0x40] sm:$0xff]
          %v3115 = vld [vmem:[#allocation2 + $0x48] sm:$0xff]
          %v3116 = vld [vmem:[#allocation2 + $0x50] sm:$0xff]
          %v3117 = vld [vmem:[#allocation2 + $0x58] sm:$0xff]
          %v3118 = vld [vmem:[#allocation2 + $0x60] sm:$0xff]
          %v3119 = vld [vmem:[#allocation2 + $0x68] sm:$0xff]
          %v3120 = vld [vmem:[#allocation2 + $0x70] sm:$0xff]
          %v3121 = vld [vmem:[#allocation2 + $0x78] sm:$0xff]
          %v3122 = vld [vmem:[#allocation2 + $0x80] sm:$0xff]
          %v3123 = vld [vmem:[#allocation2 + $0x88] sm:$0xff]
          %v3124 = vld [vmem:[#allocation2 + $0x90] sm:$0xff]
          %v3125 = vld [vmem:[#allocation2 + $0x98] sm:$0xff]
          %v3126 = vld [vmem:[#allocation2 + $0xa0] sm:$0xff]
          %v3127 = vld [vmem:[#allocation2 + $0xa8] sm:$0xff]
          %v3128 = vld [vmem:[#allocation2 + $0xb0] sm:$0xff]
          %v3129 = vld [vmem:[#allocation2 + $0xb8] sm:$0xff]
          %v3130 = vld [vmem:[#allocation2 + $0xc0] sm:$0xff]
          %v3131 = vld [vmem:[#allocation2 + $0xc8] sm:$0xff]
          %v3132 = vld [vmem:[#allocation2 + $0xd0] sm:$0xff]
          %v3133 = vld [vmem:[#allocation2 + $0xd8] sm:$0xff]
          %v3134 = vld [vmem:[#allocation2 + $0xe0] sm:$0xff]
          %v3135 = vld [vmem:[#allocation2 + $0xe8] sm:$0xff]
          %v3136 = vld [vmem:[#allocation2 + $0xf0] sm:$0xff]
          %v3137 = vld [vmem:[#allocation2 + $0xf8] sm:$0xff]
          %v3138 = vld [vmem:[#allocation2 + $0x100] sm:$0xff]
          %v3139 = vld [vmem:[#allocation2 + $0x108] sm:$0xff]
          %v3140 = vld [vmem:[#allocation2 + $0x110] sm:$0xff]
          %v3141 = vld [vmem:[#allocation2 + $0x118] sm:$0xff]
          %v3142 = vld [vmem:[#allocation2 + $0x120] sm:$0xff]
          %v3143 = vld [vmem:[#allocation2 + $0x128] sm:$0xff]
          %v3144 = vld [vmem:[#allocation2 + $0x130] sm:$0xff]
          %v3145 = vld [vmem:[#allocation2 + $0x138] sm:$0xff]
          %v3146 = vld [vmem:[#allocation2 + $0x140] sm:$0xff]
          %v3147 = vld [vmem:[#allocation2 + $0x148] sm:$0xff]
          %v3148 = vld [vmem:[#allocation2 + $0x150] sm:$0xff]
          %v3149 = vld [vmem:[#allocation2 + $0x158] sm:$0xff]
          %v3150 = vld [vmem:[#allocation2 + $0x160] sm:$0xff]
          %v3151 = vld [vmem:[#allocation2 + $0x168] sm:$0xff]
          %v3152 = vld [vmem:[#allocation2 + $0x170] sm:$0xff]
          %v3153 = vld [vmem:[#allocation2 + $0x178] sm:$0xff]
          %v3154 = vld [vmem:[#allocation2 + $0x180] sm:$0xff]
          %v3155 = vld [vmem:[#allocation2 + $0x188] sm:$0xff]
          %v3156 = vld [vmem:[#allocation2 + $0x190] sm:$0xff]
          %v3157 = vld [vmem:[#allocation2 + $0x198] sm:$0xff]
          %v3158 = vld [vmem:[#allocation2 + $0x1a0] sm:$0xff]
          %v3159 = vld [vmem:[#allocation2 + $0x1a8] sm:$0xff]
          %v3160 = vld [vmem:[#allocation2 + $0x1b0] sm:$0xff]
          %v3161 = vld [vmem:[#allocation2 + $0x1b8] sm:$0xff]
          %v3162 = vld [vmem:[#allocation2 + $0x1c0] sm:$0xff]
          %v3163 = vld [vmem:[#allocation2 + $0x1c8] sm:$0xff]
          %v3164 = vld [vmem:[#allocation2 + $0x1d0] sm:$0xff]
          %v3165 = vld [vmem:[#allocation2 + $0x1d8] sm:$0xff]
          %v3166 = vld [vmem:[#allocation2 + $0x1e0] sm:$0xff]
          %v3167 = vld [vmem:[#allocation2 + $0x1e8] sm:$0xff]
          %v3168 = vld [vmem:[#allocation2 + $0x1f0] sm:$0xff]
          %v3169 = vld [vmem:[#allocation2 + $0x1f8] sm:$0xff]
          %v3170 = vld [vmem:[#allocation3] sm:$0xff]
          %v3171 = vld [vmem:[#allocation3 + $0x8] sm:$0xff]
          %v3172 = vld [vmem:[#allocation3 + $0x10] sm:$0xff]
          %v3173 = vld [vmem:[#allocation3 + $0x18] sm:$0xff]
          %v3174 = vld [vmem:[#allocation3 + $0x20] sm:$0xff]
          %v3175 = vld [vmem:[#allocation3 + $0x28] sm:$0xff]
          %v3176 = vld [vmem:[#allocation3 + $0x30] sm:$0xff]
          %v3177 = vld [vmem:[#allocation3 + $0x38] sm:$0xff]
          %v3178 = vld [vmem:[#allocation3 + $0x40] sm:$0xff]
          %v3179 = vld [vmem:[#allocation3 + $0x48] sm:$0xff]
          %v3180 = vld [vmem:[#allocation3 + $0x50] sm:$0xff]
          %v3181 = vld [vmem:[#allocation3 + $0x58] sm:$0xff]
          %v3182 = vld [vmem:[#allocation3 + $0x60] sm:$0xff]
          %v3183 = vld [vmem:[#allocation3 + $0x68] sm:$0xff]
          %v3184 = vld [vmem:[#allocation3 + $0x70] sm:$0xff]
          %v3185 = vld [vmem:[#allocation3 + $0x78] sm:$0xff]
          %v3186 = vld [vmem:[#allocation3 + $0x80] sm:$0xff]
          %v3187 = vld [vmem:[#allocation3 + $0x88] sm:$0xff]
          %v3188 = vld [vmem:[#allocation3 + $0x90] sm:$0xff]
          %v3189 = vld [vmem:[#allocation3 + $0x98] sm:$0xff]
          %v3190 = vld [vmem:[#allocation3 + $0xa0] sm:$0xff]
          %v3191 = vld [vmem:[#allocation3 + $0xa8] sm:$0xff]
          %v3192 = vld [vmem:[#allocation3 + $0xb0] sm:$0xff]
          %v3193 = vld [vmem:[#allocation3 + $0xb8] sm:$0xff]
          %v3194 = vld [vmem:[#allocation3 + $0xc0] sm:$0xff]
          %v3195 = vld [vmem:[#allocation3 + $0xc8] sm:$0xff]
          %v3196 = vld [vmem:[#allocation3 + $0xd0] sm:$0xff]
          %v3197 = vld [vmem:[#allocation3 + $0xd8] sm:$0xff]
          %v3198 = vld [vmem:[#allocation3 + $0xe0] sm:$0xff]
          %v3199 = vld [vmem:[#allocation3 + $0xe8] sm:$0xff]
          %v3200 = vld [vmem:[#allocation3 + $0xf0] sm:$0xff]
          %v3201 = vld [vmem:[#allocation3 + $0xf8] sm:$0xff]
          %v3202 = vld [vmem:[#allocation3 + $0x100] sm:$0xff]
          %v3203 = vld [vmem:[#allocation3 + $0x108] sm:$0xff]
          %v3204 = vld [vmem:[#allocation3 + $0x110] sm:$0xff]
          %v3205 = vld [vmem:[#allocation3 + $0x118] sm:$0xff]
          %v3206 = vld [vmem:[#allocation3 + $0x120] sm:$0xff]
          %v3207 = vld [vmem:[#allocation3 + $0x128] sm:$0xff]
          %v3208 = vld [vmem:[#allocation3 + $0x130] sm:$0xff]
          %v3209 = vld [vmem:[#allocation3 + $0x138] sm:$0xff]
          %v3210 = vld [vmem:[#allocation3 + $0x140] sm:$0xff]
          %v3211 = vld [vmem:[#allocation3 + $0x148] sm:$0xff]
          %v3212 = vld [vmem:[#allocation3 + $0x150] sm:$0xff]
          %v3213 = vld [vmem:[#allocation3 + $0x158] sm:$0xff]
          %v3214 = vld [vmem:[#allocation3 + $0x160] sm:$0xff]
          %v3215 = vld [vmem:[#allocation3 + $0x168] sm:$0xff]
          %v3216 = vld [vmem:[#allocation3 + $0x170] sm:$0xff]
          %v3217 = vld [vmem:[#allocation3 + $0x178] sm:$0xff]
          %v3218 = vld [vmem:[#allocation3 + $0x180] sm:$0xff]
          %v3219 = vld [vmem:[#allocation3 + $0x188] sm:$0xff]
          %v3220 = vld [vmem:[#allocation3 + $0x190] sm:$0xff]
          %v3221 = vld [vmem:[#allocation3 + $0x198] sm:$0xff]
          %v3222 = vld [vmem:[#allocation3 + $0x1a0] sm:$0xff]
          %v3223 = vld [vmem:[#allocation3 + $0x1a8] sm:$0xff]
          %v3224 = vld [vmem:[#allocation3 + $0x1b0] sm:$0xff]
          %v3225 = vld [vmem:[#allocation3 + $0x1b8] sm:$0xff]
          %v3226 = vld [vmem:[#allocation3 + $0x1c0] sm:$0xff]
          %v3227 = vld [vmem:[#allocation3 + $0x1c8] sm:$0xff]
          %v3228 = vld [vmem:[#allocation3 + $0x1d0] sm:$0xff]
          %v3229 = vld [vmem:[#allocation3 + $0x1d8] sm:$0xff]
          %v3230 = vld [vmem:[#allocation3 + $0x1e0] sm:$0xff]
          %v3231 = vld [vmem:[#allocation3 + $0x1e8] sm:$0xff]
          %v3232 = vld [vmem:[#allocation3 + $0x1f0] sm:$0xff]
          %v3233 = vld [vmem:[#allocation3 + $0x1f8] sm:$0xff]
          %v3234 = vsub.f32 %v3106, %v3202
          %v3235 = vsub.f32 %v3107, %v3203
          %v3236 = vsub.f32 %v3108, %v3204
          %v3237 = vsub.f32 %v3109, %v3205
          %v3238 = vsub.f32 %v3110, %v3206
          %v3239 = vsub.f32 %v3111, %v3207
          %v3240 = vsub.f32 %v3112, %v3208
          %v3241 = vsub.f32 %v3113, %v3209
          %v3242 = vsub.f32 %v3114, %v3210
          %v3243 = vsub.f32 %v3115, %v3211
          %v3244 = vsub.f32 %v3116, %v3212
          %v3245 = vsub.f32 %v3117, %v3213
          %v3246 = vsub.f32 %v3118, %v3214
          %v3247 = vsub.f32 %v3119, %v3215
          %v3248 = vsub.f32 %v3120, %v3216
          %v3249 = vsub.f32 %v3121, %v3217
          %v3250 = vsub.f32 %v3122, %v3218
          %v3251 = vsub.f32 %v3123, %v3219
          %v3252 = vsub.f32 %v3124, %v3220
          %v3253 = vsub.f32 %v3125, %v3221
          %v3254 = vsub.f32 %v3126, %v3222
          %v3255 = vsub.f32 %v3127, %v3223
          %v3256 = vsub.f32 %v3128, %v3224
          %v3257 = vsub.f32 %v3129, %v3225
          %v3258 = vsub.f32 %v3130, %v3226
          %v3259 = vsub.f32 %v3131, %v3227
          %v3260 = vsub.f32 %v3132, %v3228
          %v3261 = vsub.f32 %v3133, %v3229
          %v3262 = vsub.f32 %v3134, %v3230
          %v3263 = vsub.f32 %v3135, %v3231
          %v3264 = vsub.f32 %v3136, %v3232
          %v3265 = vsub.f32 %v3137, %v3233
          %v3266 = vadd.f32 %v3170, %v3138
          %v3267 = vadd.f32 %v3171, %v3139
          %v3268 = vadd.f32 %v3172, %v3140
          %v3269 = vadd.f32 %v3173, %v3141
          %v3270 = vadd.f32 %v3174, %v3142
          %v3271 = vadd.f32 %v3175, %v3143
          %v3272 = vadd.f32 %v3176, %v3144
          %v3273 = vadd.f32 %v3177, %v3145
          %v3274 = vadd.f32 %v3178, %v3146
          %v3275 = vadd.f32 %v3179, %v3147
          %v3276 = vadd.f32 %v3180, %v3148
          %v3277 = vadd.f32 %v3181, %v3149
          %v3278 = vadd.f32 %v3182, %v3150
          %v3279 = vadd.f32 %v3183, %v3151
          %v3280 = vadd.f32 %v3184, %v3152
          %v3281 = vadd.f32 %v3185, %v3153
          %v3282 = vadd.f32 %v3186, %v3154
          %v3283 = vadd.f32 %v3187, %v3155
          %v3284 = vadd.f32 %v3188, %v3156
          %v3285 = vadd.f32 %v3189, %v3157
          %v3286 = vadd.f32 %v3190, %v3158
          %v3287 = vadd.f32 %v3191, %v3159
          %v3288 = vadd.f32 %v3192, %v3160
          %v3289 = vadd.f32 %v3193, %v3161
          %v3290 = vadd.f32 %v3194, %v3162
          %v3291 = vadd.f32 %v3195, %v3163
          %v3292 = vadd.f32 %v3196, %v3164
          %v3293 = vadd.f32 %v3197, %v3165
          %v3294 = vadd.f32 %v3198, %v3166
          %v3295 = vadd.f32 %v3199, %v3167
          %v3296 = vadd.f32 %v3200, %v3168
          %v3297 = vadd.f32 %v3201, %v3169
          %v3298 = vld [vmem:[%s459] sm:$0xff]
          %v3299 = vld [vmem:[%s459 + $0x8] sm:$0xff]
          %v3300 = vld [vmem:[%s459 + $0x10] sm:$0xff]
          %v3301 = vld [vmem:[%s459 + $0x18] sm:$0xff]
          %v3302 = vld [vmem:[%s459 + $0x20] sm:$0xff]
          %v3303 = vld [vmem:[%s459 + $0x28] sm:$0xff]
          %v3304 = vld [vmem:[%s459 + $0x30] sm:$0xff]
          %v3305 = vld [vmem:[%s459 + $0x38] sm:$0xff]
          %v3306 = vld [vmem:[%s459 + $0x40] sm:$0xff]
          %v3307 = vld [vmem:[%s459 + $0x48] sm:$0xff]
          %v3308 = vld [vmem:[%s459 + $0x50] sm:$0xff]
          %v3309 = vld [vmem:[%s459 + $0x58] sm:$0xff]
          %v3310 = vld [vmem:[%s459 + $0x60] sm:$0xff]
          %v3311 = vld [vmem:[%s459 + $0x68] sm:$0xff]
          %v3312 = vld [vmem:[%s459 + $0x70] sm:$0xff]
          %v3313 = vld [vmem:[%s459 + $0x78] sm:$0xff]
          %v3314 = vld [vmem:[%s459 + $0x80] sm:$0xff]
          %v3315 = vld [vmem:[%s459 + $0x88] sm:$0xff]
          %v3316 = vld [vmem:[%s459 + $0x90] sm:$0xff]
          %v3317 = vld [vmem:[%s459 + $0x98] sm:$0xff]
          %v3318 = vld [vmem:[%s459 + $0xa0] sm:$0xff]
          %v3319 = vld [vmem:[%s459 + $0xa8] sm:$0xff]
          %v3320 = vld [vmem:[%s459 + $0xb0] sm:$0xff]
          %v3321 = vld [vmem:[%s459 + $0xb8] sm:$0xff]
          %v3322 = vld [vmem:[%s459 + $0xc0] sm:$0xff]
          %v3323 = vld [vmem:[%s459 + $0xc8] sm:$0xff]
          %v3324 = vld [vmem:[%s459 + $0xd0] sm:$0xff]
          %v3325 = vld [vmem:[%s459 + $0xd8] sm:$0xff]
          %v3326 = vld [vmem:[%s459 + $0xe0] sm:$0xff]
          %v3327 = vld [vmem:[%s459 + $0xe8] sm:$0xff]
          %v3328 = vld [vmem:[%s459 + $0xf0] sm:$0xff]
          %v3329 = vld [vmem:[%s459 + $0xf8] sm:$0xff]
          %s3330 = scalar_lea.vmem %s459, 256 [#allocation12]
          %v3331 = vld [vmem:[%s3330] sm:$0xff]
          %v3332 = vld [vmem:[%s3330 + $0x8] sm:$0xff]
          %v3333 = vld [vmem:[%s3330 + $0x10] sm:$0xff]
          %v3334 = vld [vmem:[%s3330 + $0x18] sm:$0xff]
          %v3335 = vld [vmem:[%s3330 + $0x20] sm:$0xff]
          %v3336 = vld [vmem:[%s3330 + $0x28] sm:$0xff]
          %v3337 = vld [vmem:[%s3330 + $0x30] sm:$0xff]
          %v3338 = vld [vmem:[%s3330 + $0x38] sm:$0xff]
          %v3339 = vld [vmem:[%s3330 + $0x40] sm:$0xff]
          %v3340 = vld [vmem:[%s3330 + $0x48] sm:$0xff]
          %v3341 = vld [vmem:[%s3330 + $0x50] sm:$0xff]
          %v3342 = vld [vmem:[%s3330 + $0x58] sm:$0xff]
          %v3343 = vld [vmem:[%s3330 + $0x60] sm:$0xff]
          %v3344 = vld [vmem:[%s3330 + $0x68] sm:$0xff]
          %v3345 = vld [vmem:[%s3330 + $0x70] sm:$0xff]
          %v3346 = vld [vmem:[%s3330 + $0x78] sm:$0xff]
          %v3347 = vld [vmem:[%s3330 + $0x80] sm:$0xff]
          %v3348 = vld [vmem:[%s3330 + $0x88] sm:$0xff]
          %v3349 = vld [vmem:[%s3330 + $0x90] sm:$0xff]
          %v3350 = vld [vmem:[%s3330 + $0x98] sm:$0xff]
          %v3351 = vld [vmem:[%s3330 + $0xa0] sm:$0xff]
          %v3352 = vld [vmem:[%s3330 + $0xa8] sm:$0xff]
          %v3353 = vld [vmem:[%s3330 + $0xb0] sm:$0xff]
          %v3354 = vld [vmem:[%s3330 + $0xb8] sm:$0xff]
          %v3355 = vld [vmem:[%s3330 + $0xc0] sm:$0xff]
          %v3356 = vld [vmem:[%s3330 + $0xc8] sm:$0xff]
          %v3357 = vld [vmem:[%s3330 + $0xd0] sm:$0xff]
          %v3358 = vld [vmem:[%s3330 + $0xd8] sm:$0xff]
          %v3359 = vld [vmem:[%s3330 + $0xe0] sm:$0xff]
          %v3360 = vld [vmem:[%s3330 + $0xe8] sm:$0xff]
          %v3361 = vld [vmem:[%s3330 + $0xf0] sm:$0xff]
          %v3362 = vld [vmem:[%s3330 + $0xf8] sm:$0xff]
          %v3363 = vmul.f32 %v3298, %v3234
          %v3364 = vmul.f32 %v3299, %v3235
          %v3365 = vmul.f32 %v3300, %v3236
          %v3366 = vmul.f32 %v3301, %v3237
          %v3367 = vmul.f32 %v3302, %v3238
          %v3368 = vmul.f32 %v3303, %v3239
          %v3369 = vmul.f32 %v3304, %v3240
          %v3370 = vmul.f32 %v3305, %v3241
          %v3371 = vmul.f32 %v3306, %v3242
          %v3372 = vmul.f32 %v3307, %v3243
          %v3373 = vmul.f32 %v3308, %v3244
          %v3374 = vmul.f32 %v3309, %v3245
          %v3375 = vmul.f32 %v3310, %v3246
          %v3376 = vmul.f32 %v3311, %v3247
          %v3377 = vmul.f32 %v3312, %v3248
          %v3378 = vmul.f32 %v3313, %v3249
          %v3379 = vmul.f32 %v3314, %v3250
          %v3380 = vmul.f32 %v3315, %v3251
          %v3381 = vmul.f32 %v3316, %v3252
          %v3382 = vmul.f32 %v3317, %v3253
          %v3383 = vmul.f32 %v3318, %v3254
          %v3384 = vmul.f32 %v3319, %v3255
          %v3385 = vmul.f32 %v3320, %v3256
          %v3386 = vmul.f32 %v3321, %v3257
          %v3387 = vmul.f32 %v3322, %v3258
          %v3388 = vmul.f32 %v3323, %v3259
          %v3389 = vmul.f32 %v3324, %v3260
          %v3390 = vmul.f32 %v3325, %v3261
          %v3391 = vmul.f32 %v3326, %v3262
          %v3392 = vmul.f32 %v3327, %v3263
          %v3393 = vmul.f32 %v3328, %v3264
          %v3394 = vmul.f32 %v3329, %v3265
          %v3395 = vmul.f32 %v3331, %v3266
          %v3396 = vmul.f32 %v3332, %v3267
          %v3397 = vmul.f32 %v3333, %v3268
          %v3398 = vmul.f32 %v3334, %v3269
          %v3399 = vmul.f32 %v3335, %v3270
          %v3400 = vmul.f32 %v3336, %v3271
          %v3401 = vmul.f32 %v3337, %v3272
          %v3402 = vmul.f32 %v3338, %v3273
          %v3403 = vmul.f32 %v3339, %v3274
          %v3404 = vmul.f32 %v3340, %v3275
          %v3405 = vmul.f32 %v3341, %v3276
          %v3406 = vmul.f32 %v3342, %v3277
          %v3407 = vmul.f32 %v3343, %v3278
          %v3408 = vmul.f32 %v3344, %v3279
          %v3409 = vmul.f32 %v3345, %v3280
          %v3410 = vmul.f32 %v3346, %v3281
          %v3411 = vmul.f32 %v3347, %v3282
          %v3412 = vmul.f32 %v3348, %v3283
          %v3413 = vmul.f32 %v3349, %v3284
          %v3414 = vmul.f32 %v3350, %v3285
          %v3415 = vmul.f32 %v3351, %v3286
          %v3416 = vmul.f32 %v3352, %v3287
          %v3417 = vmul.f32 %v3353, %v3288
          %v3418 = vmul.f32 %v3354, %v3289
          %v3419 = vmul.f32 %v3355, %v3290
          %v3420 = vmul.f32 %v3356, %v3291
          %v3421 = vmul.f32 %v3357, %v3292
          %v3422 = vmul.f32 %v3358, %v3293
          %v3423 = vmul.f32 %v3359, %v3294
          %v3424 = vmul.f32 %v3360, %v3295
          %v3425 = vmul.f32 %v3361, %v3296
          %v3426 = vmul.f32 %v3362, %v3297
          %v3427 = vadd.f32 %v3363, %v3395
          %v3428 = vadd.f32 %v3364, %v3396
          %v3429 = vadd.f32 %v3365, %v3397
          %v3430 = vadd.f32 %v3366, %v3398
          %v3431 = vadd.f32 %v3367, %v3399
          %v3432 = vadd.f32 %v3368, %v3400
          %v3433 = vadd.f32 %v3369, %v3401
          %v3434 = vadd.f32 %v3370, %v3402
          %v3435 = vadd.f32 %v3371, %v3403
          %v3436 = vadd.f32 %v3372, %v3404
          %v3437 = vadd.f32 %v3373, %v3405
          %v3438 = vadd.f32 %v3374, %v3406
          %v3439 = vadd.f32 %v3375, %v3407
          %v3440 = vadd.f32 %v3376, %v3408
          %v3441 = vadd.f32 %v3377, %v3409
          %v3442 = vadd.f32 %v3378, %v3410
          %v3443 = vadd.f32 %v3379, %v3411
          %v3444 = vadd.f32 %v3380, %v3412
          %v3445 = vadd.f32 %v3381, %v3413
          %v3446 = vadd.f32 %v3382, %v3414
          %v3447 = vadd.f32 %v3383, %v3415
          %v3448 = vadd.f32 %v3384, %v3416
          %v3449 = vadd.f32 %v3385, %v3417
          %v3450 = vadd.f32 %v3386, %v3418
          %v3451 = vadd.f32 %v3387, %v3419
          %v3452 = vadd.f32 %v3388, %v3420
          %v3453 = vadd.f32 %v3389, %v3421
          %v3454 = vadd.f32 %v3390, %v3422
          %v3455 = vadd.f32 %v3391, %v3423
          %v3456 = vadd.f32 %v3392, %v3424
          %v3457 = vadd.f32 %v3393, %v3425
          %v3458 = vadd.f32 %v3394, %v3426
          %v3459 = vsel %vm2491, %v3427, 0.0
          %v3460 = vsel %vm2491, %v3431, 0.0
          %v3461 = vadd.f32 %v3459, %v3460
          %v3462 = vsel %vm2491, %v3435, 0.0
          %v3463 = vadd.f32 %v3461, %v3462
          %v3464 = vsel %vm2491, %v3439, 0.0
          %v3465 = vadd.f32 %v3463, %v3464
          %v3466 = vsel %vm2491, %v3443, 0.0
          %v3467 = vadd.f32 %v3465, %v3466
          %v3468 = vsel %vm2491, %v3447, 0.0
          %v3469 = vadd.f32 %v3467, %v3468
          %v3470 = vsel %vm2491, %v3451, 0.0
          %v3471 = vadd.f32 %v3469, %v3470
          %v3472 = vsel %vm2491, %v3455, 0.0
          %v3473 = vadd.f32 %v3471, %v3472
          %v3474 = vsel %vm2491, %v3428, 0.0
          %v3475 = vsel %vm2491, %v3432, 0.0
          %v3476 = vadd.f32 %v3474, %v3475
          %v3477 = vsel %vm2491, %v3436, 0.0
          %v3478 = vadd.f32 %v3476, %v3477
          %v3479 = vsel %vm2491, %v3440, 0.0
          %v3480 = vadd.f32 %v3478, %v3479
          %v3481 = vsel %vm2491, %v3444, 0.0
          %v3482 = vadd.f32 %v3480, %v3481
          %v3483 = vsel %vm2491, %v3448, 0.0
          %v3484 = vadd.f32 %v3482, %v3483
          %v3485 = vsel %vm2491, %v3452, 0.0
          %v3486 = vadd.f32 %v3484, %v3485
          %v3487 = vsel %vm2491, %v3456, 0.0
          %v3488 = vadd.f32 %v3486, %v3487
          %v3489 = vsel %vm2491, %v3429, 0.0
          %v3490 = vsel %vm2491, %v3433, 0.0
          %v3491 = vadd.f32 %v3489, %v3490
          %v3492 = vsel %vm2491, %v3437, 0.0
          %v3493 = vadd.f32 %v3491, %v3492
          %v3494 = vsel %vm2491, %v3441, 0.0
          %v3495 = vadd.f32 %v3493, %v3494
          %v3496 = vsel %vm2491, %v3445, 0.0
          %v3497 = vadd.f32 %v3495, %v3496
          %v3498 = vsel %vm2491, %v3449, 0.0
          %v3499 = vadd.f32 %v3497, %v3498
          %v3500 = vsel %vm2491, %v3453, 0.0
          %v3501 = vadd.f32 %v3499, %v3500
          %v3502 = vsel %vm2491, %v3457, 0.0
          %v3503 = vadd.f32 %v3501, %v3502
          %v3504 = vsel %vm2491, %v3430, 0.0
          %v3505 = vsel %vm2491, %v3434, 0.0
          %v3506 = vadd.f32 %v3504, %v3505
          %v3507 = vsel %vm2491, %v3438, 0.0
          %v3508 = vadd.f32 %v3506, %v3507
          %v3509 = vsel %vm2491, %v3442, 0.0
          %v3510 = vadd.f32 %v3508, %v3509
          %v3511 = vsel %vm2491, %v3446, 0.0
          %v3512 = vadd.f32 %v3510, %v3511
          %v3513 = vsel %vm2491, %v3450, 0.0
          %v3514 = vadd.f32 %v3512, %v3513
          %v3515 = vsel %vm2491, %v3454, 0.0
          %v3516 = vadd.f32 %v3514, %v3515
          %v3517 = vsel %vm2491, %v3458, 0.0
          %v3518 = vadd.f32 %v3516, %v3517
          %v3519 = vmul.f32 %v3473, 0.03125
          %v3520 = vmul.f32 %v3488, 0.03125
          %v3521 = vmul.f32 %v3503, 0.03125
          %v3522 = vmul.f32 %v3518, 0.03125
          %3523 = vst.msk [vmem:[%s503] sm:$0xff] %vm2491, %v3519
          %3524 = vst.msk [vmem:[%s503 + $0x8] sm:$0xff] %vm2491, %v3520
          %3525 = vst.msk [vmem:[%s503 + $0x10] sm:$0xff] %vm2491, %v3521
          %3526 = vst.msk [vmem:[%s503 + $0x18] sm:$0xff] %vm2491, %v3522
          %v3527 = vmul.f32 %v3298, %v3266
          %v3528 = vmul.f32 %v3299, %v3267
          %v3529 = vmul.f32 %v3300, %v3268
          %v3530 = vmul.f32 %v3301, %v3269
          %v3531 = vmul.f32 %v3302, %v3270
          %v3532 = vmul.f32 %v3303, %v3271
          %v3533 = vmul.f32 %v3304, %v3272
          %v3534 = vmul.f32 %v3305, %v3273
          %v3535 = vmul.f32 %v3306, %v3274
          %v3536 = vmul.f32 %v3307, %v3275
          %v3537 = vmul.f32 %v3308, %v3276
          %v3538 = vmul.f32 %v3309, %v3277
          %v3539 = vmul.f32 %v3310, %v3278
          %v3540 = vmul.f32 %v3311, %v3279
          %v3541 = vmul.f32 %v3312, %v3280
          %v3542 = vmul.f32 %v3313, %v3281
          %v3543 = vmul.f32 %v3314, %v3282
          %v3544 = vmul.f32 %v3315, %v3283
          %v3545 = vmul.f32 %v3316, %v3284
          %v3546 = vmul.f32 %v3317, %v3285
          %v3547 = vmul.f32 %v3318, %v3286
          %v3548 = vmul.f32 %v3319, %v3287
          %v3549 = vmul.f32 %v3320, %v3288
          %v3550 = vmul.f32 %v3321, %v3289
          %v3551 = vmul.f32 %v3322, %v3290
          %v3552 = vmul.f32 %v3323, %v3291
          %v3553 = vmul.f32 %v3324, %v3292
          %v3554 = vmul.f32 %v3325, %v3293
          %v3555 = vmul.f32 %v3326, %v3294
          %v3556 = vmul.f32 %v3327, %v3295
          %v3557 = vmul.f32 %v3328, %v3296
          %v3558 = vmul.f32 %v3329, %v3297
          %v3559 = vmul.f32 %v3331, %v3234
          %v3560 = vmul.f32 %v3332, %v3235
          %v3561 = vmul.f32 %v3333, %v3236
          %v3562 = vmul.f32 %v3334, %v3237
          %v3563 = vmul.f32 %v3335, %v3238
          %v3564 = vmul.f32 %v3336, %v3239
          %v3565 = vmul.f32 %v3337, %v3240
          %v3566 = vmul.f32 %v3338, %v3241
          %v3567 = vmul.f32 %v3339, %v3242
          %v3568 = vmul.f32 %v3340, %v3243
          %v3569 = vmul.f32 %v3341, %v3244
          %v3570 = vmul.f32 %v3342, %v3245
          %v3571 = vmul.f32 %v3343, %v3246
          %v3572 = vmul.f32 %v3344, %v3247
          %v3573 = vmul.f32 %v3345, %v3248
          %v3574 = vmul.f32 %v3346, %v3249
          %v3575 = vmul.f32 %v3347, %v3250
          %v3576 = vmul.f32 %v3348, %v3251
          %v3577 = vmul.f32 %v3349, %v3252
          %v3578 = vmul.f32 %v3350, %v3253
          %v3579 = vmul.f32 %v3351, %v3254
          %v3580 = vmul.f32 %v3352, %v3255
          %v3581 = vmul.f32 %v3353, %v3256
          %v3582 = vmul.f32 %v3354, %v3257
          %v3583 = vmul.f32 %v3355, %v3258
          %v3584 = vmul.f32 %v3356, %v3259
          %v3585 = vmul.f32 %v3357, %v3260
          %v3586 = vmul.f32 %v3358, %v3261
          %v3587 = vmul.f32 %v3359, %v3262
          %v3588 = vmul.f32 %v3360, %v3263
          %v3589 = vmul.f32 %v3361, %v3264
          %v3590 = vmul.f32 %v3362, %v3265
          %v3591 = vsub.f32 %v3527, %v3559
          %v3592 = vsub.f32 %v3528, %v3560
          %v3593 = vsub.f32 %v3529, %v3561
          %v3594 = vsub.f32 %v3530, %v3562
          %v3595 = vsub.f32 %v3531, %v3563
          %v3596 = vsub.f32 %v3532, %v3564
          %v3597 = vsub.f32 %v3533, %v3565
          %v3598 = vsub.f32 %v3534, %v3566
          %v3599 = vsub.f32 %v3535, %v3567
          %v3600 = vsub.f32 %v3536, %v3568
          %v3601 = vsub.f32 %v3537, %v3569
          %v3602 = vsub.f32 %v3538, %v3570
          %v3603 = vsub.f32 %v3539, %v3571
          %v3604 = vsub.f32 %v3540, %v3572
          %v3605 = vsub.f32 %v3541, %v3573
          %v3606 = vsub.f32 %v3542, %v3574
          %v3607 = vsub.f32 %v3543, %v3575
          %v3608 = vsub.f32 %v3544, %v3576
          %v3609 = vsub.f32 %v3545, %v3577
          %v3610 = vsub.f32 %v3546, %v3578
          %v3611 = vsub.f32 %v3547, %v3579
          %v3612 = vsub.f32 %v3548, %v3580
          %v3613 = vsub.f32 %v3549, %v3581
          %v3614 = vsub.f32 %v3550, %v3582
          %v3615 = vsub.f32 %v3551, %v3583
          %v3616 = vsub.f32 %v3552, %v3584
          %v3617 = vsub.f32 %v3553, %v3585
          %v3618 = vsub.f32 %v3554, %v3586
          %v3619 = vsub.f32 %v3555, %v3587
          %v3620 = vsub.f32 %v3556, %v3588
          %v3621 = vsub.f32 %v3557, %v3589
          %v3622 = vsub.f32 %v3558, %v3590
          %v3623 = vsel %vm2491, %v3591, 0.0
          %v3624 = vsel %vm2491, %v3595, 0.0
          %v3625 = vadd.f32 %v3623, %v3624
          %v3626 = vsel %vm2491, %v3599, 0.0
          %v3627 = vadd.f32 %v3625, %v3626
          %v3628 = vsel %vm2491, %v3603, 0.0
          %v3629 = vadd.f32 %v3627, %v3628
          %v3630 = vsel %vm2491, %v3607, 0.0
          %v3631 = vadd.f32 %v3629, %v3630
          %v3632 = vsel %vm2491, %v3611, 0.0
          %v3633 = vadd.f32 %v3631, %v3632
          %v3634 = vsel %vm2491, %v3615, 0.0
          %v3635 = vadd.f32 %v3633, %v3634
          %v3636 = vsel %vm2491, %v3619, 0.0
          %v3637 = vadd.f32 %v3635, %v3636
          %v3638 = vsel %vm2491, %v3592, 0.0
          %v3639 = vsel %vm2491, %v3596, 0.0
          %v3640 = vadd.f32 %v3638, %v3639
          %v3641 = vsel %vm2491, %v3600, 0.0
          %v3642 = vadd.f32 %v3640, %v3641
          %v3643 = vsel %vm2491, %v3604, 0.0
          %v3644 = vadd.f32 %v3642, %v3643
          %v3645 = vsel %vm2491, %v3608, 0.0
          %v3646 = vadd.f32 %v3644, %v3645
          %v3647 = vsel %vm2491, %v3612, 0.0
          %v3648 = vadd.f32 %v3646, %v3647
          %v3649 = vsel %vm2491, %v3616, 0.0
          %v3650 = vadd.f32 %v3648, %v3649
          %v3651 = vsel %vm2491, %v3620, 0.0
          %v3652 = vadd.f32 %v3650, %v3651
          %v3653 = vsel %vm2491, %v3593, 0.0
          %v3654 = vsel %vm2491, %v3597, 0.0
          %v3655 = vadd.f32 %v3653, %v3654
          %v3656 = vsel %vm2491, %v3601, 0.0
          %v3657 = vadd.f32 %v3655, %v3656
          %v3658 = vsel %vm2491, %v3605, 0.0
          %v3659 = vadd.f32 %v3657, %v3658
          %v3660 = vsel %vm2491, %v3609, 0.0
          %v3661 = vadd.f32 %v3659, %v3660
          %v3662 = vsel %vm2491, %v3613, 0.0
          %v3663 = vadd.f32 %v3661, %v3662
          %v3664 = vsel %vm2491, %v3617, 0.0
          %v3665 = vadd.f32 %v3663, %v3664
          %v3666 = vsel %vm2491, %v3621, 0.0
          %v3667 = vadd.f32 %v3665, %v3666
          %v3668 = vsel %vm2491, %v3594, 0.0
          %v3669 = vsel %vm2491, %v3598, 0.0
          %v3670 = vadd.f32 %v3668, %v3669
          %v3671 = vsel %vm2491, %v3602, 0.0
          %v3672 = vadd.f32 %v3670, %v3671
          %v3673 = vsel %vm2491, %v3606, 0.0
          %v3674 = vadd.f32 %v3672, %v3673
          %v3675 = vsel %vm2491, %v3610, 0.0
          %v3676 = vadd.f32 %v3674, %v3675
          %v3677 = vsel %vm2491, %v3614, 0.0
          %v3678 = vadd.f32 %v3676, %v3677
          %v3679 = vsel %vm2491, %v3618, 0.0
          %v3680 = vadd.f32 %v3678, %v3679
          %v3681 = vsel %vm2491, %v3622, 0.0
          %v3682 = vadd.f32 %v3680, %v3681
          %v3683 = vmul.f32 %v3637, 0.03125
          %v3684 = vmul.f32 %v3652, 0.03125
          %v3685 = vmul.f32 %v3667, 0.03125
          %v3686 = vmul.f32 %v3682, 0.03125
          %3687 = vst.msk [vmem:[%s510] sm:$0xff] %vm2491, %v3683
          %3688 = vst.msk [vmem:[%s510 + $0x8] sm:$0xff] %vm2491, %v3684
          %3689 = vst.msk [vmem:[%s510 + $0x10] sm:$0xff] %vm2491, %v3685
          %3690 = vst.msk [vmem:[%s510 + $0x18] sm:$0xff] %vm2491, %v3686
        $region68: #{tpu_custom_call.1} parent=39 // pred_fallthru
          _
        %s3691 = sand.u32 %s200, 1
        %s3692 = scalar_lea.sflag [#allocation6], %s3691
        %s3693 = sand.u32 %s200, 1
        %s3694 = smul.addr %s3693, 32
        %s3695 = scalar_lea.vmem [#allocation13], %s3694
        %s3696 = sand.u32 %s228, 1
        %s3697 = scalar_lea.sflag [#allocation15], %s3696
        %s3698 = sand.u32 %s228, 1
        %s3699 = smul.addr %s3698, 32
        %s3700 = scalar_lea.vmem [#allocation14], %s3699
        // Predicated region
        $region69: #{tpu_custom_call.1} parent=39 // pred_check
          %p3701 = pneg %p210
        $region70: #{tpu_custom_call.1} parent=39 // pred_check_branch
          %3703 = sbr.rel (%p3701) target = $region72
        $region71: #{tpu_custom_call.1} parent=39 // pred_region
          %s3704 = smul.u32 4, %s39
          %s3706 = ssub.s32 512, 512
          %3707 = vsyncadd %s3692, %s3706
          %s3708 = smul.addr %s38, 8
          %s3709 = sadd.s32 %s3704, %s3708
          %s3710 = smul.addr %s3709, 128
          %s3711 = scalar_lea.hbm %s5, %s3710
          %s3712 = sshll.u32 %s3695, 4
          %s3713 = int_to_ptr.vmem [resolvable:$true] %s3712
          %3718 = dma.vmem_to_hbm [thread:$0]  %s3713, 512, %s3711, %s3692, 128, 128, 8
        $region72: #{tpu_custom_call.1} parent=39 // pred_fallthru
          _
        // Predicated region
        $region73: #{tpu_custom_call.1} parent=39 // pred_check
          %p3719 = pneg %p238
        $region74: #{tpu_custom_call.1} parent=39 // pred_check_branch
          %3721 = sbr.rel (%p3719) target = $region76
        $region75: #{tpu_custom_call.1} parent=39 // pred_region
          %s3722 = smul.u32 4, %s39
          %s3724 = ssub.s32 512, 512
          %3725 = vsyncadd %s3697, %s3724
          %s3726 = smul.addr %s38, 8
          %s3727 = sadd.s32 %s3722, %s3726
          %s3728 = smul.addr %s3727, 128
          %s3729 = scalar_lea.hbm %s6, %s3728
          %s3730 = sshll.u32 %s3700, 4
          %s3731 = int_to_ptr.vmem [resolvable:$true] %s3730
          %3736 = dma.vmem_to_hbm [thread:$0]  %s3731, 512, %s3729, %s3697, 128, 128, 8
        $region76: #{tpu_custom_call.1} parent=39 // pred_fallthru
          _
      $region40: #{tpu_custom_call.1} parent=5 // pred_fallthru
        _
      %p3737 = scmp.le.s32.totalorder 2, %s28
      // Predicated region
      $region77: #{tpu_custom_call.1} parent=5 // pred_check
        %p3738 = pneg %p3737
      $region78: #{tpu_custom_call.1} parent=5 // pred_check_branch
        %3740 = sbr.rel (%p3738) target = $region80
      $region79: #{tpu_custom_call.1} parent=5 // pred_region
        %s3741 = ssub.s32 %s28, 2
        // Predicated region
        $region81: #{tpu_custom_call.1} parent=79 // pred_check
          %p3742 = pneg %p216
        $region82: #{tpu_custom_call.1} parent=79 // pred_check_branch
          %3744 = sbr.rel (%p3742) target = $region84
        $region83: #{tpu_custom_call.1} parent=79 // pred_region
          %s3745 = sand.u32 %s201, 1
          %s3746 = scalar_lea.sflag [#allocation6], %s3745
          %s3747 = sand.u32 %s201, 1
          %s3748 = smul.addr %s3747, 32
          %s3749 = scalar_lea.vmem [#allocation13], %s3748
          %3750 = dma.done %s3746, 512
        $region84: #{tpu_custom_call.1} parent=79 // pred_fallthru
          _
        // Predicated region
        $region85: #{tpu_custom_call.1} parent=79 // pred_check
          %p3751 = pneg %p244
        $region86: #{tpu_custom_call.1} parent=79 // pred_check_branch
          %3753 = sbr.rel (%p3751) target = $region88
        $region87: #{tpu_custom_call.1} parent=79 // pred_region
          %s3754 = sand.u32 %s229, 1
          %s3755 = scalar_lea.sflag [#allocation15], %s3754
          %s3756 = sand.u32 %s229, 1
          %s3757 = smul.addr %s3756, 32
          %s3758 = scalar_lea.vmem [#allocation14], %s3757
          %3759 = dma.done %s3755, 512
        $region88: #{tpu_custom_call.1} parent=79 // pred_fallthru
          _
      $region80: #{tpu_custom_call.1} parent=5 // pred_fallthru
        _
    $region6: #{tpu_custom_call.1} parent=1 // loop_footer
      %s32 = sadd.s32 1, %s28
    $region7: #{tpu_custom_call.1} parent=1 // loop_footer_branch
      %27 = sbr.rel target = $region3
    $region8: #{tpu_custom_call.1} parent=1 // loop_exit
      _
    %3760 = vsyncpa [#allocation5], 1
    %s3761 = scalar_lea.sflag [#allocation5], 1
    %3762 = vsyncpa %s3761, 1
    %3763 = vsyncpa [#allocation8], 1
    %s3764 = scalar_lea.sflag [#allocation8], 1
    %3765 = vsyncpa %s3764, 1
    %3766 = vsyncpa [#allocation11], 1
    %s3767 = scalar_lea.sflag [#allocation11], 1
    %3768 = vsyncpa %s3767, 1
    %3769 = vsyncpa [#allocation6], 1
    %s3770 = scalar_lea.sflag [#allocation6], 1
    %3771 = vsyncpa %s3770, 1
    %3772 = vsyncpa [#allocation15], 1
    %s3773 = scalar_lea.sflag [#allocation15], 1
    %3774 = vsyncpa %s3773, 1

</llo_original>
